<compile_context>
chip_gen: v5e
topology: v5e:2x2
jax: 0.10.0
libtpu: 0.0.40
codegen_flags: <defaults>
</compile_context>

<pallas_src>
import functools

import jax
import jax.numpy as jnp
from jax.experimental import pallas as pl
from jax.experimental.pallas import tpu as pltpu  # noqa: F401

# ----------------------------- config ----------------------------------------
BATCH = 2
IN_CH = 1
IMG = 16
PATCH = 8
EMB = 32
N_LAYERS = 2
N_HEADS = 4
HEAD_DIM = EMB // N_HEADS
T_IN = 4                          # input_frames (= attention seq_len)
PRED_FRAMES = 2
HW = IMG // PATCH                 # patches per side
NPATCH = HW * HW                  # num_patches
PATCH_DIM = PATCH * PATCH * IN_CH
ROWS_B = T_IN * NPATCH            # token rows per batch element
R_TOT = BATCH * ROWS_B            # merged token rows (all batch elements)
LANE = 128                        # TPU lane width = packed-slab / padded width
OUT_ROWS = PRED_FRAMES * BATCH * NPATCH

assert PATCH_DIM <= LANE and 3 * EMB <= LANE and 4 * EMB <= LANE
assert R_TOT <= LANE and EMB <= LANE


# ----------------------------- packed-slab layout -----------------------------
def _round8(n):
    return (n + 7) // 8 * 8


def _build_layout():
    """Row-slot layout of the packed (rows, LANE) f32 weight/constant slab."""
    entries = [
        ("pos", R_TOT, EMB),
        ("mask_bias", R_TOT, R_TOT),
        ("unmix", R_TOT, R_TOT),
        ("pe_w", LANE, EMB),          # real rows [:PATCH_DIM], rest zero
        ("pe_b", 1, EMB),
        ("dec_w", EMB, LANE),         # real cols [:PATCH_DIM], rest zero
        ("dec_b", 1, LANE),
    ]
    for l in range(N_LAYERS):
        entries += [
            (f"ln1_g_{l}", 1, EMB), (f"ln1_b_{l}", 1, EMB),
            (f"in_w_{l}", EMB, 3 * EMB), (f"in_b_{l}", 1, 3 * EMB),
            (f"out_w_{l}", EMB, EMB), (f"out_b_{l}", 1, EMB),
            (f"ln2_g_{l}", 1, EMB), (f"ln2_b_{l}", 1, EMB),
            (f"w1_{l}", EMB, 4 * EMB), (f"b1_{l}", 1, 4 * EMB),
            (f"w2_{l}", 4 * EMB, EMB), (f"b2_{l}", 1, EMB),
        ]
    layout, off = {}, 0
    for name, nr, nc in entries:
        assert nc <= LANE
        layout[name] = (off, nr, nc)
        off += _round8(nr)
    return layout, off


_LAYOUT, _SLAB_ROWS = _build_layout()


def pack_params(params):
    """Pack all weights + kernel constants into one lane-dense f32 slab
    (single DMA into VMEM instead of ~33 tiny descriptors)."""
    slab = jnp.zeros((_SLAB_ROWS, LANE), jnp.float32)

    def put(slab, name, arr):
        arr = jnp.asarray(arr, jnp.float32)
        if arr.ndim == 1:
            arr = arr.reshape(1, -1)
        off, nr, nc = _LAYOUT[name]
        assert arr.shape[0] <= nr and arr.shape[1] <= nc
        return slab.at[off:off + arr.shape[0], :arr.shape[1]].set(arr)

    # ---- constants derived from the config (merged-batch versions) ----------
    r = jnp.arange(R_TOT)
    # x.reshape(b*P, t, D) groups consecutive chunks of T_IN rows into one
    # attention sequence -> block-diagonal ADDITIVE score bias (0 / -1e30).
    grp = r // T_IN
    mask_bias = jnp.where(grp[:, None] == grp[None, :], 0.0, -1e30)
    # attn.reshape(b, P, t, D).transpose(1, 2)  == per-batch row permutation:
    # new[b, t*P + p] = old[b, p*T + t]
    b_idx, within = r // ROWS_B, r % ROWS_B
    t_idx, p_idx = within // NPATCH, within % NPATCH
    src = b_idx * ROWS_B + p_idx * T_IN + t_idx
    unmix = jnp.zeros((R_TOT, R_TOT), jnp.float32).at[r, src].set(1.0)
    # positional embedding tiled over the merged batch rows
    pos = jnp.tile(params["pos"].reshape(ROWS_B, EMB), (BATCH, 1))

    slab = put(slab, "pos", pos)
    slab = put(slab, "mask_bias", mask_bias)
    slab = put(slab, "unmix", unmix)
    slab = put(slab, "pe_w", params["pe_w"])
    slab = put(slab, "pe_b", params["pe_b"])
    slab = put(slab, "dec_w", params["dec_w"])
    slab = put(slab, "dec_b", params["dec_b"])
    for l, lp in enumerate(params["layers"]):
        slab = put(slab, f"ln1_g_{l}", lp["ln1_g"])
        slab = put(slab, f"ln1_b_{l}", lp["ln1_b"])
        slab = put(slab, f"in_w_{l}", lp["in_w"])
        slab = put(slab, f"in_b_{l}", lp["in_b"])
        slab = put(slab, f"out_w_{l}", lp["out_w"])
        slab = put(slab, f"out_b_{l}", lp["out_b"])
        slab = put(slab, f"ln2_g_{l}", lp["ln2_g"])
        slab = put(slab, f"ln2_b_{l}", lp["ln2_b"])
        slab = put(slab, f"w1_{l}", lp["w1"])
        slab = put(slab, f"b1_{l}", lp["b1"])
        slab = put(slab, f"w2_{l}", lp["w2"])
        slab = put(slab, f"b2_{l}", lp["b2"])
    return slab


# ----------------------------- fused Pallas kernel ----------------------------
def _fused_forward_kernel(xp_ref, slab_ref, out_ref, *, layout, n_layers,
                          n_heads, head_dim, emb, t_in, npatch, rows_b, batch,
                          pred_frames, scale):
    f32 = jnp.float32

    def get(name):                    # static ref slice into the packed slab
        off, nr, nc = layout[name]
        return slab_ref[off:off + nr, :nc]

    def layernorm(x, g, b):           # torch LayerNorm: biased var, eps=1e-5
        mu = jnp.mean(x, axis=-1, keepdims=True)
        var = jnp.mean(jnp.square(x - mu), axis=-1, keepdims=True)
        return (x - mu) * jax.lax.rsqrt(var + 1e-5) * g + b

    pe_w, pe_b = get("pe_w"), get("pe_b")       # (LANE, D); rows>=PATCH_DIM are 0

    # patch embedding + positional embedding (rows in (b, t, p) order)
    h = jnp.dot(xp_ref[...], pe_w, preferred_element_type=f32) + pe_b
    h = h + get("pos")

    mask_bias = get("mask_bias")      # (R, R) additive block-diagonal bias
    unmix = get("unmix")              # (R, R) permutation (axis-mixing reshape)
    D = emb

    for l in range(n_layers):
        # ---- ResidualAdd(PreNorm(MultiheadAttention)) ------------------------
        y = layernorm(h, get(f"ln1_g_{l}"), get(f"ln1_b_{l}"))
        qkv = (jnp.dot(y, get(f"in_w_{l}"), preferred_element_type=f32)
               + get(f"in_b_{l}"))                                  # (R, 3D)
        heads = []
        for hd in range(n_heads):
            lo = hd * head_dim
            q = qkv[:, lo:lo + head_dim]
            k = qkv[:, D + lo:D + lo + head_dim]
            v = qkv[:, 2 * D + lo:2 * D + lo + head_dim]
            s = jax.lax.dot_general(q, k, (((1,), (1,)), ((), ())),
                                    preferred_element_type=f32) * scale
            s = s + mask_bias
            s = s - jnp.max(s, axis=-1, keepdims=True)
            p = jnp.exp(s)
            p = p / jnp.sum(p, axis=-1, keepdims=True)              # exact softmax
            heads.append(jnp.dot(p, v, preferred_element_type=f32))
        o = jnp.concatenate(heads, axis=1)                          # (R, D)
        attn = (jnp.dot(o, get(f"out_w_{l}"), preferred_element_type=f32)
                + get(f"out_b_{l}"))
        # reference: reshape(b, P, t, D).transpose(1, 2) == row permutation
        h = h + jnp.dot(unmix, attn, preferred_element_type=f32)

        # ---- ResidualAdd(PreNorm(FeedForward)) -------------------------------
        y = layernorm(h, get(f"ln2_g_{l}"), get(f"ln2_b_{l}"))
        ff = (jnp.dot(y, get(f"w1_{l}"), preferred_element_type=f32)
              + get(f"b1_{l}"))
        ff = 0.5 * ff * (1.0 + jax.lax.erf(ff * 0.7071067811865476))  # exact GELU
        h = h + (jnp.dot(ff, get(f"w2_{l}"), preferred_element_type=f32)
                 + get(f"b2_{l}"))

    # ---- autoregressive rollout, entirely in VMEM ----------------------------
    # decoder Rearrange and patch_embed Rearrange are exact inverses, so a
    # rollout step is just two back-to-back linears; last-frame rows are pulled
    # out with static slices (no selector matmul).
    dec_w, dec_b = get("dec_w"), get("dec_b")     # (D, LANE); cols>=PATCH_DIM are 0
    last = t_in - 1
    state = jnp.concatenate(
        [h[b * rows_b + last * npatch: b * rows_b + t_in * npatch, :]
         for b in range(batch)], axis=0)          # (batch*npatch, D)
    rows_f = batch * npatch
    for f in range(pred_frames):
        fp = jnp.dot(state, dec_w, preferred_element_type=f32) + dec_b
        out_ref[f * rows_f:(f + 1) * rows_f, :] = fp    # aligned (8,128) stores
        if f + 1 < pred_frames:
            state = jnp.dot(fp, pe_w, preferred_element_type=f32) + pe_b


# ----------------------------- pallas_call wrapper ----------------------------
def fused_forward(xp_pad, slab):
    kern = functools.partial(
        _fused_forward_kernel, layout=_LAYOUT, n_layers=N_LAYERS,
        n_heads=N_HEADS, head_dim=HEAD_DIM, emb=EMB, t_in=T_IN, npatch=NPATCH,
        rows_b=ROWS_B, batch=BATCH, pred_frames=PRED_FRAMES,
        scale=float(HEAD_DIM) ** -0.5)
    # No grid: a single invocation, both operands whole-array resident in VMEM.
    return pl.pallas_call(
        kern,
        out_shape=jax.ShapeDtypeStruct((OUT_ROWS, LANE), jnp.float32),
    )(xp_pad, slab)


# ----------------------------- model (glue + kernel) --------------------------
def model_forward(slab, x):
    # x: (b, T_IN, c, H, W)
    b, t, c, H, W = x.shape
    hw = H // PATCH
    # einops 'b t c (h p1) (w p2) -> b t (h w) (p1 p2 c)'  (layout plumbing)
    xp = x.reshape(b, t, c, hw, PATCH, hw, PATCH)
    xp = xp.transpose(0, 1, 3, 5, 4, 6, 2)
    xp = xp.reshape(b * t * hw * hw, PATCH * PATCH * c)
    xp_pad = jnp.pad(xp, ((0, 0), (0, LANE - PATCH * PATCH * c)))  # lane-dense

    out_p = fused_forward(xp_pad, slab)          # (PRED*B*NPATCH, LANE)
    out_p = out_p[:, :PATCH * PATCH * c]

    # kernel row order is (frame, batch, patch); einops
    # 'b t (h w) (p1 p2 c) -> b t c (h p1) (w p2)'
    out = out_p.reshape(PRED_FRAMES, b, hw, hw, PATCH, PATCH, c)
    out = out.transpose(1, 0, 6, 2, 4, 3, 5)
    return out.reshape(b, PRED_FRAMES, c, hw * PATCH, hw * PATCH)


# ----------------------------- parameters -------------------------------------
def init_params(key):
    def w(k, shape):
        return jax.random.normal(k, shape, jnp.float32) * 0.02

    ks = jax.random.split(key, 4 + N_LAYERS)
    params = {
        "pe_w": w(ks[0], (PATCH_DIM, EMB)),
        "pe_b": jnp.zeros((EMB,), jnp.float32),
        "pos": w(ks[1], (1, T_IN, NPATCH, EMB)),
        "dec_w": w(ks[2], (EMB, PATCH_DIM)),
        "dec_b": jnp.zeros((PATCH_DIM,), jnp.float32),
    }
    layers = []
    for l in range(N_LAYERS):
        lk = jax.random.split(ks[4 + l], 4)
        layers.append(dict(
            ln1_g=jnp.ones((EMB,), jnp.float32), ln1_b=jnp.zeros((EMB,), jnp.float32),
            in_w=w(lk[0], (EMB, 3 * EMB)), in_b=jnp.zeros((3 * EMB,), jnp.float32),
            out_w=w(lk[1], (EMB, EMB)), out_b=jnp.zeros((EMB,), jnp.float32),
            ln2_g=jnp.ones((EMB,), jnp.float32), ln2_b=jnp.zeros((EMB,), jnp.float32),
            w1=w(lk[2], (EMB, 4 * EMB)), b1=jnp.zeros((4 * EMB,), jnp.float32),
            w2=w(lk[3], (4 * EMB, EMB)), b2=jnp.zeros((EMB,), jnp.float32),
        ))
    params["layers"] = layers
    return params


# ----------------------------- main --------------------------------------------
if __name__ == "__main__":
    key = jax.random.PRNGKey(0)
    pkey, xkey = jax.random.split(key)
    params = init_params(pkey)
    slab = pack_params(params)                 # packed once, outside jit
    x = jax.random.normal(xkey, (BATCH, T_IN, IN_CH, IMG, IMG), jnp.float32)

    fwd = jax.jit(model_forward)
    out = fwd(slab, x)
    jax.block_until_ready(out)
    assert out.shape == (BATCH, PRED_FRAMES, IN_CH, IMG, IMG), out.shape
    assert bool(jnp.all(jnp.isfinite(out)))
    print("KERNEL_OK")
</pallas_src>

<mosaic_0001>
module attributes {stable_mosaic.version = 11 : i64} {
  func.func @_fused_forward_kernel(%arg0: memref<32x128xf32, #tpu.memory_space<vmem>>, %arg1: memref<848x128xf32, #tpu.memory_space<vmem>>, %arg2: memref<16x128xf32, #tpu.memory_space<vmem>>) attributes {dimension_semantics = [], scalar_prefetch = 0 : i64, scratch_operands = 0 : i64, tpu.core_type = #tpu.core_type<tc>} {
    %c96 = arith.constant 96 : index
    %c0 = arith.constant 0 : index
    %0 = vector.load %arg1[%c96, %c0] : memref<848x128xf32, #tpu.memory_space<vmem>>, vector<128x32xf32>
    %c224 = arith.constant 224 : index
    %c0_0 = arith.constant 0 : index
    %1 = vector.load %arg1[%c224, %c0_0] : memref<848x128xf32, #tpu.memory_space<vmem>>, vector<1x32xf32>
    %c0_1 = arith.constant 0 : index
    %c0_2 = arith.constant 0 : index
    %2 = vector.load %arg0[%c0_1, %c0_2] : memref<32x128xf32, #tpu.memory_space<vmem>>, vector<32x128xf32>
    %cst = arith.constant dense<0.000000e+00> : vector<32x32xf32>
    %3 = tpu.matmul %2, %0, %cst {dimension_numbers = #tpu.dot_dimension_numbers<[1], [0], [0], [1], [0, 0, 1, 1], [], []>} : vector<32x128xf32>, vector<128x32xf32>, vector<32x32xf32> -> vector<32x32xf32>
    %4 = vector.broadcast %1 : vector<1x32xf32> to vector<32x32xf32>
    %5 = arith.addf %3, %4 : vector<32x32xf32>
    %c0_3 = arith.constant 0 : index
    %c0_4 = arith.constant 0 : index
    %6 = vector.load %arg1[%c0_3, %c0_4] : memref<848x128xf32, #tpu.memory_space<vmem>>, vector<32x32xf32>
    %7 = arith.addf %5, %6 : vector<32x32xf32>
    %c32 = arith.constant 32 : index
    %c0_5 = arith.constant 0 : index
    %8 = vector.load %arg1[%c32, %c0_5] : memref<848x128xf32, #tpu.memory_space<vmem>>, vector<32x32xf32>
    %c64 = arith.constant 64 : index
    %c0_6 = arith.constant 0 : index
    %9 = vector.load %arg1[%c64, %c0_6] : memref<848x128xf32, #tpu.memory_space<vmem>>, vector<32x32xf32>
    %c272 = arith.constant 272 : index
    %c0_7 = arith.constant 0 : index
    %10 = vector.load %arg1[%c272, %c0_7] : memref<848x128xf32, #tpu.memory_space<vmem>>, vector<1x32xf32>
    %c280 = arith.constant 280 : index
    %c0_8 = arith.constant 0 : index
    %11 = vector.load %arg1[%c280, %c0_8] : memref<848x128xf32, #tpu.memory_space<vmem>>, vector<1x32xf32>
    %cst_9 = arith.constant dense<0.000000e+00> : vector<32xf32>
    %12 = vector.multi_reduction <add>, %7, %cst_9 [1] : vector<32x32xf32> to vector<32xf32>
    %13 = vector.shape_cast %12 : vector<32xf32> to vector<32x1xf32>
    %cst_10 = arith.constant 3.200000e+01 : f32
    %14 = vector.broadcast %cst_10 : f32 to vector<32x1xf32>
    %15 = arith.divf %13, %14 : vector<32x1xf32>
    %16 = vector.broadcast %15 : vector<32x1xf32> to vector<32x32xf32>
    %17 = arith.subf %7, %16 : vector<32x32xf32>
    %18 = arith.mulf %17, %17 : vector<32x32xf32>
    %cst_11 = arith.constant dense<0.000000e+00> : vector<32xf32>
    %19 = vector.multi_reduction <add>, %18, %cst_11 [1] : vector<32x32xf32> to vector<32xf32>
    %20 = vector.shape_cast %19 : vector<32xf32> to vector<32x1xf32>
    %cst_12 = arith.constant 3.200000e+01 : f32
    %21 = vector.broadcast %cst_12 : f32 to vector<32x1xf32>
    %22 = arith.divf %20, %21 : vector<32x1xf32>
    %23 = vector.broadcast %15 : vector<32x1xf32> to vector<32x32xf32>
    %24 = arith.subf %7, %23 : vector<32x32xf32>
    %cst_13 = arith.constant 9.99999974E-6 : f32
    %25 = vector.broadcast %cst_13 : f32 to vector<32x1xf32>
    %26 = arith.addf %22, %25 : vector<32x1xf32>
    %27 = math.rsqrt %26 : vector<32x1xf32>
    %28 = vector.broadcast %27 : vector<32x1xf32> to vector<32x32xf32>
    %29 = arith.mulf %24, %28 : vector<32x32xf32>
    %30 = vector.broadcast %10 : vector<1x32xf32> to vector<32x32xf32>
    %31 = arith.mulf %29, %30 : vector<32x32xf32>
    %32 = vector.broadcast %11 : vector<1x32xf32> to vector<32x32xf32>
    %33 = arith.addf %31, %32 : vector<32x32xf32>
    %c288 = arith.constant 288 : index
    %c0_14 = arith.constant 0 : index
    %34 = vector.load %arg1[%c288, %c0_14] : memref<848x128xf32, #tpu.memory_space<vmem>>, vector<32x96xf32>
    %cst_15 = arith.constant dense<0.000000e+00> : vector<32x96xf32>
    %35 = tpu.matmul %33, %34, %cst_15 {dimension_numbers = #tpu.dot_dimension_numbers<[1], [0], [0], [1], [0, 0, 1, 1], [], []>} : vector<32x32xf32>, vector<32x96xf32>, vector<32x96xf32> -> vector<32x96xf32>
    %c320 = arith.constant 320 : index
    %c0_16 = arith.constant 0 : index
    %36 = vector.load %arg1[%c320, %c0_16] : memref<848x128xf32, #tpu.memory_space<vmem>>, vector<1x96xf32>
    %37 = vector.broadcast %36 : vector<1x96xf32> to vector<32x96xf32>
    %38 = arith.addf %35, %37 : vector<32x96xf32>
    %39 = vector.extract_strided_slice %38 {offsets = [0, 0], sizes = [32, 8], strides = [1, 1]} : vector<32x96xf32> to vector<32x8xf32>
    %40 = vector.extract_strided_slice %38 {offsets = [0, 32], sizes = [32, 8], strides = [1, 1]} : vector<32x96xf32> to vector<32x8xf32>
    %41 = vector.extract_strided_slice %38 {offsets = [0, 64], sizes = [32, 8], strides = [1, 1]} : vector<32x96xf32> to vector<32x8xf32>
    %cst_17 = arith.constant dense<0.000000e+00> : vector<32x32xf32>
    %42 = tpu.matmul %39, %40, %cst_17 {dimension_numbers = #tpu.dot_dimension_numbers<[1], [1], [0], [0], [0, 0, 1, 0], [], []>} : vector<32x8xf32>, vector<32x8xf32>, vector<32x32xf32> -> vector<32x32xf32>
    %cst_18 = arith.constant 0.353553385 : f32
    %43 = vector.broadcast %cst_18 : f32 to vector<32x32xf32>
    %44 = arith.mulf %42, %43 : vector<32x32xf32>
    %45 = arith.addf %44, %8 : vector<32x32xf32>
    %cst_19 = arith.constant dense<0xFF800000> : vector<32xf32>
    %46 = vector.multi_reduction <maximumf>, %45, %cst_19 [1] : vector<32x32xf32> to vector<32xf32>
    %47 = vector.shape_cast %46 : vector<32xf32> to vector<32x1xf32>
    %48 = vector.broadcast %47 : vector<32x1xf32> to vector<32x32xf32>
    %49 = arith.subf %45, %48 : vector<32x32xf32>
    %50 = math.exp %49 : vector<32x32xf32>
    %cst_20 = arith.constant dense<0.000000e+00> : vector<32xf32>
    %51 = vector.multi_reduction <add>, %50, %cst_20 [1] : vector<32x32xf32> to vector<32xf32>
    %52 = vector.shape_cast %51 : vector<32xf32> to vector<32x1xf32>
    %53 = vector.broadcast %52 : vector<32x1xf32> to vector<32x32xf32>
    %54 = arith.divf %50, %53 : vector<32x32xf32>
    %cst_21 = arith.constant dense<0.000000e+00> : vector<32x8xf32>
    %55 = tpu.matmul %54, %41, %cst_21 {dimension_numbers = #tpu.dot_dimension_numbers<[1], [0], [0], [1], [0, 0, 1, 1], [], []>} : vector<32x32xf32>, vector<32x8xf32>, vector<32x8xf32> -> vector<32x8xf32>
    %56 = vector.extract_strided_slice %38 {offsets = [0, 8], sizes = [32, 8], strides = [1, 1]} : vector<32x96xf32> to vector<32x8xf32>
    %57 = vector.extract_strided_slice %38 {offsets = [0, 40], sizes = [32, 8], strides = [1, 1]} : vector<32x96xf32> to vector<32x8xf32>
    %58 = vector.extract_strided_slice %38 {offsets = [0, 72], sizes = [32, 8], strides = [1, 1]} : vector<32x96xf32> to vector<32x8xf32>
    %cst_22 = arith.constant dense<0.000000e+00> : vector<32x32xf32>
    %59 = tpu.matmul %56, %57, %cst_22 {dimension_numbers = #tpu.dot_dimension_numbers<[1], [1], [0], [0], [0, 0, 1, 0], [], []>} : vector<32x8xf32>, vector<32x8xf32>, vector<32x32xf32> -> vector<32x32xf32>
    %cst_23 = arith.constant 0.353553385 : f32
    %60 = vector.broadcast %cst_23 : f32 to vector<32x32xf32>
    %61 = arith.mulf %59, %60 : vector<32x32xf32>
    %62 = arith.addf %61, %8 : vector<32x32xf32>
    %cst_24 = arith.constant dense<0xFF800000> : vector<32xf32>
    %63 = vector.multi_reduction <maximumf>, %62, %cst_24 [1] : vector<32x32xf32> to vector<32xf32>
    %64 = vector.shape_cast %63 : vector<32xf32> to vector<32x1xf32>
    %65 = vector.broadcast %64 : vector<32x1xf32> to vector<32x32xf32>
    %66 = arith.subf %62, %65 : vector<32x32xf32>
    %67 = math.exp %66 : vector<32x32xf32>
    %cst_25 = arith.constant dense<0.000000e+00> : vector<32xf32>
    %68 = vector.multi_reduction <add>, %67, %cst_25 [1] : vector<32x32xf32> to vector<32xf32>
    %69 = vector.shape_cast %68 : vector<32xf32> to vector<32x1xf32>
    %70 = vector.broadcast %69 : vector<32x1xf32> to vector<32x32xf32>
    %71 = arith.divf %67, %70 : vector<32x32xf32>
    %cst_26 = arith.constant dense<0.000000e+00> : vector<32x8xf32>
    %72 = tpu.matmul %71, %58, %cst_26 {dimension_numbers = #tpu.dot_dimension_numbers<[1], [0], [0], [1], [0, 0, 1, 1], [], []>} : vector<32x32xf32>, vector<32x8xf32>, vector<32x8xf32> -> vector<32x8xf32>
    %73 = vector.extract_strided_slice %38 {offsets = [0, 16], sizes = [32, 8], strides = [1, 1]} : vector<32x96xf32> to vector<32x8xf32>
    %74 = vector.extract_strided_slice %38 {offsets = [0, 48], sizes = [32, 8], strides = [1, 1]} : vector<32x96xf32> to vector<32x8xf32>
    %75 = vector.extract_strided_slice %38 {offsets = [0, 80], sizes = [32, 8], strides = [1, 1]} : vector<32x96xf32> to vector<32x8xf32>
    %cst_27 = arith.constant dense<0.000000e+00> : vector<32x32xf32>
    %76 = tpu.matmul %73, %74, %cst_27 {dimension_numbers = #tpu.dot_dimension_numbers<[1], [1], [0], [0], [0, 0, 1, 0], [], []>} : vector<32x8xf32>, vector<32x8xf32>, vector<32x32xf32> -> vector<32x32xf32>
    %cst_28 = arith.constant 0.353553385 : f32
    %77 = vector.broadcast %cst_28 : f32 to vector<32x32xf32>
    %78 = arith.mulf %76, %77 : vector<32x32xf32>
    %79 = arith.addf %78, %8 : vector<32x32xf32>
    %cst_29 = arith.constant dense<0xFF800000> : vector<32xf32>
    %80 = vector.multi_reduction <maximumf>, %79, %cst_29 [1] : vector<32x32xf32> to vector<32xf32>
    %81 = vector.shape_cast %80 : vector<32xf32> to vector<32x1xf32>
    %82 = vector.broadcast %81 : vector<32x1xf32> to vector<32x32xf32>
    %83 = arith.subf %79, %82 : vector<32x32xf32>
    %84 = math.exp %83 : vector<32x32xf32>
    %cst_30 = arith.constant dense<0.000000e+00> : vector<32xf32>
    %85 = vector.multi_reduction <add>, %84, %cst_30 [1] : vector<32x32xf32> to vector<32xf32>
    %86 = vector.shape_cast %85 : vector<32xf32> to vector<32x1xf32>
    %87 = vector.broadcast %86 : vector<32x1xf32> to vector<32x32xf32>
    %88 = arith.divf %84, %87 : vector<32x32xf32>
    %cst_31 = arith.constant dense<0.000000e+00> : vector<32x8xf32>
    %89 = tpu.matmul %88, %75, %cst_31 {dimension_numbers = #tpu.dot_dimension_numbers<[1], [0], [0], [1], [0, 0, 1, 1], [], []>} : vector<32x32xf32>, vector<32x8xf32>, vector<32x8xf32> -> vector<32x8xf32>
    %90 = vector.extract_strided_slice %38 {offsets = [0, 24], sizes = [32, 8], strides = [1, 1]} : vector<32x96xf32> to vector<32x8xf32>
    %91 = vector.extract_strided_slice %38 {offsets = [0, 56], sizes = [32, 8], strides = [1, 1]} : vector<32x96xf32> to vector<32x8xf32>
    %92 = vector.extract_strided_slice %38 {offsets = [0, 88], sizes = [32, 8], strides = [1, 1]} : vector<32x96xf32> to vector<32x8xf32>
    %cst_32 = arith.constant dense<0.000000e+00> : vector<32x32xf32>
    %93 = tpu.matmul %90, %91, %cst_32 {dimension_numbers = #tpu.dot_dimension_numbers<[1], [1], [0], [0], [0, 0, 1, 0], [], []>} : vector<32x8xf32>, vector<32x8xf32>, vector<32x32xf32> -> vector<32x32xf32>
    %cst_33 = arith.constant 0.353553385 : f32
    %94 = vector.broadcast %cst_33 : f32 to vector<32x32xf32>
    %95 = arith.mulf %93, %94 : vector<32x32xf32>
    %96 = arith.addf %95, %8 : vector<32x32xf32>
    %cst_34 = arith.constant dense<0xFF800000> : vector<32xf32>
    %97 = vector.multi_reduction <maximumf>, %96, %cst_34 [1] : vector<32x32xf32> to vector<32xf32>
    %98 = vector.shape_cast %97 : vector<32xf32> to vector<32x1xf32>
    %99 = vector.broadcast %98 : vector<32x1xf32> to vector<32x32xf32>
    %100 = arith.subf %96, %99 : vector<32x32xf32>
    %101 = math.exp %100 : vector<32x32xf32>
    %cst_35 = arith.constant dense<0.000000e+00> : vector<32xf32>
    %102 = vector.multi_reduction <add>, %101, %cst_35 [1] : vector<32x32xf32> to vector<32xf32>
    %103 = vector.shape_cast %102 : vector<32xf32> to vector<32x1xf32>
    %104 = vector.broadcast %103 : vector<32x1xf32> to vector<32x32xf32>
    %105 = arith.divf %101, %104 : vector<32x32xf32>
    %cst_36 = arith.constant dense<0.000000e+00> : vector<32x8xf32>
    %106 = tpu.matmul %105, %92, %cst_36 {dimension_numbers = #tpu.dot_dimension_numbers<[1], [0], [0], [1], [0, 0, 1, 1], [], []>} : vector<32x32xf32>, vector<32x8xf32>, vector<32x8xf32> -> vector<32x8xf32>
    %107 = tpu.concatenate %55, %72, %89, %106 in 1 : vector<32x8xf32>, vector<32x8xf32>, vector<32x8xf32>, vector<32x8xf32> -> vector<32x32xf32>
    %c328 = arith.constant 328 : index
    %c0_37 = arith.constant 0 : index
    %108 = vector.load %arg1[%c328, %c0_37] : memref<848x128xf32, #tpu.memory_space<vmem>>, vector<32x32xf32>
    %cst_38 = arith.constant dense<0.000000e+00> : vector<32x32xf32>
    %109 = tpu.matmul %107, %108, %cst_38 {dimension_numbers = #tpu.dot_dimension_numbers<[1], [0], [0], [1], [0, 0, 1, 1], [], []>} : vector<32x32xf32>, vector<32x32xf32>, vector<32x32xf32> -> vector<32x32xf32>
    %c360 = arith.constant 360 : index
    %c0_39 = arith.constant 0 : index
    %110 = vector.load %arg1[%c360, %c0_39] : memref<848x128xf32, #tpu.memory_space<vmem>>, vector<1x32xf32>
    %111 = vector.broadcast %110 : vector<1x32xf32> to vector<32x32xf32>
    %112 = arith.addf %109, %111 : vector<32x32xf32>
    %cst_40 = arith.constant dense<0.000000e+00> : vector<32x32xf32>
    %113 = tpu.matmul %9, %112, %cst_40 {dimension_numbers = #tpu.dot_dimension_numbers<[1], [0], [0], [1], [0, 0, 1, 1], [], []>} : vector<32x32xf32>, vector<32x32xf32>, vector<32x32xf32> -> vector<32x32xf32>
    %114 = arith.addf %7, %113 : vector<32x32xf32>
    %c368 = arith.constant 368 : index
    %c0_41 = arith.constant 0 : index
    %115 = vector.load %arg1[%c368, %c0_41] : memref<848x128xf32, #tpu.memory_space<vmem>>, vector<1x32xf32>
    %c376 = arith.constant 376 : index
    %c0_42 = arith.constant 0 : index
    %116 = vector.load %arg1[%c376, %c0_42] : memref<848x128xf32, #tpu.memory_space<vmem>>, vector<1x32xf32>
    %cst_43 = arith.constant dense<0.000000e+00> : vector<32xf32>
    %117 = vector.multi_reduction <add>, %114, %cst_43 [1] : vector<32x32xf32> to vector<32xf32>
    %118 = vector.shape_cast %117 : vector<32xf32> to vector<32x1xf32>
    %cst_44 = arith.constant 3.200000e+01 : f32
    %119 = vector.broadcast %cst_44 : f32 to vector<32x1xf32>
    %120 = arith.divf %118, %119 : vector<32x1xf32>
    %121 = vector.broadcast %120 : vector<32x1xf32> to vector<32x32xf32>
    %122 = arith.subf %114, %121 : vector<32x32xf32>
    %123 = arith.mulf %122, %122 : vector<32x32xf32>
    %cst_45 = arith.constant dense<0.000000e+00> : vector<32xf32>
    %124 = vector.multi_reduction <add>, %123, %cst_45 [1] : vector<32x32xf32> to vector<32xf32>
    %125 = vector.shape_cast %124 : vector<32xf32> to vector<32x1xf32>
    %cst_46 = arith.constant 3.200000e+01 : f32
    %126 = vector.broadcast %cst_46 : f32 to vector<32x1xf32>
    %127 = arith.divf %125, %126 : vector<32x1xf32>
    %128 = vector.broadcast %120 : vector<32x1xf32> to vector<32x32xf32>
    %129 = arith.subf %114, %128 : vector<32x32xf32>
    %cst_47 = arith.constant 9.99999974E-6 : f32
    %130 = vector.broadcast %cst_47 : f32 to vector<32x1xf32>
    %131 = arith.addf %127, %130 : vector<32x1xf32>
    %132 = math.rsqrt %131 : vector<32x1xf32>
    %133 = vector.broadcast %132 : vector<32x1xf32> to vector<32x32xf32>
    %134 = arith.mulf %129, %133 : vector<32x32xf32>
    %135 = vector.broadcast %115 : vector<1x32xf32> to vector<32x32xf32>
    %136 = arith.mulf %134, %135 : vector<32x32xf32>
    %137 = vector.broadcast %116 : vector<1x32xf32> to vector<32x32xf32>
    %138 = arith.addf %136, %137 : vector<32x32xf32>
    %c384 = arith.constant 384 : index
    %c0_48 = arith.constant 0 : index
    %139 = vector.load %arg1[%c384, %c0_48] : memref<848x128xf32, #tpu.memory_space<vmem>>, vector<32x128xf32>
    %cst_49 = arith.constant dense<0.000000e+00> : vector<32x128xf32>
    %140 = tpu.matmul %138, %139, %cst_49 {dimension_numbers = #tpu.dot_dimension_numbers<[1], [0], [0], [1], [0, 0, 1, 1], [], []>} : vector<32x32xf32>, vector<32x128xf32>, vector<32x128xf32> -> vector<32x128xf32>
    %c416 = arith.constant 416 : index
    %c0_50 = arith.constant 0 : index
    %141 = vector.load %arg1[%c416, %c0_50] : memref<848x128xf32, #tpu.memory_space<vmem>>, vector<1x128xf32>
    %142 = vector.broadcast %141 : vector<1x128xf32> to vector<32x128xf32>
    %143 = arith.addf %140, %142 : vector<32x128xf32>
    %cst_51 = arith.constant 5.000000e-01 : f32
    %144 = vector.broadcast %cst_51 : f32 to vector<32x128xf32>
    %145 = arith.mulf %144, %143 : vector<32x128xf32>
    %cst_52 = arith.constant 0.707106769 : f32
    %146 = vector.broadcast %cst_52 : f32 to vector<32x128xf32>
    %147 = arith.mulf %143, %146 : vector<32x128xf32>
    %148 = math.erf %147 : vector<32x128xf32>
    %cst_53 = arith.constant 1.000000e+00 : f32
    %149 = vector.broadcast %cst_53 : f32 to vector<32x128xf32>
    %150 = arith.addf %149, %148 : vector<32x128xf32>
    %151 = arith.mulf %145, %150 : vector<32x128xf32>
    %c424 = arith.constant 424 : index
    %c0_54 = arith.constant 0 : index
    %152 = vector.load %arg1[%c424, %c0_54] : memref<848x128xf32, #tpu.memory_space<vmem>>, vector<128x32xf32>
    %cst_55 = arith.constant dense<0.000000e+00> : vector<32x32xf32>
    %153 = tpu.matmul %151, %152, %cst_55 {dimension_numbers = #tpu.dot_dimension_numbers<[1], [0], [0], [1], [0, 0, 1, 1], [], []>} : vector<32x128xf32>, vector<128x32xf32>, vector<32x32xf32> -> vector<32x32xf32>
    %c552 = arith.constant 552 : index
    %c0_56 = arith.constant 0 : index
    %154 = vector.load %arg1[%c552, %c0_56] : memref<848x128xf32, #tpu.memory_space<vmem>>, vector<1x32xf32>
    %155 = vector.broadcast %154 : vector<1x32xf32> to vector<32x32xf32>
    %156 = arith.addf %153, %155 : vector<32x32xf32>
    %157 = arith.addf %114, %156 : vector<32x32xf32>
    %c560 = arith.constant 560 : index
    %c0_57 = arith.constant 0 : index
    %158 = vector.load %arg1[%c560, %c0_57] : memref<848x128xf32, #tpu.memory_space<vmem>>, vector<1x32xf32>
    %c568 = arith.constant 568 : index
    %c0_58 = arith.constant 0 : index
    %159 = vector.load %arg1[%c568, %c0_58] : memref<848x128xf32, #tpu.memory_space<vmem>>, vector<1x32xf32>
    %cst_59 = arith.constant dense<0.000000e+00> : vector<32xf32>
    %160 = vector.multi_reduction <add>, %157, %cst_59 [1] : vector<32x32xf32> to vector<32xf32>
    %161 = vector.shape_cast %160 : vector<32xf32> to vector<32x1xf32>
    %cst_60 = arith.constant 3.200000e+01 : f32
    %162 = vector.broadcast %cst_60 : f32 to vector<32x1xf32>
    %163 = arith.divf %161, %162 : vector<32x1xf32>
    %164 = vector.broadcast %163 : vector<32x1xf32> to vector<32x32xf32>
    %165 = arith.subf %157, %164 : vector<32x32xf32>
    %166 = arith.mulf %165, %165 : vector<32x32xf32>
    %cst_61 = arith.constant dense<0.000000e+00> : vector<32xf32>
    %167 = vector.multi_reduction <add>, %166, %cst_61 [1] : vector<32x32xf32> to vector<32xf32>
    %168 = vector.shape_cast %167 : vector<32xf32> to vector<32x1xf32>
    %cst_62 = arith.constant 3.200000e+01 : f32
    %169 = vector.broadcast %cst_62 : f32 to vector<32x1xf32>
    %170 = arith.divf %168, %169 : vector<32x1xf32>
    %171 = vector.broadcast %163 : vector<32x1xf32> to vector<32x32xf32>
    %172 = arith.subf %157, %171 : vector<32x32xf32>
    %cst_63 = arith.constant 9.99999974E-6 : f32
    %173 = vector.broadcast %cst_63 : f32 to vector<32x1xf32>
    %174 = arith.addf %170, %173 : vector<32x1xf32>
    %175 = math.rsqrt %174 : vector<32x1xf32>
    %176 = vector.broadcast %175 : vector<32x1xf32> to vector<32x32xf32>
    %177 = arith.mulf %172, %176 : vector<32x32xf32>
    %178 = vector.broadcast %158 : vector<1x32xf32> to vector<32x32xf32>
    %179 = arith.mulf %177, %178 : vector<32x32xf32>
    %180 = vector.broadcast %159 : vector<1x32xf32> to vector<32x32xf32>
    %181 = arith.addf %179, %180 : vector<32x32xf32>
    %c576 = arith.constant 576 : index
    %c0_64 = arith.constant 0 : index
    %182 = vector.load %arg1[%c576, %c0_64] : memref<848x128xf32, #tpu.memory_space<vmem>>, vector<32x96xf32>
    %cst_65 = arith.constant dense<0.000000e+00> : vector<32x96xf32>
    %183 = tpu.matmul %181, %182, %cst_65 {dimension_numbers = #tpu.dot_dimension_numbers<[1], [0], [0], [1], [0, 0, 1, 1], [], []>} : vector<32x32xf32>, vector<32x96xf32>, vector<32x96xf32> -> vector<32x96xf32>
    %c608 = arith.constant 608 : index
    %c0_66 = arith.constant 0 : index
    %184 = vector.load %arg1[%c608, %c0_66] : memref<848x128xf32, #tpu.memory_space<vmem>>, vector<1x96xf32>
    %185 = vector.broadcast %184 : vector<1x96xf32> to vector<32x96xf32>
    %186 = arith.addf %183, %185 : vector<32x96xf32>
    %187 = vector.extract_strided_slice %186 {offsets = [0, 0], sizes = [32, 8], strides = [1, 1]} : vector<32x96xf32> to vector<32x8xf32>
    %188 = vector.extract_strided_slice %186 {offsets = [0, 32], sizes = [32, 8], strides = [1, 1]} : vector<32x96xf32> to vector<32x8xf32>
    %189 = vector.extract_strided_slice %186 {offsets = [0, 64], sizes = [32, 8], strides = [1, 1]} : vector<32x96xf32> to vector<32x8xf32>
    %cst_67 = arith.constant dense<0.000000e+00> : vector<32x32xf32>
    %190 = tpu.matmul %187, %188, %cst_67 {dimension_numbers = #tpu.dot_dimension_numbers<[1], [1], [0], [0], [0, 0, 1, 0], [], []>} : vector<32x8xf32>, vector<32x8xf32>, vector<32x32xf32> -> vector<32x32xf32>
    %cst_68 = arith.constant 0.353553385 : f32
    %191 = vector.broadcast %cst_68 : f32 to vector<32x32xf32>
    %192 = arith.mulf %190, %191 : vector<32x32xf32>
    %193 = arith.addf %192, %8 : vector<32x32xf32>
    %cst_69 = arith.constant dense<0xFF800000> : vector<32xf32>
    %194 = vector.multi_reduction <maximumf>, %193, %cst_69 [1] : vector<32x32xf32> to vector<32xf32>
    %195 = vector.shape_cast %194 : vector<32xf32> to vector<32x1xf32>
    %196 = vector.broadcast %195 : vector<32x1xf32> to vector<32x32xf32>
    %197 = arith.subf %193, %196 : vector<32x32xf32>
    %198 = math.exp %197 : vector<32x32xf32>
    %cst_70 = arith.constant dense<0.000000e+00> : vector<32xf32>
    %199 = vector.multi_reduction <add>, %198, %cst_70 [1] : vector<32x32xf32> to vector<32xf32>
    %200 = vector.shape_cast %199 : vector<32xf32> to vector<32x1xf32>
    %201 = vector.broadcast %200 : vector<32x1xf32> to vector<32x32xf32>
    %202 = arith.divf %198, %201 : vector<32x32xf32>
    %cst_71 = arith.constant dense<0.000000e+00> : vector<32x8xf32>
    %203 = tpu.matmul %202, %189, %cst_71 {dimension_numbers = #tpu.dot_dimension_numbers<[1], [0], [0], [1], [0, 0, 1, 1], [], []>} : vector<32x32xf32>, vector<32x8xf32>, vector<32x8xf32> -> vector<32x8xf32>
    %204 = vector.extract_strided_slice %186 {offsets = [0, 8], sizes = [32, 8], strides = [1, 1]} : vector<32x96xf32> to vector<32x8xf32>
    %205 = vector.extract_strided_slice %186 {offsets = [0, 40], sizes = [32, 8], strides = [1, 1]} : vector<32x96xf32> to vector<32x8xf32>
    %206 = vector.extract_strided_slice %186 {offsets = [0, 72], sizes = [32, 8], strides = [1, 1]} : vector<32x96xf32> to vector<32x8xf32>
    %cst_72 = arith.constant dense<0.000000e+00> : vector<32x32xf32>
    %207 = tpu.matmul %204, %205, %cst_72 {dimension_numbers = #tpu.dot_dimension_numbers<[1], [1], [0], [0], [0, 0, 1, 0], [], []>} : vector<32x8xf32>, vector<32x8xf32>, vector<32x32xf32> -> vector<32x32xf32>
    %cst_73 = arith.constant 0.353553385 : f32
    %208 = vector.broadcast %cst_73 : f32 to vector<32x32xf32>
    %209 = arith.mulf %207, %208 : vector<32x32xf32>
    %210 = arith.addf %209, %8 : vector<32x32xf32>
    %cst_74 = arith.constant dense<0xFF800000> : vector<32xf32>
    %211 = vector.multi_reduction <maximumf>, %210, %cst_74 [1] : vector<32x32xf32> to vector<32xf32>
    %212 = vector.shape_cast %211 : vector<32xf32> to vector<32x1xf32>
    %213 = vector.broadcast %212 : vector<32x1xf32> to vector<32x32xf32>
    %214 = arith.subf %210, %213 : vector<32x32xf32>
    %215 = math.exp %214 : vector<32x32xf32>
    %cst_75 = arith.constant dense<0.000000e+00> : vector<32xf32>
    %216 = vector.multi_reduction <add>, %215, %cst_75 [1] : vector<32x32xf32> to vector<32xf32>
    %217 = vector.shape_cast %216 : vector<32xf32> to vector<32x1xf32>
    %218 = vector.broadcast %217 : vector<32x1xf32> to vector<32x32xf32>
    %219 = arith.divf %215, %218 : vector<32x32xf32>
    %cst_76 = arith.constant dense<0.000000e+00> : vector<32x8xf32>
    %220 = tpu.matmul %219, %206, %cst_76 {dimension_numbers = #tpu.dot_dimension_numbers<[1], [0], [0], [1], [0, 0, 1, 1], [], []>} : vector<32x32xf32>, vector<32x8xf32>, vector<32x8xf32> -> vector<32x8xf32>
    %221 = vector.extract_strided_slice %186 {offsets = [0, 16], sizes = [32, 8], strides = [1, 1]} : vector<32x96xf32> to vector<32x8xf32>
    %222 = vector.extract_strided_slice %186 {offsets = [0, 48], sizes = [32, 8], strides = [1, 1]} : vector<32x96xf32> to vector<32x8xf32>
    %223 = vector.extract_strided_slice %186 {offsets = [0, 80], sizes = [32, 8], strides = [1, 1]} : vector<32x96xf32> to vector<32x8xf32>
    %cst_77 = arith.constant dense<0.000000e+00> : vector<32x32xf32>
    %224 = tpu.matmul %221, %222, %cst_77 {dimension_numbers = #tpu.dot_dimension_numbers<[1], [1], [0], [0], [0, 0, 1, 0], [], []>} : vector<32x8xf32>, vector<32x8xf32>, vector<32x32xf32> -> vector<32x32xf32>
    %cst_78 = arith.constant 0.353553385 : f32
    %225 = vector.broadcast %cst_78 : f32 to vector<32x32xf32>
    %226 = arith.mulf %224, %225 : vector<32x32xf32>
    %227 = arith.addf %226, %8 : vector<32x32xf32>
    %cst_79 = arith.constant dense<0xFF800000> : vector<32xf32>
    %228 = vector.multi_reduction <maximumf>, %227, %cst_79 [1] : vector<32x32xf32> to vector<32xf32>
    %229 = vector.shape_cast %228 : vector<32xf32> to vector<32x1xf32>
    %230 = vector.broadcast %229 : vector<32x1xf32> to vector<32x32xf32>
    %231 = arith.subf %227, %230 : vector<32x32xf32>
    %232 = math.exp %231 : vector<32x32xf32>
    %cst_80 = arith.constant dense<0.000000e+00> : vector<32xf32>
    %233 = vector.multi_reduction <add>, %232, %cst_80 [1] : vector<32x32xf32> to vector<32xf32>
    %234 = vector.shape_cast %233 : vector<32xf32> to vector<32x1xf32>
    %235 = vector.broadcast %234 : vector<32x1xf32> to vector<32x32xf32>
    %236 = arith.divf %232, %235 : vector<32x32xf32>
    %cst_81 = arith.constant dense<0.000000e+00> : vector<32x8xf32>
    %237 = tpu.matmul %236, %223, %cst_81 {dimension_numbers = #tpu.dot_dimension_numbers<[1], [0], [0], [1], [0, 0, 1, 1], [], []>} : vector<32x32xf32>, vector<32x8xf32>, vector<32x8xf32> -> vector<32x8xf32>
    %238 = vector.extract_strided_slice %186 {offsets = [0, 24], sizes = [32, 8], strides = [1, 1]} : vector<32x96xf32> to vector<32x8xf32>
    %239 = vector.extract_strided_slice %186 {offsets = [0, 56], sizes = [32, 8], strides = [1, 1]} : vector<32x96xf32> to vector<32x8xf32>
    %240 = vector.extract_strided_slice %186 {offsets = [0, 88], sizes = [32, 8], strides = [1, 1]} : vector<32x96xf32> to vector<32x8xf32>
    %cst_82 = arith.constant dense<0.000000e+00> : vector<32x32xf32>
    %241 = tpu.matmul %238, %239, %cst_82 {dimension_numbers = #tpu.dot_dimension_numbers<[1], [1], [0], [0], [0, 0, 1, 0], [], []>} : vector<32x8xf32>, vector<32x8xf32>, vector<32x32xf32> -> vector<32x32xf32>
    %cst_83 = arith.constant 0.353553385 : f32
    %242 = vector.broadcast %cst_83 : f32 to vector<32x32xf32>
    %243 = arith.mulf %241, %242 : vector<32x32xf32>
    %244 = arith.addf %243, %8 : vector<32x32xf32>
    %cst_84 = arith.constant dense<0xFF800000> : vector<32xf32>
    %245 = vector.multi_reduction <maximumf>, %244, %cst_84 [1] : vector<32x32xf32> to vector<32xf32>
    %246 = vector.shape_cast %245 : vector<32xf32> to vector<32x1xf32>
    %247 = vector.broadcast %246 : vector<32x1xf32> to vector<32x32xf32>
    %248 = arith.subf %244, %247 : vector<32x32xf32>
    %249 = math.exp %248 : vector<32x32xf32>
    %cst_85 = arith.constant dense<0.000000e+00> : vector<32xf32>
    %250 = vector.multi_reduction <add>, %249, %cst_85 [1] : vector<32x32xf32> to vector<32xf32>
    %251 = vector.shape_cast %250 : vector<32xf32> to vector<32x1xf32>
    %252 = vector.broadcast %251 : vector<32x1xf32> to vector<32x32xf32>
    %253 = arith.divf %249, %252 : vector<32x32xf32>
    %cst_86 = arith.constant dense<0.000000e+00> : vector<32x8xf32>
    %254 = tpu.matmul %253, %240, %cst_86 {dimension_numbers = #tpu.dot_dimension_numbers<[1], [0], [0], [1], [0, 0, 1, 1], [], []>} : vector<32x32xf32>, vector<32x8xf32>, vector<32x8xf32> -> vector<32x8xf32>
    %255 = tpu.concatenate %203, %220, %237, %254 in 1 : vector<32x8xf32>, vector<32x8xf32>, vector<32x8xf32>, vector<32x8xf32> -> vector<32x32xf32>
    %c616 = arith.constant 616 : index
    %c0_87 = arith.constant 0 : index
    %256 = vector.load %arg1[%c616, %c0_87] : memref<848x128xf32, #tpu.memory_space<vmem>>, vector<32x32xf32>
    %cst_88 = arith.constant dense<0.000000e+00> : vector<32x32xf32>
    %257 = tpu.matmul %255, %256, %cst_88 {dimension_numbers = #tpu.dot_dimension_numbers<[1], [0], [0], [1], [0, 0, 1, 1], [], []>} : vector<32x32xf32>, vector<32x32xf32>, vector<32x32xf32> -> vector<32x32xf32>
    %c648 = arith.constant 648 : index
    %c0_89 = arith.constant 0 : index
    %258 = vector.load %arg1[%c648, %c0_89] : memref<848x128xf32, #tpu.memory_space<vmem>>, vector<1x32xf32>
    %259 = vector.broadcast %258 : vector<1x32xf32> to vector<32x32xf32>
    %260 = arith.addf %257, %259 : vector<32x32xf32>
    %cst_90 = arith.constant dense<0.000000e+00> : vector<32x32xf32>
    %261 = tpu.matmul %9, %260, %cst_90 {dimension_numbers = #tpu.dot_dimension_numbers<[1], [0], [0], [1], [0, 0, 1, 1], [], []>} : vector<32x32xf32>, vector<32x32xf32>, vector<32x32xf32> -> vector<32x32xf32>
    %262 = arith.addf %157, %261 : vector<32x32xf32>
    %c656 = arith.constant 656 : index
    %c0_91 = arith.constant 0 : index
    %263 = vector.load %arg1[%c656, %c0_91] : memref<848x128xf32, #tpu.memory_space<vmem>>, vector<1x32xf32>
    %c664 = arith.constant 664 : index
    %c0_92 = arith.constant 0 : index
    %264 = vector.load %arg1[%c664, %c0_92] : memref<848x128xf32, #tpu.memory_space<vmem>>, vector<1x32xf32>
    %cst_93 = arith.constant dense<0.000000e+00> : vector<32xf32>
    %265 = vector.multi_reduction <add>, %262, %cst_93 [1] : vector<32x32xf32> to vector<32xf32>
    %266 = vector.shape_cast %265 : vector<32xf32> to vector<32x1xf32>
    %cst_94 = arith.constant 3.200000e+01 : f32
    %267 = vector.broadcast %cst_94 : f32 to vector<32x1xf32>
    %268 = arith.divf %266, %267 : vector<32x1xf32>
    %269 = vector.broadcast %268 : vector<32x1xf32> to vector<32x32xf32>
    %270 = arith.subf %262, %269 : vector<32x32xf32>
    %271 = arith.mulf %270, %270 : vector<32x32xf32>
    %cst_95 = arith.constant dense<0.000000e+00> : vector<32xf32>
    %272 = vector.multi_reduction <add>, %271, %cst_95 [1] : vector<32x32xf32> to vector<32xf32>
    %273 = vector.shape_cast %272 : vector<32xf32> to vector<32x1xf32>
    %cst_96 = arith.constant 3.200000e+01 : f32
    %274 = vector.broadcast %cst_96 : f32 to vector<32x1xf32>
    %275 = arith.divf %273, %274 : vector<32x1xf32>
    %276 = vector.broadcast %268 : vector<32x1xf32> to vector<32x32xf32>
    %277 = arith.subf %262, %276 : vector<32x32xf32>
    %cst_97 = arith.constant 9.99999974E-6 : f32
    %278 = vector.broadcast %cst_97 : f32 to vector<32x1xf32>
    %279 = arith.addf %275, %278 : vector<32x1xf32>
    %280 = math.rsqrt %279 : vector<32x1xf32>
    %281 = vector.broadcast %280 : vector<32x1xf32> to vector<32x32xf32>
    %282 = arith.mulf %277, %281 : vector<32x32xf32>
    %283 = vector.broadcast %263 : vector<1x32xf32> to vector<32x32xf32>
    %284 = arith.mulf %282, %283 : vector<32x32xf32>
    %285 = vector.broadcast %264 : vector<1x32xf32> to vector<32x32xf32>
    %286 = arith.addf %284, %285 : vector<32x32xf32>
    %c672 = arith.constant 672 : index
    %c0_98 = arith.constant 0 : index
    %287 = vector.load %arg1[%c672, %c0_98] : memref<848x128xf32, #tpu.memory_space<vmem>>, vector<32x128xf32>
    %cst_99 = arith.constant dense<0.000000e+00> : vector<32x128xf32>
    %288 = tpu.matmul %286, %287, %cst_99 {dimension_numbers = #tpu.dot_dimension_numbers<[1], [0], [0], [1], [0, 0, 1, 1], [], []>} : vector<32x32xf32>, vector<32x128xf32>, vector<32x128xf32> -> vector<32x128xf32>
    %c704 = arith.constant 704 : index
    %c0_100 = arith.constant 0 : index
    %289 = vector.load %arg1[%c704, %c0_100] : memref<848x128xf32, #tpu.memory_space<vmem>>, vector<1x128xf32>
    %290 = vector.broadcast %289 : vector<1x128xf32> to vector<32x128xf32>
    %291 = arith.addf %288, %290 : vector<32x128xf32>
    %cst_101 = arith.constant 5.000000e-01 : f32
    %292 = vector.broadcast %cst_101 : f32 to vector<32x128xf32>
    %293 = arith.mulf %292, %291 : vector<32x128xf32>
    %cst_102 = arith.constant 0.707106769 : f32
    %294 = vector.broadcast %cst_102 : f32 to vector<32x128xf32>
    %295 = arith.mulf %291, %294 : vector<32x128xf32>
    %296 = math.erf %295 : vector<32x128xf32>
    %cst_103 = arith.constant 1.000000e+00 : f32
    %297 = vector.broadcast %cst_103 : f32 to vector<32x128xf32>
    %298 = arith.addf %297, %296 : vector<32x128xf32>
    %299 = arith.mulf %293, %298 : vector<32x128xf32>
    %c712 = arith.constant 712 : index
    %c0_104 = arith.constant 0 : index
    %300 = vector.load %arg1[%c712, %c0_104] : memref<848x128xf32, #tpu.memory_space<vmem>>, vector<128x32xf32>
    %cst_105 = arith.constant dense<0.000000e+00> : vector<32x32xf32>
    %301 = tpu.matmul %299, %300, %cst_105 {dimension_numbers = #tpu.dot_dimension_numbers<[1], [0], [0], [1], [0, 0, 1, 1], [], []>} : vector<32x128xf32>, vector<128x32xf32>, vector<32x32xf32> -> vector<32x32xf32>
    %c840 = arith.constant 840 : index
    %c0_106 = arith.constant 0 : index
    %302 = vector.load %arg1[%c840, %c0_106] : memref<848x128xf32, #tpu.memory_space<vmem>>, vector<1x32xf32>
    %303 = vector.broadcast %302 : vector<1x32xf32> to vector<32x32xf32>
    %304 = arith.addf %301, %303 : vector<32x32xf32>
    %305 = arith.addf %262, %304 : vector<32x32xf32>
    %c232 = arith.constant 232 : index
    %c0_107 = arith.constant 0 : index
    %306 = vector.load %arg1[%c232, %c0_107] : memref<848x128xf32, #tpu.memory_space<vmem>>, vector<32x128xf32>
    %c264 = arith.constant 264 : index
    %c0_108 = arith.constant 0 : index
    %307 = vector.load %arg1[%c264, %c0_108] : memref<848x128xf32, #tpu.memory_space<vmem>>, vector<1x128xf32>
    %308 = vector.extract_strided_slice %305 {offsets = [12, 0], sizes = [4, 32], strides = [1, 1]} : vector<32x32xf32> to vector<4x32xf32>
    %309 = vector.extract_strided_slice %305 {offsets = [28, 0], sizes = [4, 32], strides = [1, 1]} : vector<32x32xf32> to vector<4x32xf32>
    %310 = tpu.concatenate %308, %309 in 0 : vector<4x32xf32>, vector<4x32xf32> -> vector<8x32xf32>
    %cst_109 = arith.constant dense<0.000000e+00> : vector<8x128xf32>
    %311 = tpu.matmul %310, %306, %cst_109 {dimension_numbers = #tpu.dot_dimension_numbers<[1], [0], [0], [1], [0, 0, 1, 1], [], []>} : vector<8x32xf32>, vector<32x128xf32>, vector<8x128xf32> -> vector<8x128xf32>
    %312 = vector.broadcast %307 : vector<1x128xf32> to vector<8x128xf32>
    %313 = arith.addf %311, %312 : vector<8x128xf32>
    %c0_110 = arith.constant 0 : index
    %c0_111 = arith.constant 0 : index
    %314 = vector.load %arg2[%c0_110, %c0_111] : memref<16x128xf32, #tpu.memory_space<vmem>>, vector<8x128xf32>
    tpu.vector_store %arg2[%c0_110, %c0_111], %313 {strides = array<i32>} : memref<16x128xf32, #tpu.memory_space<vmem>>, vector<8x128xf32>,
    %cst_112 = arith.constant dense<0.000000e+00> : vector<8x32xf32>
    %315 = tpu.matmul %313, %0, %cst_112 {dimension_numbers = #tpu.dot_dimension_numbers<[1], [0], [0], [1], [0, 0, 1, 1], [], []>} : vector<8x128xf32>, vector<128x32xf32>, vector<8x32xf32> -> vector<8x32xf32>
    %316 = vector.broadcast %1 : vector<1x32xf32> to vector<8x32xf32>
    %317 = arith.addf %315, %316 : vector<8x32xf32>
    %cst_113 = arith.constant dense<0.000000e+00> : vector<8x128xf32>
    %318 = tpu.matmul %317, %306, %cst_113 {dimension_numbers = #tpu.dot_dimension_numbers<[1], [0], [0], [1], [0, 0, 1, 1], [], []>} : vector<8x32xf32>, vector<32x128xf32>, vector<8x128xf32> -> vector<8x128xf32>
    %319 = vector.broadcast %307 : vector<1x128xf32> to vector<8x128xf32>
    %320 = arith.addf %318, %319 : vector<8x128xf32>
    %c8 = arith.constant 8 : index
    %c0_114 = arith.constant 0 : index
    %321 = vector.load %arg2[%c8, %c0_114] : memref<16x128xf32, #tpu.memory_space<vmem>>, vector<8x128xf32>
    tpu.vector_store %arg2[%c8, %c0_114], %320 {strides = array<i32>} : memref<16x128xf32, #tpu.memory_space<vmem>>, vector<8x128xf32>,
    return
  }
}

</mosaic_0001>

<llo_original>
// kernel: model_forward.1
$region0: #{model_forward.1}
  #allocation0 [shape = 'u32[]', space=smem, size = 0x4, offset = 0x4, fixed_abs, tag = 'smem constant byte address 0x4 - core index']
  #allocation1 [shape = 'u32[72,128]{1,0:T(1,128)}', space=vmem, size = 0x9000, scoped, tag = 'internal scratch']
  %s0 = inlined_call_operand.vmem [shape: f32[32,128], index: 0, kind: input, shape index: {}]
  %s1 = inlined_call_operand.vmem [shape: f32[848,128], index: 1, kind: input, shape index: {}]
  %s2 = inlined_call_operand.vmem [shape: f32[16,128], index: 2, kind: output, shape index: {}]
  %s3 = sld [smem:[#allocation0]]
  $region18: #{model_forward.1} parent=0
    _
  %s5 = ssub.s32 1, %s3
  %s6 = scalar_select 0, %s5, %s3
  // Predicated region
  $region2: #{model_forward.1} parent=0 // pred_check
    _
  $region3: #{model_forward.1} parent=0 // pred_check_branch
    %8 = sbr.rel (0) target = $region5
  $region4: #{model_forward.1} parent=0 // pred_region
    _
  $region5: #{model_forward.1} parent=0 // pred_fallthru
    _
  // Predicated region
  $region6: #{model_forward.1} parent=0 // pred_check
    _
  $region7: #{model_forward.1} parent=0 // pred_check_branch
    %10 = sbr.rel (0) target = $region9
  $region8: #{model_forward.1} parent=0 // pred_region
    _
  $region9: #{model_forward.1} parent=0 // pred_fallthru
    _
  %v11 = vld [vmem:[%s1 + $0x60] sm:$0xff]
  %v12 = vld [vmem:[%s1 + $0x68] sm:$0xff]
  %v13 = vld [vmem:[%s1 + $0x70] sm:$0xff]
  %v14 = vld [vmem:[%s1 + $0x78] sm:$0xff]
  %v15 = vld [vmem:[%s1 + $0x80] sm:$0xff]
  %v16 = vld [vmem:[%s1 + $0x88] sm:$0xff]
  %v17 = vld [vmem:[%s1 + $0x90] sm:$0xff]
  %v18 = vld [vmem:[%s1 + $0x98] sm:$0xff]
  %v19 = vld [vmem:[%s1 + $0xa0] sm:$0xff]
  %v20 = vld [vmem:[%s1 + $0xa8] sm:$0xff]
  %v21 = vld [vmem:[%s1 + $0xb0] sm:$0xff]
  %v22 = vld [vmem:[%s1 + $0xb8] sm:$0xff]
  %v23 = vld [vmem:[%s1 + $0xc0] sm:$0xff]
  %v24 = vld [vmem:[%s1 + $0xc8] sm:$0xff]
  %v25 = vld [vmem:[%s1 + $0xd0] sm:$0xff]
  %v26 = vld [vmem:[%s1 + $0xd8] sm:$0xff]
  %v27 = vld [vmem:[%s1 + $0xe0] sm:$0x1]
  %v28 = vld [vmem:[%s0] sm:$0xff]
  %v29 = vld [vmem:[%s0 + $0x8] sm:$0xff]
  %v30 = vld [vmem:[%s0 + $0x10] sm:$0xff]
  %v31 = vld [vmem:[%s0 + $0x18] sm:$0xff]
  %v32 = vperm.slane %v27, 0
  %33 = vmatpush.msra.mxu0 %v26
  %34 = vmatpush.msra.mxu0 %v25
  %35 = vmatpush.msra.mxu0 %v24
  %36 = vmatpush.msra.mxu0 %v23
  %37 = vmatpush.msra.mxu0 %v22
  %38 = vmatpush.msra.mxu0 %v21
  %39 = vmatpush.msra.mxu0 %v20
  %40 = vmatpush.msra.mxu0 %v19
  %41 = vmatpush.msra.mxu0 %v18
  %42 = vmatpush.msra.mxu0 %v17
  %43 = vmatpush.msra.mxu0 %v16
  %44 = vmatpush.msra.mxu0 %v15
  %45 = vmatpush.msra.mxu0 %v14
  %46 = vmatpush.msra.mxu0 %v13
  %47 = vmatpush.msra.mxu0 %v12
  %48 = vmatpush.msra.mxu0 %v11
  %49 = vmatmul.f32.gmra.mxu0 %v28
  %v50 = vpop.f32.mrf.mxu0
  %v51 = vadd.f32 %v32, %v50
  %52 = vmatmul.f32.gmra.mxu0 %v29
  %v53 = vpop.f32.mrf.mxu0
  %v54 = vadd.f32 %v32, %v53
  %55 = vmatmul.f32.gmra.mxu0 %v30
  %v56 = vpop.f32.mrf.mxu0
  %v57 = vadd.f32 %v32, %v56
  %58 = vmatmul.f32.gmra.mxu0 %v31
  %v59 = vpop.f32.mrf.mxu0
  %v60 = vadd.f32 %v32, %v59
  %61 = vdwg.mxu0
  %v62 = vld [vmem:[%s1] sm:$0xff]
  %v63 = vld [vmem:[%s1 + $0x8] sm:$0xff]
  %v64 = vld [vmem:[%s1 + $0x10] sm:$0xff]
  %v65 = vld [vmem:[%s1 + $0x18] sm:$0xff]
  %v66 = vadd.f32 %v51, %v62
  %v67 = vadd.f32 %v54, %v63
  %v68 = vadd.f32 %v57, %v64
  %v69 = vadd.f32 %v60, %v65
  %v70 = vld [vmem:[%s1 + $0x20] sm:$0xff]
  %v71 = vld [vmem:[%s1 + $0x28] sm:$0xff]
  %v72 = vld [vmem:[%s1 + $0x30] sm:$0xff]
  %v73 = vld [vmem:[%s1 + $0x38] sm:$0xff]
  %v74 = vld [vmem:[%s1 + $0x40] sm:$0xff]
  %v75 = vld [vmem:[%s1 + $0x48] sm:$0xff]
  %v76 = vld [vmem:[%s1 + $0x50] sm:$0xff]
  %v77 = vld [vmem:[%s1 + $0x58] sm:$0xff]
  %v78 = vld [vmem:[%s1 + $0x110] sm:$0x1]
  %v79 = vld [vmem:[%s1 + $0x118] sm:$0x1]
  %vm80 = vcmask 261120
  %v81 = vsel %vm80, %v66, 0.0
  %82 = vadd.xlane.f32.xlu0 %v81
  %v83 = vpop.xlane.xlu0 %82
  %v84 = vsel %vm80, %v67, 0.0
  %85 = vadd.xlane.f32.xlu0 %v84
  %v86 = vpop.xlane.xlu0 %85
  %v87 = vsel %vm80, %v68, 0.0
  %88 = vadd.xlane.f32.xlu0 %v87
  %v89 = vpop.xlane.xlu0 %88
  %v90 = vsel %vm80, %v69, 0.0
  %91 = vadd.xlane.f32.xlu0 %v90
  %v92 = vpop.xlane.xlu0 %91
  %v93 = vrcp.pop 32.0
  %v94 = vmul.f32 32.0, %v93
  %v95 = vsub.f32 1.0, %v94
  %v96 = vmul.f32 %v93, %v95
  %v97 = vadd.f32 %v93, %v96
  %vm98 = vweird.f32 %v93
  %v99 = vsel %vm98, %v93, %v97
  %v100 = vmul.f32 %v83, %v99
  %v101 = vmul.f32 %v86, %v99
  %v102 = vmul.f32 %v89, %v99
  %v103 = vmul.f32 %v92, %v99
  %v104 = vsub.f32 %v66, %v100
  %v105 = vsub.f32 %v67, %v101
  %v106 = vsub.f32 %v68, %v102
  %v107 = vsub.f32 %v69, %v103
  %v108 = vmul.f32 %v104, %v104
  %v109 = vmul.f32 %v105, %v105
  %v110 = vmul.f32 %v106, %v106
  %v111 = vmul.f32 %v107, %v107
  %v112 = vsel %vm80, %v108, 0.0
  %113 = vadd.xlane.f32.xlu0 %v112
  %v114 = vpop.xlane.xlu0 %113
  %v115 = vsel %vm80, %v109, 0.0
  %116 = vadd.xlane.f32.xlu0 %v115
  %v117 = vpop.xlane.xlu0 %116
  %v118 = vsel %vm80, %v110, 0.0
  %119 = vadd.xlane.f32.xlu0 %v118
  %v120 = vpop.xlane.xlu0 %119
  %v121 = vsel %vm80, %v111, 0.0
  %122 = vadd.xlane.f32.xlu0 %v121
  %v123 = vpop.xlane.xlu0 %122
  %v124 = vmul.f32 %v114, %v99
  %v125 = vmul.f32 %v117, %v99
  %v126 = vmul.f32 %v120, %v99
  %v127 = vmul.f32 %v123, %v99
  %v128 = vadd.f32 %v124, 1e-05
  %v129 = vadd.f32 %v125, 1e-05
  %v130 = vadd.f32 %v126, 1e-05
  %v131 = vadd.f32 %v127, 1e-05
  %v132 = vrsqrt.pop %v128
  %v133 = vmul.f32 %v132, %v128
  %v134 = vmul.f32 %v133, %v132
  %v135 = vmul.f32 0.5, %v134
  %v136 = vsub.f32 1.5, %v135
  %v137 = vmul.f32 %v132, %v136
  %vm138 = vweird.f32 %v128
  %vm139 = vweird.f32 %v132
  %vm140 = vmor %vm138, %vm139
  %v141 = vsel %vm140, %v132, %v137
  %v142 = vrsqrt.pop %v129
  %v143 = vmul.f32 %v142, %v129
  %v144 = vmul.f32 %v143, %v142
  %v145 = vmul.f32 0.5, %v144
  %v146 = vsub.f32 1.5, %v145
  %v147 = vmul.f32 %v142, %v146
  %vm148 = vweird.f32 %v129
  %vm149 = vweird.f32 %v142
  %vm150 = vmor %vm148, %vm149
  %v151 = vsel %vm150, %v142, %v147
  %v152 = vrsqrt.pop %v130
  %v153 = vmul.f32 %v152, %v130
  %v154 = vmul.f32 %v153, %v152
  %v155 = vmul.f32 0.5, %v154
  %v156 = vsub.f32 1.5, %v155
  %v157 = vmul.f32 %v152, %v156
  %vm158 = vweird.f32 %v130
  %vm159 = vweird.f32 %v152
  %vm160 = vmor %vm158, %vm159
  %v161 = vsel %vm160, %v152, %v157
  %v162 = vrsqrt.pop %v131
  %v163 = vmul.f32 %v162, %v131
  %v164 = vmul.f32 %v163, %v162
  %v165 = vmul.f32 0.5, %v164
  %v166 = vsub.f32 1.5, %v165
  %v167 = vmul.f32 %v162, %v166
  %vm168 = vweird.f32 %v131
  %vm169 = vweird.f32 %v162
  %vm170 = vmor %vm168, %vm169
  %v171 = vsel %vm170, %v162, %v167
  %v172 = vmul.f32 %v104, %v141
  %v173 = vmul.f32 %v105, %v151
  %v174 = vmul.f32 %v106, %v161
  %v175 = vmul.f32 %v107, %v171
  %v176 = vperm.slane %v78, 0
  %v177 = vmul.f32 %v172, %v176
  %v178 = vmul.f32 %v173, %v176
  %v179 = vmul.f32 %v174, %v176
  %v180 = vmul.f32 %v175, %v176
  %v181 = vperm.slane %v79, 0
  %v182 = vadd.f32 %v177, %v181
  %v183 = vadd.f32 %v178, %v181
  %v184 = vadd.f32 %v179, %v181
  %v185 = vadd.f32 %v180, %v181
  %v186 = vld [vmem:[%s1 + $0x120] sm:$0xff]
  %v187 = vld [vmem:[%s1 + $0x128] sm:$0xff]
  %v188 = vld [vmem:[%s1 + $0x130] sm:$0xff]
  %v189 = vld [vmem:[%s1 + $0x138] sm:$0xff]
  %v190 = vld [vmem:[%s1 + $0x140] sm:$0x1]
  %v191 = vperm.slane %v190, 0
  %v193 = vsel %vm80, %v182, 0
  %v196 = vsel %vm80, %v183, 0
  %v199 = vsel %vm80, %v184, 0
  %v202 = vsel %vm80, %v185, 0
  %204 = vmatpush.msra.mxu0 0.0
  %205 = vmatpush.msra.mxu0 0.0
  %206 = vmatpush.msra.mxu0 0.0
  %207 = vmatpush.msra.mxu0 0.0
  %208 = vmatpush.msra.mxu0 0.0
  %209 = vmatpush.msra.mxu0 0.0
  %210 = vmatpush.msra.mxu0 0.0
  %211 = vmatpush.msra.mxu0 0.0
  %212 = vmatpush.msra.mxu0 0.0
  %213 = vmatpush.msra.mxu0 0.0
  %214 = vmatpush.msra.mxu0 0.0
  %215 = vmatpush.msra.mxu0 0.0
  %216 = vmatpush.msra.mxu0 %v189
  %217 = vmatpush.msra.mxu0 %v188
  %218 = vmatpush.msra.mxu0 %v187
  %219 = vmatpush.msra.mxu0 %v186
  %220 = vmatmul.f32.gmra.mxu0 %v193
  %v221 = vpop.f32.mrf.mxu0
  %v222 = vadd.f32 %v191, %v221
  %223 = vmatmul.f32.gmra.mxu0 %v196
  %v224 = vpop.f32.mrf.mxu0
  %v225 = vadd.f32 %v191, %v224
  %226 = vmatmul.f32.gmra.mxu0 %v199
  %v227 = vpop.f32.mrf.mxu0
  %v228 = vadd.f32 %v191, %v227
  %229 = vmatmul.f32.gmra.mxu0 %v202
  %v230 = vpop.f32.mrf.mxu0
  %v231 = vadd.f32 %v191, %v230
  %232 = vdwg.mxu0
  %237 = vrot.lane.b32.xlu0 %v222, 96
  %v238 = vpop.permute.xlu0 %237
  %239 = vrot.lane.b32.xlu0 %v225, 96
  %v240 = vpop.permute.xlu0 %239
  %241 = vrot.lane.b32.xlu0 %v228, 96
  %v242 = vpop.permute.xlu0 %241
  %243 = vrot.lane.b32.xlu0 %v231, 96
  %v244 = vpop.permute.xlu0 %243
  %vm245 = vcmask 64512
  %v246 = vsel %vm245, %v222, 0
  %v248 = vsel %vm245, %v225, 0
  %v250 = vsel %vm245, %v228, 0
  %v252 = vsel %vm245, %v231, 0
  %v254 = vsel %vm245, %v238, 0
  %v256 = vsel %vm245, %v240, 0
  %v258 = vsel %vm245, %v242, 0
  %v260 = vsel %vm245, %v244, 0
  %262 = vmatpush.xpose.msra.mxu0 0.0
  %263 = vmatpush.xpose.msra.mxu0 0.0
  %264 = vmatpush.xpose.msra.mxu0 0.0
  %265 = vmatpush.xpose.msra.mxu0 0.0
  %266 = vmatpush.xpose.msra.mxu0 0.0
  %267 = vmatpush.xpose.msra.mxu0 0.0
  %268 = vmatpush.xpose.msra.mxu0 0.0
  %269 = vmatpush.xpose.msra.mxu0 0.0
  %270 = vmatpush.xpose.msra.mxu0 0.0
  %271 = vmatpush.xpose.msra.mxu0 0.0
  %272 = vmatpush.xpose.msra.mxu0 0.0
  %273 = vmatpush.xpose.msra.mxu0 0.0
  %274 = vmatpush.xpose.msra.mxu0 %v260
  %275 = vmatpush.xpose.msra.mxu0 %v258
  %276 = vmatpush.xpose.msra.mxu0 %v256
  %277 = vmatpush.xpose.msra.mxu0 %v254
  %278 = vmatmul.f32.gmra.mxu0 %v246
  %v279 = vpop.f32.mrf.mxu0
  %v280 = vadd.f32 0.0, %v279
  %281 = vmatmul.f32.gmra.mxu0 %v248
  %v282 = vpop.f32.mrf.mxu0
  %v283 = vadd.f32 0.0, %v282
  %284 = vmatmul.f32.gmra.mxu0 %v250
  %v285 = vpop.f32.mrf.mxu0
  %v286 = vadd.f32 0.0, %v285
  %287 = vmatmul.f32.gmra.mxu0 %v252
  %v288 = vpop.f32.mrf.mxu0
  %v289 = vadd.f32 0.0, %v288
  %290 = vdwg.mxu0
  %v291 = vmul.f32 %v280, 0.35355338
  %v292 = vmul.f32 %v283, 0.35355338
  %v293 = vmul.f32 %v286, 0.35355338
  %v294 = vmul.f32 %v289, 0.35355338
  %v295 = vadd.f32 %v291, %v70
  %v296 = vadd.f32 %v292, %v71
  %v297 = vadd.f32 %v293, %v72
  %v298 = vadd.f32 %v294, %v73
  %v299 = vsel %vm80, %v295, -inf
  %300 = vmax.xlane.f32.xlu0 %v299
  %v301 = vpop.xlane.xlu0 %300
  %v302 = vsel %vm80, %v296, -inf
  %303 = vmax.xlane.f32.xlu0 %v302
  %v304 = vpop.xlane.xlu0 %303
  %v305 = vsel %vm80, %v297, -inf
  %306 = vmax.xlane.f32.xlu0 %v305
  %v307 = vpop.xlane.xlu0 %306
  %v308 = vsel %vm80, %v298, -inf
  %309 = vmax.xlane.f32.xlu0 %v308
  %v310 = vpop.xlane.xlu0 %309
  %v311 = vsub.f32 %v295, %v301
  %v312 = vsub.f32 %v296, %v304
  %v313 = vsub.f32 %v297, %v307
  %v314 = vsub.f32 %v298, %v310
  %v315 = vmul.f32 %v311, 1.442695
  %v316 = vpow.pop %v315
  %v317 = vmul.f32 %v312, 1.442695
  %v318 = vpow.pop %v317
  %v319 = vmul.f32 %v313, 1.442695
  %v320 = vpow.pop %v319
  %v321 = vmul.f32 %v314, 1.442695
  %v322 = vpow.pop %v321
  %v323 = vsel %vm80, %v316, 0.0
  %324 = vadd.xlane.f32.xlu0 %v323
  %v325 = vpop.xlane.xlu0 %324
  %v326 = vsel %vm80, %v318, 0.0
  %327 = vadd.xlane.f32.xlu0 %v326
  %v328 = vpop.xlane.xlu0 %327
  %v329 = vsel %vm80, %v320, 0.0
  %330 = vadd.xlane.f32.xlu0 %v329
  %v331 = vpop.xlane.xlu0 %330
  %v332 = vsel %vm80, %v322, 0.0
  %333 = vadd.xlane.f32.xlu0 %v332
  %v334 = vpop.xlane.xlu0 %333
  %v335 = vrcp.pop %v325
  %v336 = vmul.f32 %v325, %v335
  %v337 = vsub.f32 1.0, %v336
  %v338 = vmul.f32 %v335, %v337
  %v339 = vadd.f32 %v335, %v338
  %vm340 = vweird.f32 %v325
  %vm341 = vweird.f32 %v335
  %vm342 = vmor %vm340, %vm341
  %v343 = vsel %vm342, %v335, %v339
  %v344 = vand.u32 2147483647, %v325
  %vm345 = vcmp.eq.f32.partialorder %v344, 8.507059e+37
  %v346 = vand.u32 %v325, 2147483648
  %v347 = vor.u32 1.1754944e-38, %v346
  %v348 = vsel %vm345, %v347, %v343
  %v349 = vmul.f32 %v316, %v348
  %v350 = vrcp.pop %v328
  %v351 = vmul.f32 %v328, %v350
  %v352 = vsub.f32 1.0, %v351
  %v353 = vmul.f32 %v350, %v352
  %v354 = vadd.f32 %v350, %v353
  %vm355 = vweird.f32 %v328
  %vm356 = vweird.f32 %v350
  %vm357 = vmor %vm355, %vm356
  %v358 = vsel %vm357, %v350, %v354
  %v359 = vand.u32 2147483647, %v328
  %vm360 = vcmp.eq.f32.partialorder %v359, 8.507059e+37
  %v361 = vand.u32 %v328, 2147483648
  %v362 = vor.u32 1.1754944e-38, %v361
  %v363 = vsel %vm360, %v362, %v358
  %v364 = vmul.f32 %v318, %v363
  %v365 = vrcp.pop %v331
  %v366 = vmul.f32 %v331, %v365
  %v367 = vsub.f32 1.0, %v366
  %v368 = vmul.f32 %v365, %v367
  %v369 = vadd.f32 %v365, %v368
  %vm370 = vweird.f32 %v331
  %vm371 = vweird.f32 %v365
  %vm372 = vmor %vm370, %vm371
  %v373 = vsel %vm372, %v365, %v369
  %v374 = vand.u32 2147483647, %v331
  %vm375 = vcmp.eq.f32.partialorder %v374, 8.507059e+37
  %v376 = vand.u32 %v331, 2147483648
  %v377 = vor.u32 1.1754944e-38, %v376
  %v378 = vsel %vm375, %v377, %v373
  %v379 = vmul.f32 %v320, %v378
  %v380 = vrcp.pop %v334
  %v381 = vmul.f32 %v334, %v380
  %v382 = vsub.f32 1.0, %v381
  %v383 = vmul.f32 %v380, %v382
  %v384 = vadd.f32 %v380, %v383
  %vm385 = vweird.f32 %v334
  %vm386 = vweird.f32 %v380
  %vm387 = vmor %vm385, %vm386
  %v388 = vsel %vm387, %v380, %v384
  %v389 = vand.u32 2147483647, %v334
  %vm390 = vcmp.eq.f32.partialorder %v389, 8.507059e+37
  %v391 = vand.u32 %v334, 2147483648
  %v392 = vor.u32 1.1754944e-38, %v391
  %v393 = vsel %vm390, %v392, %v388
  %v394 = vmul.f32 %v322, %v393
  %395 = vrot.lane.b32.xlu0 %v222, 64
  %v396 = vpop.permute.xlu0 %395
  %397 = vrot.lane.b32.xlu0 %v225, 64
  %v398 = vpop.permute.xlu0 %397
  %399 = vrot.lane.b32.xlu0 %v228, 64
  %v400 = vpop.permute.xlu0 %399
  %401 = vrot.lane.b32.xlu0 %v231, 64
  %v402 = vpop.permute.xlu0 %401
  %v408 = vsel %vm80, %v349, 0
  %v411 = vsel %vm80, %v364, 0
  %v414 = vsel %vm80, %v379, 0
  %v417 = vsel %vm80, %v394, 0
  %419 = vmatpush.msra.mxu0 0.0
  %420 = vmatpush.msra.mxu0 0.0
  %421 = vmatpush.msra.mxu0 0.0
  %422 = vmatpush.msra.mxu0 0.0
  %423 = vmatpush.msra.mxu0 0.0
  %424 = vmatpush.msra.mxu0 0.0
  %425 = vmatpush.msra.mxu0 0.0
  %426 = vmatpush.msra.mxu0 0.0
  %427 = vmatpush.msra.mxu0 0.0
  %428 = vmatpush.msra.mxu0 0.0
  %429 = vmatpush.msra.mxu0 0.0
  %430 = vmatpush.msra.mxu0 0.0
  %431 = vmatpush.msra.mxu0 %v402
  %432 = vmatpush.msra.mxu0 %v400
  %433 = vmatpush.msra.mxu0 %v398
  %434 = vmatpush.msra.mxu0 %v396
  %435 = vmatmul.f32.gmra.mxu0 %v408
  %v436 = vpop.f32.mrf.mxu0
  %v437 = vadd.f32 0.0, %v436
  %438 = vmatmul.f32.gmra.mxu0 %v411
  %v439 = vpop.f32.mrf.mxu0
  %v440 = vadd.f32 0.0, %v439
  %441 = vmatmul.f32.gmra.mxu0 %v414
  %v442 = vpop.f32.mrf.mxu0
  %v443 = vadd.f32 0.0, %v442
  %444 = vmatmul.f32.gmra.mxu0 %v417
  %v445 = vpop.f32.mrf.mxu0
  %v446 = vadd.f32 0.0, %v445
  %447 = vdwg.mxu0
  %448 = vrot.lane.b32.xlu0 %v222, 120
  %v449 = vpop.permute.xlu0 %448
  %450 = vrot.lane.b32.xlu0 %v225, 120
  %v451 = vpop.permute.xlu0 %450
  %452 = vrot.lane.b32.xlu0 %v228, 120
  %v453 = vpop.permute.xlu0 %452
  %454 = vrot.lane.b32.xlu0 %v231, 120
  %v455 = vpop.permute.xlu0 %454
  %456 = vrot.lane.b32.xlu0 %v222, 88
  %v457 = vpop.permute.xlu0 %456
  %458 = vrot.lane.b32.xlu0 %v225, 88
  %v459 = vpop.permute.xlu0 %458
  %460 = vrot.lane.b32.xlu0 %v228, 88
  %v461 = vpop.permute.xlu0 %460
  %462 = vrot.lane.b32.xlu0 %v231, 88
  %v463 = vpop.permute.xlu0 %462
  %v464 = vsel %vm245, %v449, 0
  %v466 = vsel %vm245, %v451, 0
  %v468 = vsel %vm245, %v453, 0
  %v470 = vsel %vm245, %v455, 0
  %v472 = vsel %vm245, %v457, 0
  %v474 = vsel %vm245, %v459, 0
  %v476 = vsel %vm245, %v461, 0
  %v478 = vsel %vm245, %v463, 0
  %480 = vmatpush.xpose.msra.mxu0 0.0
  %481 = vmatpush.xpose.msra.mxu0 0.0
  %482 = vmatpush.xpose.msra.mxu0 0.0
  %483 = vmatpush.xpose.msra.mxu0 0.0
  %484 = vmatpush.xpose.msra.mxu0 0.0
  %485 = vmatpush.xpose.msra.mxu0 0.0
  %486 = vmatpush.xpose.msra.mxu0 0.0
  %487 = vmatpush.xpose.msra.mxu0 0.0
  %488 = vmatpush.xpose.msra.mxu0 0.0
  %489 = vmatpush.xpose.msra.mxu0 0.0
  %490 = vmatpush.xpose.msra.mxu0 0.0
  %491 = vmatpush.xpose.msra.mxu0 0.0
  %492 = vmatpush.xpose.msra.mxu0 %v478
  %493 = vmatpush.xpose.msra.mxu0 %v476
  %494 = vmatpush.xpose.msra.mxu0 %v474
  %495 = vmatpush.xpose.msra.mxu0 %v472
  %496 = vmatmul.f32.gmra.mxu0 %v464
  %v497 = vpop.f32.mrf.mxu0
  %v498 = vadd.f32 0.0, %v497
  %499 = vmatmul.f32.gmra.mxu0 %v466
  %v500 = vpop.f32.mrf.mxu0
  %v501 = vadd.f32 0.0, %v500
  %502 = vmatmul.f32.gmra.mxu0 %v468
  %v503 = vpop.f32.mrf.mxu0
  %v504 = vadd.f32 0.0, %v503
  %505 = vmatmul.f32.gmra.mxu0 %v470
  %v506 = vpop.f32.mrf.mxu0
  %v507 = vadd.f32 0.0, %v506
  %508 = vdwg.mxu0
  %v509 = vmul.f32 %v498, 0.35355338
  %v510 = vmul.f32 %v501, 0.35355338
  %v511 = vmul.f32 %v504, 0.35355338
  %v512 = vmul.f32 %v507, 0.35355338
  %v513 = vadd.f32 %v509, %v70
  %v514 = vadd.f32 %v510, %v71
  %v515 = vadd.f32 %v511, %v72
  %v516 = vadd.f32 %v512, %v73
  %v517 = vsel %vm80, %v513, -inf
  %518 = vmax.xlane.f32.xlu0 %v517
  %v519 = vpop.xlane.xlu0 %518
  %v520 = vsel %vm80, %v514, -inf
  %521 = vmax.xlane.f32.xlu0 %v520
  %v522 = vpop.xlane.xlu0 %521
  %v523 = vsel %vm80, %v515, -inf
  %524 = vmax.xlane.f32.xlu0 %v523
  %v525 = vpop.xlane.xlu0 %524
  %v526 = vsel %vm80, %v516, -inf
  %527 = vmax.xlane.f32.xlu0 %v526
  %v528 = vpop.xlane.xlu0 %527
  %v529 = vsub.f32 %v513, %v519
  %v530 = vsub.f32 %v514, %v522
  %v531 = vsub.f32 %v515, %v525
  %v532 = vsub.f32 %v516, %v528
  %v533 = vmul.f32 %v529, 1.442695
  %v534 = vpow.pop %v533
  %v535 = vmul.f32 %v530, 1.442695
  %v536 = vpow.pop %v535
  %v537 = vmul.f32 %v531, 1.442695
  %v538 = vpow.pop %v537
  %v539 = vmul.f32 %v532, 1.442695
  %v540 = vpow.pop %v539
  %v541 = vsel %vm80, %v534, 0.0
  %542 = vadd.xlane.f32.xlu0 %v541
  %v543 = vpop.xlane.xlu0 %542
  %v544 = vsel %vm80, %v536, 0.0
  %545 = vadd.xlane.f32.xlu0 %v544
  %v546 = vpop.xlane.xlu0 %545
  %v547 = vsel %vm80, %v538, 0.0
  %548 = vadd.xlane.f32.xlu0 %v547
  %v549 = vpop.xlane.xlu0 %548
  %v550 = vsel %vm80, %v540, 0.0
  %551 = vadd.xlane.f32.xlu0 %v550
  %v552 = vpop.xlane.xlu0 %551
  %v553 = vrcp.pop %v543
  %v554 = vmul.f32 %v543, %v553
  %v555 = vsub.f32 1.0, %v554
  %v556 = vmul.f32 %v553, %v555
  %v557 = vadd.f32 %v553, %v556
  %vm558 = vweird.f32 %v543
  %vm559 = vweird.f32 %v553
  %vm560 = vmor %vm558, %vm559
  %v561 = vsel %vm560, %v553, %v557
  %v562 = vand.u32 2147483647, %v543
  %vm563 = vcmp.eq.f32.partialorder %v562, 8.507059e+37
  %v564 = vand.u32 %v543, 2147483648
  %v565 = vor.u32 1.1754944e-38, %v564
  %v566 = vsel %vm563, %v565, %v561
  %v567 = vmul.f32 %v534, %v566
  %v568 = vrcp.pop %v546
  %v569 = vmul.f32 %v546, %v568
  %v570 = vsub.f32 1.0, %v569
  %v571 = vmul.f32 %v568, %v570
  %v572 = vadd.f32 %v568, %v571
  %vm573 = vweird.f32 %v546
  %vm574 = vweird.f32 %v568
  %vm575 = vmor %vm573, %vm574
  %v576 = vsel %vm575, %v568, %v572
  %v577 = vand.u32 2147483647, %v546
  %vm578 = vcmp.eq.f32.partialorder %v577, 8.507059e+37
  %v579 = vand.u32 %v546, 2147483648
  %v580 = vor.u32 1.1754944e-38, %v579
  %v581 = vsel %vm578, %v580, %v576
  %v582 = vmul.f32 %v536, %v581
  %v583 = vrcp.pop %v549
  %v584 = vmul.f32 %v549, %v583
  %v585 = vsub.f32 1.0, %v584
  %v586 = vmul.f32 %v583, %v585
  %v587 = vadd.f32 %v583, %v586
  %vm588 = vweird.f32 %v549
  %vm589 = vweird.f32 %v583
  %vm590 = vmor %vm588, %vm589
  %v591 = vsel %vm590, %v583, %v587
  %v592 = vand.u32 2147483647, %v549
  %vm593 = vcmp.eq.f32.partialorder %v592, 8.507059e+37
  %v594 = vand.u32 %v549, 2147483648
  %v595 = vor.u32 1.1754944e-38, %v594
  %v596 = vsel %vm593, %v595, %v591
  %v597 = vmul.f32 %v538, %v596
  %v598 = vrcp.pop %v552
  %v599 = vmul.f32 %v552, %v598
  %v600 = vsub.f32 1.0, %v599
  %v601 = vmul.f32 %v598, %v600
  %v602 = vadd.f32 %v598, %v601
  %vm603 = vweird.f32 %v552
  %vm604 = vweird.f32 %v598
  %vm605 = vmor %vm603, %vm604
  %v606 = vsel %vm605, %v598, %v602
  %v607 = vand.u32 2147483647, %v552
  %vm608 = vcmp.eq.f32.partialorder %v607, 8.507059e+37
  %v609 = vand.u32 %v552, 2147483648
  %v610 = vor.u32 1.1754944e-38, %v609
  %v611 = vsel %vm608, %v610, %v606
  %v612 = vmul.f32 %v540, %v611
  %613 = vrot.lane.b32.xlu0 %v222, 56
  %v614 = vpop.permute.xlu0 %613
  %615 = vrot.lane.b32.xlu0 %v225, 56
  %v616 = vpop.permute.xlu0 %615
  %617 = vrot.lane.b32.xlu0 %v228, 56
  %v618 = vpop.permute.xlu0 %617
  %619 = vrot.lane.b32.xlu0 %v231, 56
  %v620 = vpop.permute.xlu0 %619
  %v626 = vsel %vm80, %v567, 0
  %v629 = vsel %vm80, %v582, 0
  %v632 = vsel %vm80, %v597, 0
  %v635 = vsel %vm80, %v612, 0
  %637 = vmatpush.msra.mxu0 0.0
  %638 = vmatpush.msra.mxu0 0.0
  %639 = vmatpush.msra.mxu0 0.0
  %640 = vmatpush.msra.mxu0 0.0
  %641 = vmatpush.msra.mxu0 0.0
  %642 = vmatpush.msra.mxu0 0.0
  %643 = vmatpush.msra.mxu0 0.0
  %644 = vmatpush.msra.mxu0 0.0
  %645 = vmatpush.msra.mxu0 0.0
  %646 = vmatpush.msra.mxu0 0.0
  %647 = vmatpush.msra.mxu0 0.0
  %648 = vmatpush.msra.mxu0 0.0
  %649 = vmatpush.msra.mxu0 %v620
  %650 = vmatpush.msra.mxu0 %v618
  %651 = vmatpush.msra.mxu0 %v616
  %652 = vmatpush.msra.mxu0 %v614
  %653 = vmatmul.f32.gmra.mxu0 %v626
  %v654 = vpop.f32.mrf.mxu0
  %v655 = vadd.f32 0.0, %v654
  %656 = vmatmul.f32.gmra.mxu0 %v629
  %v657 = vpop.f32.mrf.mxu0
  %v658 = vadd.f32 0.0, %v657
  %659 = vmatmul.f32.gmra.mxu0 %v632
  %v660 = vpop.f32.mrf.mxu0
  %v661 = vadd.f32 0.0, %v660
  %662 = vmatmul.f32.gmra.mxu0 %v635
  %v663 = vpop.f32.mrf.mxu0
  %v664 = vadd.f32 0.0, %v663
  %665 = vdwg.mxu0
  %666 = vrot.lane.b32.xlu0 %v222, 112
  %v667 = vpop.permute.xlu0 %666
  %668 = vrot.lane.b32.xlu0 %v225, 112
  %v669 = vpop.permute.xlu0 %668
  %670 = vrot.lane.b32.xlu0 %v228, 112
  %v671 = vpop.permute.xlu0 %670
  %672 = vrot.lane.b32.xlu0 %v231, 112
  %v673 = vpop.permute.xlu0 %672
  %674 = vrot.lane.b32.xlu0 %v222, 80
  %v675 = vpop.permute.xlu0 %674
  %676 = vrot.lane.b32.xlu0 %v225, 80
  %v677 = vpop.permute.xlu0 %676
  %678 = vrot.lane.b32.xlu0 %v228, 80
  %v679 = vpop.permute.xlu0 %678
  %680 = vrot.lane.b32.xlu0 %v231, 80
  %v681 = vpop.permute.xlu0 %680
  %v682 = vsel %vm245, %v667, 0
  %v684 = vsel %vm245, %v669, 0
  %v686 = vsel %vm245, %v671, 0
  %v688 = vsel %vm245, %v673, 0
  %v690 = vsel %vm245, %v675, 0
  %v692 = vsel %vm245, %v677, 0
  %v694 = vsel %vm245, %v679, 0
  %v696 = vsel %vm245, %v681, 0
  %698 = vmatpush.xpose.msra.mxu0 0.0
  %699 = vmatpush.xpose.msra.mxu0 0.0
  %700 = vmatpush.xpose.msra.mxu0 0.0
  %701 = vmatpush.xpose.msra.mxu0 0.0
  %702 = vmatpush.xpose.msra.mxu0 0.0
  %703 = vmatpush.xpose.msra.mxu0 0.0
  %704 = vmatpush.xpose.msra.mxu0 0.0
  %705 = vmatpush.xpose.msra.mxu0 0.0
  %706 = vmatpush.xpose.msra.mxu0 0.0
  %707 = vmatpush.xpose.msra.mxu0 0.0
  %708 = vmatpush.xpose.msra.mxu0 0.0
  %709 = vmatpush.xpose.msra.mxu0 0.0
  %710 = vmatpush.xpose.msra.mxu0 %v696
  %711 = vmatpush.xpose.msra.mxu0 %v694
  %712 = vmatpush.xpose.msra.mxu0 %v692
  %713 = vmatpush.xpose.msra.mxu0 %v690
  %714 = vmatmul.f32.gmra.mxu0 %v682
  %v715 = vpop.f32.mrf.mxu0
  %v716 = vadd.f32 0.0, %v715
  %717 = vmatmul.f32.gmra.mxu0 %v684
  %v718 = vpop.f32.mrf.mxu0
  %v719 = vadd.f32 0.0, %v718
  %720 = vmatmul.f32.gmra.mxu0 %v686
  %v721 = vpop.f32.mrf.mxu0
  %v722 = vadd.f32 0.0, %v721
  %723 = vmatmul.f32.gmra.mxu0 %v688
  %v724 = vpop.f32.mrf.mxu0
  %v725 = vadd.f32 0.0, %v724
  %726 = vdwg.mxu0
  %v727 = vmul.f32 %v716, 0.35355338
  %v728 = vmul.f32 %v719, 0.35355338
  %v729 = vmul.f32 %v722, 0.35355338
  %v730 = vmul.f32 %v725, 0.35355338
  %v731 = vadd.f32 %v727, %v70
  %v732 = vadd.f32 %v728, %v71
  %v733 = vadd.f32 %v729, %v72
  %v734 = vadd.f32 %v730, %v73
  %v735 = vsel %vm80, %v731, -inf
  %736 = vmax.xlane.f32.xlu0 %v735
  %v737 = vpop.xlane.xlu0 %736
  %v738 = vsel %vm80, %v732, -inf
  %739 = vmax.xlane.f32.xlu0 %v738
  %v740 = vpop.xlane.xlu0 %739
  %v741 = vsel %vm80, %v733, -inf
  %742 = vmax.xlane.f32.xlu0 %v741
  %v743 = vpop.xlane.xlu0 %742
  %v744 = vsel %vm80, %v734, -inf
  %745 = vmax.xlane.f32.xlu0 %v744
  %v746 = vpop.xlane.xlu0 %745
  %v747 = vsub.f32 %v731, %v737
  %v748 = vsub.f32 %v732, %v740
  %v749 = vsub.f32 %v733, %v743
  %v750 = vsub.f32 %v734, %v746
  %v751 = vmul.f32 %v747, 1.442695
  %v752 = vpow.pop %v751
  %v753 = vmul.f32 %v748, 1.442695
  %v754 = vpow.pop %v753
  %v755 = vmul.f32 %v749, 1.442695
  %v756 = vpow.pop %v755
  %v757 = vmul.f32 %v750, 1.442695
  %v758 = vpow.pop %v757
  %v759 = vsel %vm80, %v752, 0.0
  %760 = vadd.xlane.f32.xlu0 %v759
  %v761 = vpop.xlane.xlu0 %760
  %v762 = vsel %vm80, %v754, 0.0
  %763 = vadd.xlane.f32.xlu0 %v762
  %v764 = vpop.xlane.xlu0 %763
  %v765 = vsel %vm80, %v756, 0.0
  %766 = vadd.xlane.f32.xlu0 %v765
  %v767 = vpop.xlane.xlu0 %766
  %v768 = vsel %vm80, %v758, 0.0
  %769 = vadd.xlane.f32.xlu0 %v768
  %v770 = vpop.xlane.xlu0 %769
  %v771 = vrcp.pop %v761
  %v772 = vmul.f32 %v761, %v771
  %v773 = vsub.f32 1.0, %v772
  %v774 = vmul.f32 %v771, %v773
  %v775 = vadd.f32 %v771, %v774
  %vm776 = vweird.f32 %v761
  %vm777 = vweird.f32 %v771
  %vm778 = vmor %vm776, %vm777
  %v779 = vsel %vm778, %v771, %v775
  %v780 = vand.u32 2147483647, %v761
  %vm781 = vcmp.eq.f32.partialorder %v780, 8.507059e+37
  %v782 = vand.u32 %v761, 2147483648
  %v783 = vor.u32 1.1754944e-38, %v782
  %v784 = vsel %vm781, %v783, %v779
  %v785 = vmul.f32 %v752, %v784
  %v786 = vrcp.pop %v764
  %v787 = vmul.f32 %v764, %v786
  %v788 = vsub.f32 1.0, %v787
  %v789 = vmul.f32 %v786, %v788
  %v790 = vadd.f32 %v786, %v789
  %vm791 = vweird.f32 %v764
  %vm792 = vweird.f32 %v786
  %vm793 = vmor %vm791, %vm792
  %v794 = vsel %vm793, %v786, %v790
  %v795 = vand.u32 2147483647, %v764
  %vm796 = vcmp.eq.f32.partialorder %v795, 8.507059e+37
  %v797 = vand.u32 %v764, 2147483648
  %v798 = vor.u32 1.1754944e-38, %v797
  %v799 = vsel %vm796, %v798, %v794
  %v800 = vmul.f32 %v754, %v799
  %v801 = vrcp.pop %v767
  %v802 = vmul.f32 %v767, %v801
  %v803 = vsub.f32 1.0, %v802
  %v804 = vmul.f32 %v801, %v803
  %v805 = vadd.f32 %v801, %v804
  %vm806 = vweird.f32 %v767
  %vm807 = vweird.f32 %v801
  %vm808 = vmor %vm806, %vm807
  %v809 = vsel %vm808, %v801, %v805
  %v810 = vand.u32 2147483647, %v767
  %vm811 = vcmp.eq.f32.partialorder %v810, 8.507059e+37
  %v812 = vand.u32 %v767, 2147483648
  %v813 = vor.u32 1.1754944e-38, %v812
  %v814 = vsel %vm811, %v813, %v809
  %v815 = vmul.f32 %v756, %v814
  %v816 = vrcp.pop %v770
  %v817 = vmul.f32 %v770, %v816
  %v818 = vsub.f32 1.0, %v817
  %v819 = vmul.f32 %v816, %v818
  %v820 = vadd.f32 %v816, %v819
  %vm821 = vweird.f32 %v770
  %vm822 = vweird.f32 %v816
  %vm823 = vmor %vm821, %vm822
  %v824 = vsel %vm823, %v816, %v820
  %v825 = vand.u32 2147483647, %v770
  %vm826 = vcmp.eq.f32.partialorder %v825, 8.507059e+37
  %v827 = vand.u32 %v770, 2147483648
  %v828 = vor.u32 1.1754944e-38, %v827
  %v829 = vsel %vm826, %v828, %v824
  %v830 = vmul.f32 %v758, %v829
  %831 = vrot.lane.b32.xlu0 %v222, 48
  %v832 = vpop.permute.xlu0 %831
  %833 = vrot.lane.b32.xlu0 %v225, 48
  %v834 = vpop.permute.xlu0 %833
  %835 = vrot.lane.b32.xlu0 %v228, 48
  %v836 = vpop.permute.xlu0 %835
  %837 = vrot.lane.b32.xlu0 %v231, 48
  %v838 = vpop.permute.xlu0 %837
  %v844 = vsel %vm80, %v785, 0
  %v847 = vsel %vm80, %v800, 0
  %v850 = vsel %vm80, %v815, 0
  %v853 = vsel %vm80, %v830, 0
  %855 = vmatpush.msra.mxu0 0.0
  %856 = vmatpush.msra.mxu0 0.0
  %857 = vmatpush.msra.mxu0 0.0
  %858 = vmatpush.msra.mxu0 0.0
  %859 = vmatpush.msra.mxu0 0.0
  %860 = vmatpush.msra.mxu0 0.0
  %861 = vmatpush.msra.mxu0 0.0
  %862 = vmatpush.msra.mxu0 0.0
  %863 = vmatpush.msra.mxu0 0.0
  %864 = vmatpush.msra.mxu0 0.0
  %865 = vmatpush.msra.mxu0 0.0
  %866 = vmatpush.msra.mxu0 0.0
  %867 = vmatpush.msra.mxu0 %v838
  %868 = vmatpush.msra.mxu0 %v836
  %869 = vmatpush.msra.mxu0 %v834
  %870 = vmatpush.msra.mxu0 %v832
  %871 = vmatmul.f32.gmra.mxu0 %v844
  %v872 = vpop.f32.mrf.mxu0
  %v873 = vadd.f32 0.0, %v872
  %874 = vmatmul.f32.gmra.mxu0 %v847
  %v875 = vpop.f32.mrf.mxu0
  %v876 = vadd.f32 0.0, %v875
  %877 = vmatmul.f32.gmra.mxu0 %v850
  %v878 = vpop.f32.mrf.mxu0
  %v879 = vadd.f32 0.0, %v878
  %880 = vmatmul.f32.gmra.mxu0 %v853
  %v881 = vpop.f32.mrf.mxu0
  %v882 = vadd.f32 0.0, %v881
  %883 = vdwg.mxu0
  %884 = vrot.lane.b32.xlu0 %v222, 104
  %v885 = vpop.permute.xlu0 %884
  %886 = vrot.lane.b32.xlu0 %v225, 104
  %v887 = vpop.permute.xlu0 %886
  %888 = vrot.lane.b32.xlu0 %v228, 104
  %v889 = vpop.permute.xlu0 %888
  %890 = vrot.lane.b32.xlu0 %v231, 104
  %v891 = vpop.permute.xlu0 %890
  %892 = vrot.lane.b32.xlu0 %v222, 72
  %v893 = vpop.permute.xlu0 %892
  %894 = vrot.lane.b32.xlu0 %v225, 72
  %v895 = vpop.permute.xlu0 %894
  %896 = vrot.lane.b32.xlu0 %v228, 72
  %v897 = vpop.permute.xlu0 %896
  %898 = vrot.lane.b32.xlu0 %v231, 72
  %v899 = vpop.permute.xlu0 %898
  %v900 = vsel %vm245, %v885, 0
  %v902 = vsel %vm245, %v887, 0
  %v904 = vsel %vm245, %v889, 0
  %v906 = vsel %vm245, %v891, 0
  %v908 = vsel %vm245, %v893, 0
  %v910 = vsel %vm245, %v895, 0
  %v912 = vsel %vm245, %v897, 0
  %v914 = vsel %vm245, %v899, 0
  %916 = vmatpush.xpose.msra.mxu0 0.0
  %917 = vmatpush.xpose.msra.mxu0 0.0
  %918 = vmatpush.xpose.msra.mxu0 0.0
  %919 = vmatpush.xpose.msra.mxu0 0.0
  %920 = vmatpush.xpose.msra.mxu0 0.0
  %921 = vmatpush.xpose.msra.mxu0 0.0
  %922 = vmatpush.xpose.msra.mxu0 0.0
  %923 = vmatpush.xpose.msra.mxu0 0.0
  %924 = vmatpush.xpose.msra.mxu0 0.0
  %925 = vmatpush.xpose.msra.mxu0 0.0
  %926 = vmatpush.xpose.msra.mxu0 0.0
  %927 = vmatpush.xpose.msra.mxu0 0.0
  %928 = vmatpush.xpose.msra.mxu0 %v914
  %929 = vmatpush.xpose.msra.mxu0 %v912
  %930 = vmatpush.xpose.msra.mxu0 %v910
  %931 = vmatpush.xpose.msra.mxu0 %v908
  %932 = vmatmul.f32.gmra.mxu0 %v900
  %v933 = vpop.f32.mrf.mxu0
  %v934 = vadd.f32 0.0, %v933
  %935 = vmatmul.f32.gmra.mxu0 %v902
  %v936 = vpop.f32.mrf.mxu0
  %v937 = vadd.f32 0.0, %v936
  %938 = vmatmul.f32.gmra.mxu0 %v904
  %v939 = vpop.f32.mrf.mxu0
  %v940 = vadd.f32 0.0, %v939
  %941 = vmatmul.f32.gmra.mxu0 %v906
  %v942 = vpop.f32.mrf.mxu0
  %v943 = vadd.f32 0.0, %v942
  %944 = vdwg.mxu0
  %v945 = vmul.f32 %v934, 0.35355338
  %v946 = vmul.f32 %v937, 0.35355338
  %v947 = vmul.f32 %v940, 0.35355338
  %v948 = vmul.f32 %v943, 0.35355338
  %v949 = vadd.f32 %v945, %v70
  %v950 = vadd.f32 %v946, %v71
  %v951 = vadd.f32 %v947, %v72
  %v952 = vadd.f32 %v948, %v73
  %v953 = vsel %vm80, %v949, -inf
  %954 = vmax.xlane.f32.xlu0 %v953
  %v955 = vpop.xlane.xlu0 %954
  %v956 = vsel %vm80, %v950, -inf
  %957 = vmax.xlane.f32.xlu0 %v956
  %v958 = vpop.xlane.xlu0 %957
  %v959 = vsel %vm80, %v951, -inf
  %960 = vmax.xlane.f32.xlu0 %v959
  %v961 = vpop.xlane.xlu0 %960
  %v962 = vsel %vm80, %v952, -inf
  %963 = vmax.xlane.f32.xlu0 %v962
  %v964 = vpop.xlane.xlu0 %963
  %v965 = vsub.f32 %v949, %v955
  %v966 = vsub.f32 %v950, %v958
  %v967 = vsub.f32 %v951, %v961
  %v968 = vsub.f32 %v952, %v964
  %v969 = vmul.f32 %v965, 1.442695
  %v970 = vpow.pop %v969
  %v971 = vmul.f32 %v966, 1.442695
  %v972 = vpow.pop %v971
  %v973 = vmul.f32 %v967, 1.442695
  %v974 = vpow.pop %v973
  %v975 = vmul.f32 %v968, 1.442695
  %v976 = vpow.pop %v975
  %v977 = vsel %vm80, %v970, 0.0
  %978 = vadd.xlane.f32.xlu0 %v977
  %v979 = vpop.xlane.xlu0 %978
  %v980 = vsel %vm80, %v972, 0.0
  %981 = vadd.xlane.f32.xlu0 %v980
  %v982 = vpop.xlane.xlu0 %981
  %v983 = vsel %vm80, %v974, 0.0
  %984 = vadd.xlane.f32.xlu0 %v983
  %v985 = vpop.xlane.xlu0 %984
  %v986 = vsel %vm80, %v976, 0.0
  %987 = vadd.xlane.f32.xlu0 %v986
  %v988 = vpop.xlane.xlu0 %987
  %v989 = vrcp.pop %v979
  %v990 = vmul.f32 %v979, %v989
  %v991 = vsub.f32 1.0, %v990
  %v992 = vmul.f32 %v989, %v991
  %v993 = vadd.f32 %v989, %v992
  %vm994 = vweird.f32 %v979
  %vm995 = vweird.f32 %v989
  %vm996 = vmor %vm994, %vm995
  %v997 = vsel %vm996, %v989, %v993
  %v998 = vand.u32 2147483647, %v979
  %vm999 = vcmp.eq.f32.partialorder %v998, 8.507059e+37
  %v1000 = vand.u32 %v979, 2147483648
  %v1001 = vor.u32 1.1754944e-38, %v1000
  %v1002 = vsel %vm999, %v1001, %v997
  %v1003 = vmul.f32 %v970, %v1002
  %v1004 = vrcp.pop %v982
  %v1005 = vmul.f32 %v982, %v1004
  %v1006 = vsub.f32 1.0, %v1005
  %v1007 = vmul.f32 %v1004, %v1006
  %v1008 = vadd.f32 %v1004, %v1007
  %vm1009 = vweird.f32 %v982
  %vm1010 = vweird.f32 %v1004
  %vm1011 = vmor %vm1009, %vm1010
  %v1012 = vsel %vm1011, %v1004, %v1008
  %v1013 = vand.u32 2147483647, %v982
  %vm1014 = vcmp.eq.f32.partialorder %v1013, 8.507059e+37
  %v1015 = vand.u32 %v982, 2147483648
  %v1016 = vor.u32 1.1754944e-38, %v1015
  %v1017 = vsel %vm1014, %v1016, %v1012
  %v1018 = vmul.f32 %v972, %v1017
  %v1019 = vrcp.pop %v985
  %v1020 = vmul.f32 %v985, %v1019
  %v1021 = vsub.f32 1.0, %v1020
  %v1022 = vmul.f32 %v1019, %v1021
  %v1023 = vadd.f32 %v1019, %v1022
  %vm1024 = vweird.f32 %v985
  %vm1025 = vweird.f32 %v1019
  %vm1026 = vmor %vm1024, %vm1025
  %v1027 = vsel %vm1026, %v1019, %v1023
  %v1028 = vand.u32 2147483647, %v985
  %vm1029 = vcmp.eq.f32.partialorder %v1028, 8.507059e+37
  %v1030 = vand.u32 %v985, 2147483648
  %v1031 = vor.u32 1.1754944e-38, %v1030
  %v1032 = vsel %vm1029, %v1031, %v1027
  %v1033 = vmul.f32 %v974, %v1032
  %v1034 = vrcp.pop %v988
  %v1035 = vmul.f32 %v988, %v1034
  %v1036 = vsub.f32 1.0, %v1035
  %v1037 = vmul.f32 %v1034, %v1036
  %v1038 = vadd.f32 %v1034, %v1037
  %vm1039 = vweird.f32 %v988
  %vm1040 = vweird.f32 %v1034
  %vm1041 = vmor %vm1039, %vm1040
  %v1042 = vsel %vm1041, %v1034, %v1038
  %v1043 = vand.u32 2147483647, %v988
  %vm1044 = vcmp.eq.f32.partialorder %v1043, 8.507059e+37
  %v1045 = vand.u32 %v988, 2147483648
  %v1046 = vor.u32 1.1754944e-38, %v1045
  %v1047 = vsel %vm1044, %v1046, %v1042
  %v1048 = vmul.f32 %v976, %v1047
  %1049 = vrot.lane.b32.xlu0 %v222, 40
  %v1050 = vpop.permute.xlu0 %1049
  %1051 = vrot.lane.b32.xlu0 %v225, 40
  %v1052 = vpop.permute.xlu0 %1051
  %1053 = vrot.lane.b32.xlu0 %v228, 40
  %v1054 = vpop.permute.xlu0 %1053
  %1055 = vrot.lane.b32.xlu0 %v231, 40
  %v1056 = vpop.permute.xlu0 %1055
  %v1062 = vsel %vm80, %v1003, 0
  %v1065 = vsel %vm80, %v1018, 0
  %v1068 = vsel %vm80, %v1033, 0
  %v1071 = vsel %vm80, %v1048, 0
  %1073 = vmatpush.msra.mxu0 0.0
  %1074 = vmatpush.msra.mxu0 0.0
  %1075 = vmatpush.msra.mxu0 0.0
  %1076 = vmatpush.msra.mxu0 0.0
  %1077 = vmatpush.msra.mxu0 0.0
  %1078 = vmatpush.msra.mxu0 0.0
  %1079 = vmatpush.msra.mxu0 0.0
  %1080 = vmatpush.msra.mxu0 0.0
  %1081 = vmatpush.msra.mxu0 0.0
  %1082 = vmatpush.msra.mxu0 0.0
  %1083 = vmatpush.msra.mxu0 0.0
  %1084 = vmatpush.msra.mxu0 0.0
  %1085 = vmatpush.msra.mxu0 %v1056
  %1086 = vmatpush.msra.mxu0 %v1054
  %1087 = vmatpush.msra.mxu0 %v1052
  %1088 = vmatpush.msra.mxu0 %v1050
  %1089 = vmatmul.f32.gmra.mxu0 %v1062
  %v1090 = vpop.f32.mrf.mxu0
  %v1091 = vadd.f32 0.0, %v1090
  %1092 = vmatmul.f32.gmra.mxu0 %v1065
  %v1093 = vpop.f32.mrf.mxu0
  %v1094 = vadd.f32 0.0, %v1093
  %1095 = vmatmul.f32.gmra.mxu0 %v1068
  %v1096 = vpop.f32.mrf.mxu0
  %v1097 = vadd.f32 0.0, %v1096
  %1098 = vmatmul.f32.gmra.mxu0 %v1071
  %v1099 = vpop.f32.mrf.mxu0
  %v1100 = vadd.f32 0.0, %v1099
  %1101 = vdwg.mxu0
  %1106 = vrot.lane.b32.xlu0 %v655, 8
  %v1107 = vpop.permute.xlu0 %1106
  %1108 = vrot.lane.b32.xlu0 %v658, 8
  %v1109 = vpop.permute.xlu0 %1108
  %1110 = vrot.lane.b32.xlu0 %v661, 8
  %v1111 = vpop.permute.xlu0 %1110
  %1112 = vrot.lane.b32.xlu0 %v664, 8
  %v1113 = vpop.permute.xlu0 %1112
  %1122 = vrot.lane.b32.xlu0 %v873, 16
  %v1123 = vpop.permute.xlu0 %1122
  %1124 = vrot.lane.b32.xlu0 %v876, 16
  %v1125 = vpop.permute.xlu0 %1124
  %1126 = vrot.lane.b32.xlu0 %v879, 16
  %v1127 = vpop.permute.xlu0 %1126
  %1128 = vrot.lane.b32.xlu0 %v882, 16
  %v1129 = vpop.permute.xlu0 %1128
  %1138 = vrot.lane.b32.xlu0 %v1091, 24
  %v1139 = vpop.permute.xlu0 %1138
  %1140 = vrot.lane.b32.xlu0 %v1094, 24
  %v1141 = vpop.permute.xlu0 %1140
  %1142 = vrot.lane.b32.xlu0 %v1097, 24
  %v1143 = vpop.permute.xlu0 %1142
  %1144 = vrot.lane.b32.xlu0 %v1100, 24
  %v1145 = vpop.permute.xlu0 %1144
  %v1150 = vsel %vm245, %v437, %v1107
  %v1151 = vsel %vm245, %v440, %v1109
  %v1152 = vsel %vm245, %v443, %v1111
  %v1153 = vsel %vm245, %v446, %v1113
  %vm1154 = vcmask 130048
  %v1155 = vsel %vm1154, %v1150, %v1123
  %v1156 = vsel %vm1154, %v1151, %v1125
  %v1157 = vsel %vm1154, %v1152, %v1127
  %v1158 = vsel %vm1154, %v1153, %v1129
  %vm1159 = vcmask 195584
  %v1160 = vsel %vm1159, %v1155, %v1139
  %v1161 = vsel %vm1159, %v1156, %v1141
  %v1162 = vsel %vm1159, %v1157, %v1143
  %v1163 = vsel %vm1159, %v1158, %v1145
  %v1164 = vld [vmem:[%s1 + $0x148] sm:$0xff]
  %v1165 = vld [vmem:[%s1 + $0x150] sm:$0xff]
  %v1166 = vld [vmem:[%s1 + $0x158] sm:$0xff]
  %v1167 = vld [vmem:[%s1 + $0x160] sm:$0xff]
  %v1168 = vld [vmem:[%s1 + $0x168] sm:$0x1]
  %v1169 = vperm.slane %v1168, 0
  %v1171 = vsel %vm80, %v1160, 0
  %v1174 = vsel %vm80, %v1161, 0
  %v1177 = vsel %vm80, %v1162, 0
  %v1180 = vsel %vm80, %v1163, 0
  %1182 = vmatpush.msra.mxu0 0.0
  %1183 = vmatpush.msra.mxu0 0.0
  %1184 = vmatpush.msra.mxu0 0.0
  %1185 = vmatpush.msra.mxu0 0.0
  %1186 = vmatpush.msra.mxu0 0.0
  %1187 = vmatpush.msra.mxu0 0.0
  %1188 = vmatpush.msra.mxu0 0.0
  %1189 = vmatpush.msra.mxu0 0.0
  %1190 = vmatpush.msra.mxu0 0.0
  %1191 = vmatpush.msra.mxu0 0.0
  %1192 = vmatpush.msra.mxu0 0.0
  %1193 = vmatpush.msra.mxu0 0.0
  %1194 = vmatpush.msra.mxu0 %v1167
  %1195 = vmatpush.msra.mxu0 %v1166
  %1196 = vmatpush.msra.mxu0 %v1165
  %1197 = vmatpush.msra.mxu0 %v1164
  %1198 = vmatmul.f32.gmra.mxu0 %v1171
  %v1199 = vpop.f32.mrf.mxu0
  %v1200 = vadd.f32 %v1169, %v1199
  %1201 = vmatmul.f32.gmra.mxu0 %v1174
  %v1202 = vpop.f32.mrf.mxu0
  %v1203 = vadd.f32 %v1169, %v1202
  %1204 = vmatmul.f32.gmra.mxu0 %v1177
  %v1205 = vpop.f32.mrf.mxu0
  %v1206 = vadd.f32 %v1169, %v1205
  %1207 = vmatmul.f32.gmra.mxu0 %v1180
  %v1208 = vpop.f32.mrf.mxu0
  %v1209 = vadd.f32 %v1169, %v1208
  %1210 = vdwg.mxu0
  %v1212 = vsel %vm80, %v74, 0
  %v1215 = vsel %vm80, %v75, 0
  %v1218 = vsel %vm80, %v76, 0
  %v1221 = vsel %vm80, %v77, 0
  %1223 = vmatpush.msra.mxu0 0.0
  %1224 = vmatpush.msra.mxu0 0.0
  %1225 = vmatpush.msra.mxu0 0.0
  %1226 = vmatpush.msra.mxu0 0.0
  %1227 = vmatpush.msra.mxu0 0.0
  %1228 = vmatpush.msra.mxu0 0.0
  %1229 = vmatpush.msra.mxu0 0.0
  %1230 = vmatpush.msra.mxu0 0.0
  %1231 = vmatpush.msra.mxu0 0.0
  %1232 = vmatpush.msra.mxu0 0.0
  %1233 = vmatpush.msra.mxu0 0.0
  %1234 = vmatpush.msra.mxu0 0.0
  %1235 = vmatpush.msra.mxu0 %v1209
  %1236 = vmatpush.msra.mxu0 %v1206
  %1237 = vmatpush.msra.mxu0 %v1203
  %1238 = vmatpush.msra.mxu0 %v1200
  %1239 = vmatmul.f32.gmra.mxu0 %v1212
  %v1240 = vpop.f32.mrf.mxu0
  %v1241 = vadd.f32 0.0, %v1240
  %1242 = vmatmul.f32.gmra.mxu0 %v1215
  %v1243 = vpop.f32.mrf.mxu0
  %v1244 = vadd.f32 0.0, %v1243
  %1245 = vmatmul.f32.gmra.mxu0 %v1218
  %v1246 = vpop.f32.mrf.mxu0
  %v1247 = vadd.f32 0.0, %v1246
  %1248 = vmatmul.f32.gmra.mxu0 %v1221
  %v1249 = vpop.f32.mrf.mxu0
  %v1250 = vadd.f32 0.0, %v1249
  %1251 = vdwg.mxu0
  %v1252 = vadd.f32 %v66, %v1241
  %v1253 = vadd.f32 %v67, %v1244
  %v1254 = vadd.f32 %v68, %v1247
  %v1255 = vadd.f32 %v69, %v1250
  %v1256 = vld [vmem:[%s1 + $0x170] sm:$0x1]
  %v1257 = vld [vmem:[%s1 + $0x178] sm:$0x1]
  %v1258 = vsel %vm80, %v1252, 0.0
  %1259 = vadd.xlane.f32.xlu0 %v1258
  %v1260 = vpop.xlane.xlu0 %1259
  %v1261 = vsel %vm80, %v1253, 0.0
  %1262 = vadd.xlane.f32.xlu0 %v1261
  %v1263 = vpop.xlane.xlu0 %1262
  %v1264 = vsel %vm80, %v1254, 0.0
  %1265 = vadd.xlane.f32.xlu0 %v1264
  %v1266 = vpop.xlane.xlu0 %1265
  %v1267 = vsel %vm80, %v1255, 0.0
  %1268 = vadd.xlane.f32.xlu0 %v1267
  %v1269 = vpop.xlane.xlu0 %1268
  %v1270 = vmul.f32 %v1260, %v99
  %v1271 = vmul.f32 %v1263, %v99
  %v1272 = vmul.f32 %v1266, %v99
  %v1273 = vmul.f32 %v1269, %v99
  %v1274 = vsub.f32 %v1252, %v1270
  %v1275 = vsub.f32 %v1253, %v1271
  %v1276 = vsub.f32 %v1254, %v1272
  %v1277 = vsub.f32 %v1255, %v1273
  %v1278 = vmul.f32 %v1274, %v1274
  %v1279 = vmul.f32 %v1275, %v1275
  %v1280 = vmul.f32 %v1276, %v1276
  %v1281 = vmul.f32 %v1277, %v1277
  %v1282 = vsel %vm80, %v1278, 0.0
  %1283 = vadd.xlane.f32.xlu0 %v1282
  %v1284 = vpop.xlane.xlu0 %1283
  %v1285 = vsel %vm80, %v1279, 0.0
  %1286 = vadd.xlane.f32.xlu0 %v1285
  %v1287 = vpop.xlane.xlu0 %1286
  %v1288 = vsel %vm80, %v1280, 0.0
  %1289 = vadd.xlane.f32.xlu0 %v1288
  %v1290 = vpop.xlane.xlu0 %1289
  %v1291 = vsel %vm80, %v1281, 0.0
  %1292 = vadd.xlane.f32.xlu0 %v1291
  %v1293 = vpop.xlane.xlu0 %1292
  %v1294 = vmul.f32 %v1284, %v99
  %v1295 = vmul.f32 %v1287, %v99
  %v1296 = vmul.f32 %v1290, %v99
  %v1297 = vmul.f32 %v1293, %v99
  %v1298 = vadd.f32 %v1294, 1e-05
  %v1299 = vadd.f32 %v1295, 1e-05
  %v1300 = vadd.f32 %v1296, 1e-05
  %v1301 = vadd.f32 %v1297, 1e-05
  %v1302 = vrsqrt.pop %v1298
  %v1303 = vmul.f32 %v1302, %v1298
  %v1304 = vmul.f32 %v1303, %v1302
  %v1305 = vmul.f32 0.5, %v1304
  %v1306 = vsub.f32 1.5, %v1305
  %v1307 = vmul.f32 %v1302, %v1306
  %vm1308 = vweird.f32 %v1298
  %vm1309 = vweird.f32 %v1302
  %vm1310 = vmor %vm1308, %vm1309
  %v1311 = vsel %vm1310, %v1302, %v1307
  %v1312 = vrsqrt.pop %v1299
  %v1313 = vmul.f32 %v1312, %v1299
  %v1314 = vmul.f32 %v1313, %v1312
  %v1315 = vmul.f32 0.5, %v1314
  %v1316 = vsub.f32 1.5, %v1315
  %v1317 = vmul.f32 %v1312, %v1316
  %vm1318 = vweird.f32 %v1299
  %vm1319 = vweird.f32 %v1312
  %vm1320 = vmor %vm1318, %vm1319
  %v1321 = vsel %vm1320, %v1312, %v1317
  %v1322 = vrsqrt.pop %v1300
  %v1323 = vmul.f32 %v1322, %v1300
  %v1324 = vmul.f32 %v1323, %v1322
  %v1325 = vmul.f32 0.5, %v1324
  %v1326 = vsub.f32 1.5, %v1325
  %v1327 = vmul.f32 %v1322, %v1326
  %vm1328 = vweird.f32 %v1300
  %vm1329 = vweird.f32 %v1322
  %vm1330 = vmor %vm1328, %vm1329
  %v1331 = vsel %vm1330, %v1322, %v1327
  %v1332 = vrsqrt.pop %v1301
  %v1333 = vmul.f32 %v1332, %v1301
  %v1334 = vmul.f32 %v1333, %v1332
  %v1335 = vmul.f32 0.5, %v1334
  %v1336 = vsub.f32 1.5, %v1335
  %v1337 = vmul.f32 %v1332, %v1336
  %vm1338 = vweird.f32 %v1301
  %vm1339 = vweird.f32 %v1332
  %vm1340 = vmor %vm1338, %vm1339
  %v1341 = vsel %vm1340, %v1332, %v1337
  %v1342 = vmul.f32 %v1274, %v1311
  %v1343 = vmul.f32 %v1275, %v1321
  %v1344 = vmul.f32 %v1276, %v1331
  %v1345 = vmul.f32 %v1277, %v1341
  %v1346 = vperm.slane %v1256, 0
  %v1347 = vmul.f32 %v1342, %v1346
  %v1348 = vmul.f32 %v1343, %v1346
  %v1349 = vmul.f32 %v1344, %v1346
  %v1350 = vmul.f32 %v1345, %v1346
  %v1351 = vperm.slane %v1257, 0
  %v1352 = vadd.f32 %v1347, %v1351
  %v1353 = vadd.f32 %v1348, %v1351
  %v1354 = vadd.f32 %v1349, %v1351
  %v1355 = vadd.f32 %v1350, %v1351
  %v1356 = vld [vmem:[%s1 + $0x180] sm:$0xff]
  %v1357 = vld [vmem:[%s1 + $0x188] sm:$0xff]
  %v1358 = vld [vmem:[%s1 + $0x190] sm:$0xff]
  %v1359 = vld [vmem:[%s1 + $0x198] sm:$0xff]
  %v1360 = vld [vmem:[%s1 + $0x1a0] sm:$0x1]
  %v1361 = vperm.slane %v1360, 0
  %v1363 = vsel %vm80, %v1352, 0
  %v1366 = vsel %vm80, %v1353, 0
  %v1369 = vsel %vm80, %v1354, 0
  %v1372 = vsel %vm80, %v1355, 0
  %1374 = vmatpush.msra.mxu0 0.0
  %1375 = vmatpush.msra.mxu0 0.0
  %1376 = vmatpush.msra.mxu0 0.0
  %1377 = vmatpush.msra.mxu0 0.0
  %1378 = vmatpush.msra.mxu0 0.0
  %1379 = vmatpush.msra.mxu0 0.0
  %1380 = vmatpush.msra.mxu0 0.0
  %1381 = vmatpush.msra.mxu0 0.0
  %1382 = vmatpush.msra.mxu0 0.0
  %1383 = vmatpush.msra.mxu0 0.0
  %1384 = vmatpush.msra.mxu0 0.0
  %1385 = vmatpush.msra.mxu0 0.0
  %1386 = vmatpush.msra.mxu0 %v1359
  %1387 = vmatpush.msra.mxu0 %v1358
  %1388 = vmatpush.msra.mxu0 %v1357
  %1389 = vmatpush.msra.mxu0 %v1356
  %1390 = vmatmul.f32.gmra.mxu0 %v1363
  %v1391 = vpop.f32.mrf.mxu0
  %v1392 = vadd.f32 %v1361, %v1391
  %1393 = vmatmul.f32.gmra.mxu0 %v1366
  %v1394 = vpop.f32.mrf.mxu0
  %v1395 = vadd.f32 %v1361, %v1394
  %1396 = vmatmul.f32.gmra.mxu0 %v1369
  %v1397 = vpop.f32.mrf.mxu0
  %v1398 = vadd.f32 %v1361, %v1397
  %1399 = vmatmul.f32.gmra.mxu0 %v1372
  %v1400 = vpop.f32.mrf.mxu0
  %v1401 = vadd.f32 %v1361, %v1400
  %1402 = vdwg.mxu0
  %v1403 = vmul.f32 %v1392, 0.5
  %v1404 = vmul.f32 %v1395, 0.5
  %v1405 = vmul.f32 %v1398, 0.5
  %v1406 = vmul.f32 %v1401, 0.5
  %v1407 = vmul.f32 %v1392, 0.70710677
  %v1408 = vmul.f32 %v1395, 0.70710677
  %v1409 = vmul.f32 %v1398, 0.70710677
  %v1410 = vmul.f32 %v1401, 0.70710677
  %v1411 = vmul.f32 %v1407, %v1407
  %v1412 = vmin.f32 16.0, %v1411
  %v1413 = vmul.f32 %v1412, 2.1237322e-06
  %v1414 = vadd.f32 %v1413, 0.00028619796
  %v1415 = vmul.f32 %v1412, %v1414
  %v1416 = vadd.f32 %v1415, 0.0036580483
  %v1417 = vmul.f32 %v1412, %v1416
  %v1418 = vadd.f32 %v1417, 0.05243302
  %v1419 = vmul.f32 %v1412, %v1418
  %v1420 = vadd.f32 %v1419, 0.18741608
  %v1421 = vmul.f32 %v1412, %v1420
  %v1422 = vadd.f32 %v1421, 1.1283791
  %v1423 = vmul.f32 %v1407, %v1422
  %v1424 = vmul.f32 %v1412, 3.8918573e-05
  %v1425 = vadd.f32 %v1424, 0.001143296
  %v1426 = vmul.f32 %v1412, %v1425
  %v1427 = vadd.f32 %v1426, 0.014752088
  %v1428 = vmul.f32 %v1412, %v1427
  %v1429 = vadd.f32 %v1428, 0.112945676
  %v1430 = vmul.f32 %v1412, %v1429
  %v1431 = vadd.f32 %v1430, 0.4994258
  %v1432 = vmul.f32 %v1412, %v1431
  %v1433 = vadd.f32 %v1432, 1.0
  %v1434 = vrcp.pop %v1433
  %v1435 = vmul.f32 %v1433, %v1434
  %v1436 = vsub.f32 1.0, %v1435
  %v1437 = vmul.f32 %v1434, %v1436
  %v1438 = vadd.f32 %v1434, %v1437
  %vm1439 = vweird.f32 %v1433
  %vm1440 = vweird.f32 %v1434
  %vm1441 = vmor %vm1439, %vm1440
  %v1442 = vsel %vm1441, %v1434, %v1438
  %v1443 = vand.u32 2147483647, %v1433
  %vm1444 = vcmp.eq.f32.partialorder %v1443, 8.507059e+37
  %v1445 = vand.u32 %v1433, 2147483648
  %v1446 = vor.u32 1.1754944e-38, %v1445
  %v1447 = vsel %vm1444, %v1446, %v1442
  %v1448 = vmul.f32 %v1423, %v1447
  %v1449 = vmin.f32 %v1448, 1.0
  %v1450 = vmax.f32 %v1449, -1.0
  %v1451 = vmul.f32 %v1408, %v1408
  %v1452 = vmin.f32 16.0, %v1451
  %v1453 = vmul.f32 %v1452, 2.1237322e-06
  %v1454 = vadd.f32 %v1453, 0.00028619796
  %v1455 = vmul.f32 %v1452, %v1454
  %v1456 = vadd.f32 %v1455, 0.0036580483
  %v1457 = vmul.f32 %v1452, %v1456
  %v1458 = vadd.f32 %v1457, 0.05243302
  %v1459 = vmul.f32 %v1452, %v1458
  %v1460 = vadd.f32 %v1459, 0.18741608
  %v1461 = vmul.f32 %v1452, %v1460
  %v1462 = vadd.f32 %v1461, 1.1283791
  %v1463 = vmul.f32 %v1408, %v1462
  %v1464 = vmul.f32 %v1452, 3.8918573e-05
  %v1465 = vadd.f32 %v1464, 0.001143296
  %v1466 = vmul.f32 %v1452, %v1465
  %v1467 = vadd.f32 %v1466, 0.014752088
  %v1468 = vmul.f32 %v1452, %v1467
  %v1469 = vadd.f32 %v1468, 0.112945676
  %v1470 = vmul.f32 %v1452, %v1469
  %v1471 = vadd.f32 %v1470, 0.4994258
  %v1472 = vmul.f32 %v1452, %v1471
  %v1473 = vadd.f32 %v1472, 1.0
  %v1474 = vrcp.pop %v1473
  %v1475 = vmul.f32 %v1473, %v1474
  %v1476 = vsub.f32 1.0, %v1475
  %v1477 = vmul.f32 %v1474, %v1476
  %v1478 = vadd.f32 %v1474, %v1477
  %vm1479 = vweird.f32 %v1473
  %vm1480 = vweird.f32 %v1474
  %vm1481 = vmor %vm1479, %vm1480
  %v1482 = vsel %vm1481, %v1474, %v1478
  %v1483 = vand.u32 2147483647, %v1473
  %vm1484 = vcmp.eq.f32.partialorder %v1483, 8.507059e+37
  %v1485 = vand.u32 %v1473, 2147483648
  %v1486 = vor.u32 1.1754944e-38, %v1485
  %v1487 = vsel %vm1484, %v1486, %v1482
  %v1488 = vmul.f32 %v1463, %v1487
  %v1489 = vmin.f32 %v1488, 1.0
  %v1490 = vmax.f32 %v1489, -1.0
  %v1491 = vmul.f32 %v1409, %v1409
  %v1492 = vmin.f32 16.0, %v1491
  %v1493 = vmul.f32 %v1492, 2.1237322e-06
  %v1494 = vadd.f32 %v1493, 0.00028619796
  %v1495 = vmul.f32 %v1492, %v1494
  %v1496 = vadd.f32 %v1495, 0.0036580483
  %v1497 = vmul.f32 %v1492, %v1496
  %v1498 = vadd.f32 %v1497, 0.05243302
  %v1499 = vmul.f32 %v1492, %v1498
  %v1500 = vadd.f32 %v1499, 0.18741608
  %v1501 = vmul.f32 %v1492, %v1500
  %v1502 = vadd.f32 %v1501, 1.1283791
  %v1503 = vmul.f32 %v1409, %v1502
  %v1504 = vmul.f32 %v1492, 3.8918573e-05
  %v1505 = vadd.f32 %v1504, 0.001143296
  %v1506 = vmul.f32 %v1492, %v1505
  %v1507 = vadd.f32 %v1506, 0.014752088
  %v1508 = vmul.f32 %v1492, %v1507
  %v1509 = vadd.f32 %v1508, 0.112945676
  %v1510 = vmul.f32 %v1492, %v1509
  %v1511 = vadd.f32 %v1510, 0.4994258
  %v1512 = vmul.f32 %v1492, %v1511
  %v1513 = vadd.f32 %v1512, 1.0
  %v1514 = vrcp.pop %v1513
  %v1515 = vmul.f32 %v1513, %v1514
  %v1516 = vsub.f32 1.0, %v1515
  %v1517 = vmul.f32 %v1514, %v1516
  %v1518 = vadd.f32 %v1514, %v1517
  %vm1519 = vweird.f32 %v1513
  %vm1520 = vweird.f32 %v1514
  %vm1521 = vmor %vm1519, %vm1520
  %v1522 = vsel %vm1521, %v1514, %v1518
  %v1523 = vand.u32 2147483647, %v1513
  %vm1524 = vcmp.eq.f32.partialorder %v1523, 8.507059e+37
  %v1525 = vand.u32 %v1513, 2147483648
  %v1526 = vor.u32 1.1754944e-38, %v1525
  %v1527 = vsel %vm1524, %v1526, %v1522
  %v1528 = vmul.f32 %v1503, %v1527
  %v1529 = vmin.f32 %v1528, 1.0
  %v1530 = vmax.f32 %v1529, -1.0
  %v1531 = vmul.f32 %v1410, %v1410
  %v1532 = vmin.f32 16.0, %v1531
  %v1533 = vmul.f32 %v1532, 2.1237322e-06
  %v1534 = vadd.f32 %v1533, 0.00028619796
  %v1535 = vmul.f32 %v1532, %v1534
  %v1536 = vadd.f32 %v1535, 0.0036580483
  %v1537 = vmul.f32 %v1532, %v1536
  %v1538 = vadd.f32 %v1537, 0.05243302
  %v1539 = vmul.f32 %v1532, %v1538
  %v1540 = vadd.f32 %v1539, 0.18741608
  %v1541 = vmul.f32 %v1532, %v1540
  %v1542 = vadd.f32 %v1541, 1.1283791
  %v1543 = vmul.f32 %v1410, %v1542
  %v1544 = vmul.f32 %v1532, 3.8918573e-05
  %v1545 = vadd.f32 %v1544, 0.001143296
  %v1546 = vmul.f32 %v1532, %v1545
  %v1547 = vadd.f32 %v1546, 0.014752088
  %v1548 = vmul.f32 %v1532, %v1547
  %v1549 = vadd.f32 %v1548, 0.112945676
  %v1550 = vmul.f32 %v1532, %v1549
  %v1551 = vadd.f32 %v1550, 0.4994258
  %v1552 = vmul.f32 %v1532, %v1551
  %v1553 = vadd.f32 %v1552, 1.0
  %v1554 = vrcp.pop %v1553
  %v1555 = vmul.f32 %v1553, %v1554
  %v1556 = vsub.f32 1.0, %v1555
  %v1557 = vmul.f32 %v1554, %v1556
  %v1558 = vadd.f32 %v1554, %v1557
  %vm1559 = vweird.f32 %v1553
  %vm1560 = vweird.f32 %v1554
  %vm1561 = vmor %vm1559, %vm1560
  %v1562 = vsel %vm1561, %v1554, %v1558
  %v1563 = vand.u32 2147483647, %v1553
  %vm1564 = vcmp.eq.f32.partialorder %v1563, 8.507059e+37
  %v1565 = vand.u32 %v1553, 2147483648
  %v1566 = vor.u32 1.1754944e-38, %v1565
  %v1567 = vsel %vm1564, %v1566, %v1562
  %v1568 = vmul.f32 %v1543, %v1567
  %v1569 = vmin.f32 %v1568, 1.0
  %v1570 = vmax.f32 %v1569, -1.0
  %v1571 = vadd.f32 %v1450, 1.0
  %v1572 = vadd.f32 %v1490, 1.0
  %v1573 = vadd.f32 %v1530, 1.0
  %v1574 = vadd.f32 %v1570, 1.0
  %v1575 = vmul.f32 %v1403, %v1571
  %v1576 = vmul.f32 %v1404, %v1572
  %v1577 = vmul.f32 %v1405, %v1573
  %v1578 = vmul.f32 %v1406, %v1574
  %v1579 = vld [vmem:[%s1 + $0x1a8] sm:$0xff]
  %v1580 = vld [vmem:[%s1 + $0x1b0] sm:$0xff]
  %v1581 = vld [vmem:[%s1 + $0x1b8] sm:$0xff]
  %v1582 = vld [vmem:[%s1 + $0x1c0] sm:$0xff]
  %v1583 = vld [vmem:[%s1 + $0x1c8] sm:$0xff]
  %v1584 = vld [vmem:[%s1 + $0x1d0] sm:$0xff]
  %v1585 = vld [vmem:[%s1 + $0x1d8] sm:$0xff]
  %v1586 = vld [vmem:[%s1 + $0x1e0] sm:$0xff]
  %v1587 = vld [vmem:[%s1 + $0x1e8] sm:$0xff]
  %v1588 = vld [vmem:[%s1 + $0x1f0] sm:$0xff]
  %v1589 = vld [vmem:[%s1 + $0x1f8] sm:$0xff]
  %v1590 = vld [vmem:[%s1 + $0x200] sm:$0xff]
  %v1591 = vld [vmem:[%s1 + $0x208] sm:$0xff]
  %v1592 = vld [vmem:[%s1 + $0x210] sm:$0xff]
  %v1593 = vld [vmem:[%s1 + $0x218] sm:$0xff]
  %v1594 = vld [vmem:[%s1 + $0x220] sm:$0xff]
  %v1595 = vld [vmem:[%s1 + $0x228] sm:$0x1]
  %v1596 = vperm.slane %v1595, 0
  %1597 = vmatpush.msra.mxu0 %v1594
  %1598 = vmatpush.msra.mxu0 %v1593
  %1599 = vmatpush.msra.mxu0 %v1592
  %1600 = vmatpush.msra.mxu0 %v1591
  %1601 = vmatpush.msra.mxu0 %v1590
  %1602 = vmatpush.msra.mxu0 %v1589
  %1603 = vmatpush.msra.mxu0 %v1588
  %1604 = vmatpush.msra.mxu0 %v1587
  %1605 = vmatpush.msra.mxu0 %v1586
  %1606 = vmatpush.msra.mxu0 %v1585
  %1607 = vmatpush.msra.mxu0 %v1584
  %1608 = vmatpush.msra.mxu0 %v1583
  %1609 = vmatpush.msra.mxu0 %v1582
  %1610 = vmatpush.msra.mxu0 %v1581
  %1611 = vmatpush.msra.mxu0 %v1580
  %1612 = vmatpush.msra.mxu0 %v1579
  %1613 = vmatmul.f32.gmra.mxu0 %v1575
  %v1614 = vpop.f32.mrf.mxu0
  %v1615 = vadd.f32 %v1596, %v1614
  %1616 = vmatmul.f32.gmra.mxu0 %v1576
  %v1617 = vpop.f32.mrf.mxu0
  %v1618 = vadd.f32 %v1596, %v1617
  %1619 = vmatmul.f32.gmra.mxu0 %v1577
  %v1620 = vpop.f32.mrf.mxu0
  %v1621 = vadd.f32 %v1596, %v1620
  %1622 = vmatmul.f32.gmra.mxu0 %v1578
  %v1623 = vpop.f32.mrf.mxu0
  %v1624 = vadd.f32 %v1596, %v1623
  %1625 = vdwg.mxu0
  %v1626 = vadd.f32 %v1252, %v1615
  %v1627 = vadd.f32 %v1253, %v1618
  %v1628 = vadd.f32 %v1254, %v1621
  %v1629 = vadd.f32 %v1255, %v1624
  %v1630 = vld [vmem:[%s1 + $0x230] sm:$0x1]
  %v1631 = vld [vmem:[%s1 + $0x238] sm:$0x1]
  %v1632 = vsel %vm80, %v1626, 0.0
  %1633 = vadd.xlane.f32.xlu0 %v1632
  %v1634 = vpop.xlane.xlu0 %1633
  %v1635 = vsel %vm80, %v1627, 0.0
  %1636 = vadd.xlane.f32.xlu0 %v1635
  %v1637 = vpop.xlane.xlu0 %1636
  %v1638 = vsel %vm80, %v1628, 0.0
  %1639 = vadd.xlane.f32.xlu0 %v1638
  %v1640 = vpop.xlane.xlu0 %1639
  %v1641 = vsel %vm80, %v1629, 0.0
  %1642 = vadd.xlane.f32.xlu0 %v1641
  %v1643 = vpop.xlane.xlu0 %1642
  %v1644 = vmul.f32 %v1634, %v99
  %v1645 = vmul.f32 %v1637, %v99
  %v1646 = vmul.f32 %v1640, %v99
  %v1647 = vmul.f32 %v1643, %v99
  %v1648 = vsub.f32 %v1626, %v1644
  %v1649 = vsub.f32 %v1627, %v1645
  %v1650 = vsub.f32 %v1628, %v1646
  %v1651 = vsub.f32 %v1629, %v1647
  %v1652 = vmul.f32 %v1648, %v1648
  %v1653 = vmul.f32 %v1649, %v1649
  %v1654 = vmul.f32 %v1650, %v1650
  %v1655 = vmul.f32 %v1651, %v1651
  %v1656 = vsel %vm80, %v1652, 0.0
  %1657 = vadd.xlane.f32.xlu0 %v1656
  %v1658 = vpop.xlane.xlu0 %1657
  %v1659 = vsel %vm80, %v1653, 0.0
  %1660 = vadd.xlane.f32.xlu0 %v1659
  %v1661 = vpop.xlane.xlu0 %1660
  %v1662 = vsel %vm80, %v1654, 0.0
  %1663 = vadd.xlane.f32.xlu0 %v1662
  %v1664 = vpop.xlane.xlu0 %1663
  %v1665 = vsel %vm80, %v1655, 0.0
  %1666 = vadd.xlane.f32.xlu0 %v1665
  %v1667 = vpop.xlane.xlu0 %1666
  %v1668 = vmul.f32 %v1658, %v99
  %v1669 = vmul.f32 %v1661, %v99
  %v1670 = vmul.f32 %v1664, %v99
  %v1671 = vmul.f32 %v1667, %v99
  %v1672 = vadd.f32 %v1668, 1e-05
  %v1673 = vadd.f32 %v1669, 1e-05
  %v1674 = vadd.f32 %v1670, 1e-05
  %v1675 = vadd.f32 %v1671, 1e-05
  %v1676 = vrsqrt.pop %v1672
  %v1677 = vmul.f32 %v1676, %v1672
  %v1678 = vmul.f32 %v1677, %v1676
  %v1679 = vmul.f32 0.5, %v1678
  %v1680 = vsub.f32 1.5, %v1679
  %v1681 = vmul.f32 %v1676, %v1680
  %vm1682 = vweird.f32 %v1672
  %vm1683 = vweird.f32 %v1676
  %vm1684 = vmor %vm1682, %vm1683
  %v1685 = vsel %vm1684, %v1676, %v1681
  %v1686 = vrsqrt.pop %v1673
  %v1687 = vmul.f32 %v1686, %v1673
  %v1688 = vmul.f32 %v1687, %v1686
  %v1689 = vmul.f32 0.5, %v1688
  %v1690 = vsub.f32 1.5, %v1689
  %v1691 = vmul.f32 %v1686, %v1690
  %vm1692 = vweird.f32 %v1673
  %vm1693 = vweird.f32 %v1686
  %vm1694 = vmor %vm1692, %vm1693
  %v1695 = vsel %vm1694, %v1686, %v1691
  %v1696 = vrsqrt.pop %v1674
  %v1697 = vmul.f32 %v1696, %v1674
  %v1698 = vmul.f32 %v1697, %v1696
  %v1699 = vmul.f32 0.5, %v1698
  %v1700 = vsub.f32 1.5, %v1699
  %v1701 = vmul.f32 %v1696, %v1700
  %vm1702 = vweird.f32 %v1674
  %vm1703 = vweird.f32 %v1696
  %vm1704 = vmor %vm1702, %vm1703
  %v1705 = vsel %vm1704, %v1696, %v1701
  %v1706 = vrsqrt.pop %v1675
  %v1707 = vmul.f32 %v1706, %v1675
  %v1708 = vmul.f32 %v1707, %v1706
  %v1709 = vmul.f32 0.5, %v1708
  %v1710 = vsub.f32 1.5, %v1709
  %v1711 = vmul.f32 %v1706, %v1710
  %vm1712 = vweird.f32 %v1675
  %vm1713 = vweird.f32 %v1706
  %vm1714 = vmor %vm1712, %vm1713
  %v1715 = vsel %vm1714, %v1706, %v1711
  %v1716 = vmul.f32 %v1648, %v1685
  %v1717 = vmul.f32 %v1649, %v1695
  %v1718 = vmul.f32 %v1650, %v1705
  %v1719 = vmul.f32 %v1651, %v1715
  %v1720 = vperm.slane %v1630, 0
  %v1721 = vmul.f32 %v1716, %v1720
  %v1722 = vmul.f32 %v1717, %v1720
  %v1723 = vmul.f32 %v1718, %v1720
  %v1724 = vmul.f32 %v1719, %v1720
  %v1725 = vperm.slane %v1631, 0
  %v1726 = vadd.f32 %v1721, %v1725
  %v1727 = vadd.f32 %v1722, %v1725
  %v1728 = vadd.f32 %v1723, %v1725
  %v1729 = vadd.f32 %v1724, %v1725
  %v1730 = vld [vmem:[%s1 + $0x240] sm:$0xff]
  %v1731 = vld [vmem:[%s1 + $0x248] sm:$0xff]
  %v1732 = vld [vmem:[%s1 + $0x250] sm:$0xff]
  %v1733 = vld [vmem:[%s1 + $0x258] sm:$0xff]
  %v1734 = vld [vmem:[%s1 + $0x260] sm:$0x1]
  %v1735 = vperm.slane %v1734, 0
  %v1737 = vsel %vm80, %v1726, 0
  %v1740 = vsel %vm80, %v1727, 0
  %v1743 = vsel %vm80, %v1728, 0
  %v1746 = vsel %vm80, %v1729, 0
  %1748 = vmatpush.msra.mxu0 0.0
  %1749 = vmatpush.msra.mxu0 0.0
  %1750 = vmatpush.msra.mxu0 0.0
  %1751 = vmatpush.msra.mxu0 0.0
  %1752 = vmatpush.msra.mxu0 0.0
  %1753 = vmatpush.msra.mxu0 0.0
  %1754 = vmatpush.msra.mxu0 0.0
  %1755 = vmatpush.msra.mxu0 0.0
  %1756 = vmatpush.msra.mxu0 0.0
  %1757 = vmatpush.msra.mxu0 0.0
  %1758 = vmatpush.msra.mxu0 0.0
  %1759 = vmatpush.msra.mxu0 0.0
  %1760 = vmatpush.msra.mxu0 %v1733
  %1761 = vmatpush.msra.mxu0 %v1732
  %1762 = vmatpush.msra.mxu0 %v1731
  %1763 = vmatpush.msra.mxu0 %v1730
  %1764 = vmatmul.f32.gmra.mxu0 %v1737
  %v1765 = vpop.f32.mrf.mxu0
  %v1766 = vadd.f32 %v1735, %v1765
  %1767 = vmatmul.f32.gmra.mxu0 %v1740
  %v1768 = vpop.f32.mrf.mxu0
  %v1769 = vadd.f32 %v1735, %v1768
  %1770 = vmatmul.f32.gmra.mxu0 %v1743
  %v1771 = vpop.f32.mrf.mxu0
  %v1772 = vadd.f32 %v1735, %v1771
  %1773 = vmatmul.f32.gmra.mxu0 %v1746
  %v1774 = vpop.f32.mrf.mxu0
  %v1775 = vadd.f32 %v1735, %v1774
  %1776 = vdwg.mxu0
  %1781 = vrot.lane.b32.xlu0 %v1766, 96
  %v1782 = vpop.permute.xlu0 %1781
  %1783 = vrot.lane.b32.xlu0 %v1769, 96
  %v1784 = vpop.permute.xlu0 %1783
  %1785 = vrot.lane.b32.xlu0 %v1772, 96
  %v1786 = vpop.permute.xlu0 %1785
  %1787 = vrot.lane.b32.xlu0 %v1775, 96
  %v1788 = vpop.permute.xlu0 %1787
  %v1789 = vsel %vm245, %v1766, 0
  %v1791 = vsel %vm245, %v1769, 0
  %v1793 = vsel %vm245, %v1772, 0
  %v1795 = vsel %vm245, %v1775, 0
  %v1797 = vsel %vm245, %v1782, 0
  %v1799 = vsel %vm245, %v1784, 0
  %v1801 = vsel %vm245, %v1786, 0
  %v1803 = vsel %vm245, %v1788, 0
  %1805 = vmatpush.xpose.msra.mxu0 0.0
  %1806 = vmatpush.xpose.msra.mxu0 0.0
  %1807 = vmatpush.xpose.msra.mxu0 0.0
  %1808 = vmatpush.xpose.msra.mxu0 0.0
  %1809 = vmatpush.xpose.msra.mxu0 0.0
  %1810 = vmatpush.xpose.msra.mxu0 0.0
  %1811 = vmatpush.xpose.msra.mxu0 0.0
  %1812 = vmatpush.xpose.msra.mxu0 0.0
  %1813 = vmatpush.xpose.msra.mxu0 0.0
  %1814 = vmatpush.xpose.msra.mxu0 0.0
  %1815 = vmatpush.xpose.msra.mxu0 0.0
  %1816 = vmatpush.xpose.msra.mxu0 0.0
  %1817 = vmatpush.xpose.msra.mxu0 %v1803
  %1818 = vmatpush.xpose.msra.mxu0 %v1801
  %1819 = vmatpush.xpose.msra.mxu0 %v1799
  %1820 = vmatpush.xpose.msra.mxu0 %v1797
  %1821 = vmatmul.f32.gmra.mxu0 %v1789
  %v1822 = vpop.f32.mrf.mxu0
  %v1823 = vadd.f32 0.0, %v1822
  %1824 = vmatmul.f32.gmra.mxu0 %v1791
  %v1825 = vpop.f32.mrf.mxu0
  %v1826 = vadd.f32 0.0, %v1825
  %1827 = vmatmul.f32.gmra.mxu0 %v1793
  %v1828 = vpop.f32.mrf.mxu0
  %v1829 = vadd.f32 0.0, %v1828
  %1830 = vmatmul.f32.gmra.mxu0 %v1795
  %v1831 = vpop.f32.mrf.mxu0
  %v1832 = vadd.f32 0.0, %v1831
  %1833 = vdwg.mxu0
  %v1834 = vmul.f32 %v1823, 0.35355338
  %v1835 = vmul.f32 %v1826, 0.35355338
  %v1836 = vmul.f32 %v1829, 0.35355338
  %v1837 = vmul.f32 %v1832, 0.35355338
  %v1838 = vadd.f32 %v1834, %v70
  %v1839 = vadd.f32 %v1835, %v71
  %v1840 = vadd.f32 %v1836, %v72
  %v1841 = vadd.f32 %v1837, %v73
  %v1842 = vsel %vm80, %v1838, -inf
  %1843 = vmax.xlane.f32.xlu0 %v1842
  %v1844 = vpop.xlane.xlu0 %1843
  %v1845 = vsel %vm80, %v1839, -inf
  %1846 = vmax.xlane.f32.xlu0 %v1845
  %v1847 = vpop.xlane.xlu0 %1846
  %v1848 = vsel %vm80, %v1840, -inf
  %1849 = vmax.xlane.f32.xlu0 %v1848
  %v1850 = vpop.xlane.xlu0 %1849
  %v1851 = vsel %vm80, %v1841, -inf
  %1852 = vmax.xlane.f32.xlu0 %v1851
  %v1853 = vpop.xlane.xlu0 %1852
  %v1854 = vsub.f32 %v1838, %v1844
  %v1855 = vsub.f32 %v1839, %v1847
  %v1856 = vsub.f32 %v1840, %v1850
  %v1857 = vsub.f32 %v1841, %v1853
  %v1858 = vmul.f32 %v1854, 1.442695
  %v1859 = vpow.pop %v1858
  %v1860 = vmul.f32 %v1855, 1.442695
  %v1861 = vpow.pop %v1860
  %v1862 = vmul.f32 %v1856, 1.442695
  %v1863 = vpow.pop %v1862
  %v1864 = vmul.f32 %v1857, 1.442695
  %v1865 = vpow.pop %v1864
  %v1866 = vsel %vm80, %v1859, 0.0
  %1867 = vadd.xlane.f32.xlu0 %v1866
  %v1868 = vpop.xlane.xlu0 %1867
  %v1869 = vsel %vm80, %v1861, 0.0
  %1870 = vadd.xlane.f32.xlu0 %v1869
  %v1871 = vpop.xlane.xlu0 %1870
  %v1872 = vsel %vm80, %v1863, 0.0
  %1873 = vadd.xlane.f32.xlu0 %v1872
  %v1874 = vpop.xlane.xlu0 %1873
  %v1875 = vsel %vm80, %v1865, 0.0
  %1876 = vadd.xlane.f32.xlu0 %v1875
  %v1877 = vpop.xlane.xlu0 %1876
  %v1878 = vrcp.pop %v1868
  %v1879 = vmul.f32 %v1868, %v1878
  %v1880 = vsub.f32 1.0, %v1879
  %v1881 = vmul.f32 %v1878, %v1880
  %v1882 = vadd.f32 %v1878, %v1881
  %vm1883 = vweird.f32 %v1868
  %vm1884 = vweird.f32 %v1878
  %vm1885 = vmor %vm1883, %vm1884
  %v1886 = vsel %vm1885, %v1878, %v1882
  %v1887 = vand.u32 2147483647, %v1868
  %vm1888 = vcmp.eq.f32.partialorder %v1887, 8.507059e+37
  %v1889 = vand.u32 %v1868, 2147483648
  %v1890 = vor.u32 1.1754944e-38, %v1889
  %v1891 = vsel %vm1888, %v1890, %v1886
  %v1892 = vmul.f32 %v1859, %v1891
  %v1893 = vrcp.pop %v1871
  %v1894 = vmul.f32 %v1871, %v1893
  %v1895 = vsub.f32 1.0, %v1894
  %v1896 = vmul.f32 %v1893, %v1895
  %v1897 = vadd.f32 %v1893, %v1896
  %vm1898 = vweird.f32 %v1871
  %vm1899 = vweird.f32 %v1893
  %vm1900 = vmor %vm1898, %vm1899
  %v1901 = vsel %vm1900, %v1893, %v1897
  %v1902 = vand.u32 2147483647, %v1871
  %vm1903 = vcmp.eq.f32.partialorder %v1902, 8.507059e+37
  %v1904 = vand.u32 %v1871, 2147483648
  %v1905 = vor.u32 1.1754944e-38, %v1904
  %v1906 = vsel %vm1903, %v1905, %v1901
  %v1907 = vmul.f32 %v1861, %v1906
  %v1908 = vrcp.pop %v1874
  %v1909 = vmul.f32 %v1874, %v1908
  %v1910 = vsub.f32 1.0, %v1909
  %v1911 = vmul.f32 %v1908, %v1910
  %v1912 = vadd.f32 %v1908, %v1911
  %vm1913 = vweird.f32 %v1874
  %vm1914 = vweird.f32 %v1908
  %vm1915 = vmor %vm1913, %vm1914
  %v1916 = vsel %vm1915, %v1908, %v1912
  %v1917 = vand.u32 2147483647, %v1874
  %vm1918 = vcmp.eq.f32.partialorder %v1917, 8.507059e+37
  %v1919 = vand.u32 %v1874, 2147483648
  %v1920 = vor.u32 1.1754944e-38, %v1919
  %v1921 = vsel %vm1918, %v1920, %v1916
  %v1922 = vmul.f32 %v1863, %v1921
  %v1923 = vrcp.pop %v1877
  %v1924 = vmul.f32 %v1877, %v1923
  %v1925 = vsub.f32 1.0, %v1924
  %v1926 = vmul.f32 %v1923, %v1925
  %v1927 = vadd.f32 %v1923, %v1926
  %vm1928 = vweird.f32 %v1877
  %vm1929 = vweird.f32 %v1923
  %vm1930 = vmor %vm1928, %vm1929
  %v1931 = vsel %vm1930, %v1923, %v1927
  %v1932 = vand.u32 2147483647, %v1877
  %vm1933 = vcmp.eq.f32.partialorder %v1932, 8.507059e+37
  %v1934 = vand.u32 %v1877, 2147483648
  %v1935 = vor.u32 1.1754944e-38, %v1934
  %v1936 = vsel %vm1933, %v1935, %v1931
  %v1937 = vmul.f32 %v1865, %v1936
  %1938 = vrot.lane.b32.xlu0 %v1766, 64
  %v1939 = vpop.permute.xlu0 %1938
  %1940 = vrot.lane.b32.xlu0 %v1769, 64
  %v1941 = vpop.permute.xlu0 %1940
  %1942 = vrot.lane.b32.xlu0 %v1772, 64
  %v1943 = vpop.permute.xlu0 %1942
  %1944 = vrot.lane.b32.xlu0 %v1775, 64
  %v1945 = vpop.permute.xlu0 %1944
  %v1951 = vsel %vm80, %v1892, 0
  %v1954 = vsel %vm80, %v1907, 0
  %v1957 = vsel %vm80, %v1922, 0
  %v1960 = vsel %vm80, %v1937, 0
  %1962 = vmatpush.msra.mxu0 0.0
  %1963 = vmatpush.msra.mxu0 0.0
  %1964 = vmatpush.msra.mxu0 0.0
  %1965 = vmatpush.msra.mxu0 0.0
  %1966 = vmatpush.msra.mxu0 0.0
  %1967 = vmatpush.msra.mxu0 0.0
  %1968 = vmatpush.msra.mxu0 0.0
  %1969 = vmatpush.msra.mxu0 0.0
  %1970 = vmatpush.msra.mxu0 0.0
  %1971 = vmatpush.msra.mxu0 0.0
  %1972 = vmatpush.msra.mxu0 0.0
  %1973 = vmatpush.msra.mxu0 0.0
  %1974 = vmatpush.msra.mxu0 %v1945
  %1975 = vmatpush.msra.mxu0 %v1943
  %1976 = vmatpush.msra.mxu0 %v1941
  %1977 = vmatpush.msra.mxu0 %v1939
  %1978 = vmatmul.f32.gmra.mxu0 %v1951
  %v1979 = vpop.f32.mrf.mxu0
  %v1980 = vadd.f32 0.0, %v1979
  %1981 = vmatmul.f32.gmra.mxu0 %v1954
  %v1982 = vpop.f32.mrf.mxu0
  %v1983 = vadd.f32 0.0, %v1982
  %1984 = vmatmul.f32.gmra.mxu0 %v1957
  %v1985 = vpop.f32.mrf.mxu0
  %v1986 = vadd.f32 0.0, %v1985
  %1987 = vmatmul.f32.gmra.mxu0 %v1960
  %v1988 = vpop.f32.mrf.mxu0
  %v1989 = vadd.f32 0.0, %v1988
  %1990 = vdwg.mxu0
  %1991 = vrot.lane.b32.xlu0 %v1766, 120
  %v1992 = vpop.permute.xlu0 %1991
  %1993 = vrot.lane.b32.xlu0 %v1769, 120
  %v1994 = vpop.permute.xlu0 %1993
  %1995 = vrot.lane.b32.xlu0 %v1772, 120
  %v1996 = vpop.permute.xlu0 %1995
  %1997 = vrot.lane.b32.xlu0 %v1775, 120
  %v1998 = vpop.permute.xlu0 %1997
  %1999 = vrot.lane.b32.xlu0 %v1766, 88
  %v2000 = vpop.permute.xlu0 %1999
  %2001 = vrot.lane.b32.xlu0 %v1769, 88
  %v2002 = vpop.permute.xlu0 %2001
  %2003 = vrot.lane.b32.xlu0 %v1772, 88
  %v2004 = vpop.permute.xlu0 %2003
  %2005 = vrot.lane.b32.xlu0 %v1775, 88
  %v2006 = vpop.permute.xlu0 %2005
  %v2007 = vsel %vm245, %v1992, 0
  %v2009 = vsel %vm245, %v1994, 0
  %v2011 = vsel %vm245, %v1996, 0
  %v2013 = vsel %vm245, %v1998, 0
  %v2015 = vsel %vm245, %v2000, 0
  %v2017 = vsel %vm245, %v2002, 0
  %v2019 = vsel %vm245, %v2004, 0
  %v2021 = vsel %vm245, %v2006, 0
  %2023 = vmatpush.xpose.msra.mxu0 0.0
  %2024 = vmatpush.xpose.msra.mxu0 0.0
  %2025 = vmatpush.xpose.msra.mxu0 0.0
  %2026 = vmatpush.xpose.msra.mxu0 0.0
  %2027 = vmatpush.xpose.msra.mxu0 0.0
  %2028 = vmatpush.xpose.msra.mxu0 0.0
  %2029 = vmatpush.xpose.msra.mxu0 0.0
  %2030 = vmatpush.xpose.msra.mxu0 0.0
  %2031 = vmatpush.xpose.msra.mxu0 0.0
  %2032 = vmatpush.xpose.msra.mxu0 0.0
  %2033 = vmatpush.xpose.msra.mxu0 0.0
  %2034 = vmatpush.xpose.msra.mxu0 0.0
  %2035 = vmatpush.xpose.msra.mxu0 %v2021
  %2036 = vmatpush.xpose.msra.mxu0 %v2019
  %2037 = vmatpush.xpose.msra.mxu0 %v2017
  %2038 = vmatpush.xpose.msra.mxu0 %v2015
  %2039 = vmatmul.f32.gmra.mxu0 %v2007
  %v2040 = vpop.f32.mrf.mxu0
  %v2041 = vadd.f32 0.0, %v2040
  %2042 = vmatmul.f32.gmra.mxu0 %v2009
  %v2043 = vpop.f32.mrf.mxu0
  %v2044 = vadd.f32 0.0, %v2043
  %2045 = vmatmul.f32.gmra.mxu0 %v2011
  %v2046 = vpop.f32.mrf.mxu0
  %v2047 = vadd.f32 0.0, %v2046
  %2048 = vmatmul.f32.gmra.mxu0 %v2013
  %v2049 = vpop.f32.mrf.mxu0
  %v2050 = vadd.f32 0.0, %v2049
  %2051 = vdwg.mxu0
  %v2052 = vmul.f32 %v2041, 0.35355338
  %v2053 = vmul.f32 %v2044, 0.35355338
  %v2054 = vmul.f32 %v2047, 0.35355338
  %v2055 = vmul.f32 %v2050, 0.35355338
  %v2056 = vadd.f32 %v2052, %v70
  %v2057 = vadd.f32 %v2053, %v71
  %v2058 = vadd.f32 %v2054, %v72
  %v2059 = vadd.f32 %v2055, %v73
  %v2060 = vsel %vm80, %v2056, -inf
  %2061 = vmax.xlane.f32.xlu0 %v2060
  %v2062 = vpop.xlane.xlu0 %2061
  %v2063 = vsel %vm80, %v2057, -inf
  %2064 = vmax.xlane.f32.xlu0 %v2063
  %v2065 = vpop.xlane.xlu0 %2064
  %v2066 = vsel %vm80, %v2058, -inf
  %2067 = vmax.xlane.f32.xlu0 %v2066
  %v2068 = vpop.xlane.xlu0 %2067
  %v2069 = vsel %vm80, %v2059, -inf
  %2070 = vmax.xlane.f32.xlu0 %v2069
  %v2071 = vpop.xlane.xlu0 %2070
  %v2072 = vsub.f32 %v2056, %v2062
  %v2073 = vsub.f32 %v2057, %v2065
  %v2074 = vsub.f32 %v2058, %v2068
  %v2075 = vsub.f32 %v2059, %v2071
  %v2076 = vmul.f32 %v2072, 1.442695
  %v2077 = vpow.pop %v2076
  %v2078 = vmul.f32 %v2073, 1.442695
  %v2079 = vpow.pop %v2078
  %v2080 = vmul.f32 %v2074, 1.442695
  %v2081 = vpow.pop %v2080
  %v2082 = vmul.f32 %v2075, 1.442695
  %v2083 = vpow.pop %v2082
  %v2084 = vsel %vm80, %v2077, 0.0
  %2085 = vadd.xlane.f32.xlu0 %v2084
  %v2086 = vpop.xlane.xlu0 %2085
  %v2087 = vsel %vm80, %v2079, 0.0
  %2088 = vadd.xlane.f32.xlu0 %v2087
  %v2089 = vpop.xlane.xlu0 %2088
  %v2090 = vsel %vm80, %v2081, 0.0
  %2091 = vadd.xlane.f32.xlu0 %v2090
  %v2092 = vpop.xlane.xlu0 %2091
  %v2093 = vsel %vm80, %v2083, 0.0
  %2094 = vadd.xlane.f32.xlu0 %v2093
  %v2095 = vpop.xlane.xlu0 %2094
  %v2096 = vrcp.pop %v2086
  %v2097 = vmul.f32 %v2086, %v2096
  %v2098 = vsub.f32 1.0, %v2097
  %v2099 = vmul.f32 %v2096, %v2098
  %v2100 = vadd.f32 %v2096, %v2099
  %vm2101 = vweird.f32 %v2086
  %vm2102 = vweird.f32 %v2096
  %vm2103 = vmor %vm2101, %vm2102
  %v2104 = vsel %vm2103, %v2096, %v2100
  %v2105 = vand.u32 2147483647, %v2086
  %vm2106 = vcmp.eq.f32.partialorder %v2105, 8.507059e+37
  %v2107 = vand.u32 %v2086, 2147483648
  %v2108 = vor.u32 1.1754944e-38, %v2107
  %v2109 = vsel %vm2106, %v2108, %v2104
  %v2110 = vmul.f32 %v2077, %v2109
  %v2111 = vrcp.pop %v2089
  %v2112 = vmul.f32 %v2089, %v2111
  %v2113 = vsub.f32 1.0, %v2112
  %v2114 = vmul.f32 %v2111, %v2113
  %v2115 = vadd.f32 %v2111, %v2114
  %vm2116 = vweird.f32 %v2089
  %vm2117 = vweird.f32 %v2111
  %vm2118 = vmor %vm2116, %vm2117
  %v2119 = vsel %vm2118, %v2111, %v2115
  %v2120 = vand.u32 2147483647, %v2089
  %vm2121 = vcmp.eq.f32.partialorder %v2120, 8.507059e+37
  %v2122 = vand.u32 %v2089, 2147483648
  %v2123 = vor.u32 1.1754944e-38, %v2122
  %v2124 = vsel %vm2121, %v2123, %v2119
  %v2125 = vmul.f32 %v2079, %v2124
  %v2126 = vrcp.pop %v2092
  %v2127 = vmul.f32 %v2092, %v2126
  %v2128 = vsub.f32 1.0, %v2127
  %v2129 = vmul.f32 %v2126, %v2128
  %v2130 = vadd.f32 %v2126, %v2129
  %vm2131 = vweird.f32 %v2092
  %vm2132 = vweird.f32 %v2126
  %vm2133 = vmor %vm2131, %vm2132
  %v2134 = vsel %vm2133, %v2126, %v2130
  %v2135 = vand.u32 2147483647, %v2092
  %vm2136 = vcmp.eq.f32.partialorder %v2135, 8.507059e+37
  %v2137 = vand.u32 %v2092, 2147483648
  %v2138 = vor.u32 1.1754944e-38, %v2137
  %v2139 = vsel %vm2136, %v2138, %v2134
  %v2140 = vmul.f32 %v2081, %v2139
  %v2141 = vrcp.pop %v2095
  %v2142 = vmul.f32 %v2095, %v2141
  %v2143 = vsub.f32 1.0, %v2142
  %v2144 = vmul.f32 %v2141, %v2143
  %v2145 = vadd.f32 %v2141, %v2144
  %vm2146 = vweird.f32 %v2095
  %vm2147 = vweird.f32 %v2141
  %vm2148 = vmor %vm2146, %vm2147
  %v2149 = vsel %vm2148, %v2141, %v2145
  %v2150 = vand.u32 2147483647, %v2095
  %vm2151 = vcmp.eq.f32.partialorder %v2150, 8.507059e+37
  %v2152 = vand.u32 %v2095, 2147483648
  %v2153 = vor.u32 1.1754944e-38, %v2152
  %v2154 = vsel %vm2151, %v2153, %v2149
  %v2155 = vmul.f32 %v2083, %v2154
  %2156 = vrot.lane.b32.xlu0 %v1766, 56
  %v2157 = vpop.permute.xlu0 %2156
  %2158 = vrot.lane.b32.xlu0 %v1769, 56
  %v2159 = vpop.permute.xlu0 %2158
  %2160 = vrot.lane.b32.xlu0 %v1772, 56
  %v2161 = vpop.permute.xlu0 %2160
  %2162 = vrot.lane.b32.xlu0 %v1775, 56
  %v2163 = vpop.permute.xlu0 %2162
  %v2169 = vsel %vm80, %v2110, 0
  %v2172 = vsel %vm80, %v2125, 0
  %v2175 = vsel %vm80, %v2140, 0
  %v2178 = vsel %vm80, %v2155, 0
  %2180 = vmatpush.msra.mxu0 0.0
  %2181 = vmatpush.msra.mxu0 0.0
  %2182 = vmatpush.msra.mxu0 0.0
  %2183 = vmatpush.msra.mxu0 0.0
  %2184 = vmatpush.msra.mxu0 0.0
  %2185 = vmatpush.msra.mxu0 0.0
  %2186 = vmatpush.msra.mxu0 0.0
  %2187 = vmatpush.msra.mxu0 0.0
  %2188 = vmatpush.msra.mxu0 0.0
  %2189 = vmatpush.msra.mxu0 0.0
  %2190 = vmatpush.msra.mxu0 0.0
  %2191 = vmatpush.msra.mxu0 0.0
  %2192 = vmatpush.msra.mxu0 %v2163
  %2193 = vmatpush.msra.mxu0 %v2161
  %2194 = vmatpush.msra.mxu0 %v2159
  %2195 = vmatpush.msra.mxu0 %v2157
  %2196 = vmatmul.f32.gmra.mxu0 %v2169
  %v2197 = vpop.f32.mrf.mxu0
  %v2198 = vadd.f32 0.0, %v2197
  %2199 = vmatmul.f32.gmra.mxu0 %v2172
  %v2200 = vpop.f32.mrf.mxu0
  %v2201 = vadd.f32 0.0, %v2200
  %2202 = vmatmul.f32.gmra.mxu0 %v2175
  %v2203 = vpop.f32.mrf.mxu0
  %v2204 = vadd.f32 0.0, %v2203
  %2205 = vmatmul.f32.gmra.mxu0 %v2178
  %v2206 = vpop.f32.mrf.mxu0
  %v2207 = vadd.f32 0.0, %v2206
  %2208 = vdwg.mxu0
  %2209 = vrot.lane.b32.xlu0 %v1766, 112
  %v2210 = vpop.permute.xlu0 %2209
  %2211 = vrot.lane.b32.xlu0 %v1769, 112
  %v2212 = vpop.permute.xlu0 %2211
  %2213 = vrot.lane.b32.xlu0 %v1772, 112
  %v2214 = vpop.permute.xlu0 %2213
  %2215 = vrot.lane.b32.xlu0 %v1775, 112
  %v2216 = vpop.permute.xlu0 %2215
  %2217 = vrot.lane.b32.xlu0 %v1766, 80
  %v2218 = vpop.permute.xlu0 %2217
  %2219 = vrot.lane.b32.xlu0 %v1769, 80
  %v2220 = vpop.permute.xlu0 %2219
  %2221 = vrot.lane.b32.xlu0 %v1772, 80
  %v2222 = vpop.permute.xlu0 %2221
  %2223 = vrot.lane.b32.xlu0 %v1775, 80
  %v2224 = vpop.permute.xlu0 %2223
  %v2225 = vsel %vm245, %v2210, 0
  %v2227 = vsel %vm245, %v2212, 0
  %v2229 = vsel %vm245, %v2214, 0
  %v2231 = vsel %vm245, %v2216, 0
  %v2233 = vsel %vm245, %v2218, 0
  %v2235 = vsel %vm245, %v2220, 0
  %v2237 = vsel %vm245, %v2222, 0
  %v2239 = vsel %vm245, %v2224, 0
  %2241 = vmatpush.xpose.msra.mxu0 0.0
  %2242 = vmatpush.xpose.msra.mxu0 0.0
  %2243 = vmatpush.xpose.msra.mxu0 0.0
  %2244 = vmatpush.xpose.msra.mxu0 0.0
  %2245 = vmatpush.xpose.msra.mxu0 0.0
  %2246 = vmatpush.xpose.msra.mxu0 0.0
  %2247 = vmatpush.xpose.msra.mxu0 0.0
  %2248 = vmatpush.xpose.msra.mxu0 0.0
  %2249 = vmatpush.xpose.msra.mxu0 0.0
  %2250 = vmatpush.xpose.msra.mxu0 0.0
  %2251 = vmatpush.xpose.msra.mxu0 0.0
  %2252 = vmatpush.xpose.msra.mxu0 0.0
  %2253 = vmatpush.xpose.msra.mxu0 %v2239
  %2254 = vmatpush.xpose.msra.mxu0 %v2237
  %2255 = vmatpush.xpose.msra.mxu0 %v2235
  %2256 = vmatpush.xpose.msra.mxu0 %v2233
  %2257 = vmatmul.f32.gmra.mxu0 %v2225
  %v2258 = vpop.f32.mrf.mxu0
  %v2259 = vadd.f32 0.0, %v2258
  %2260 = vmatmul.f32.gmra.mxu0 %v2227
  %v2261 = vpop.f32.mrf.mxu0
  %v2262 = vadd.f32 0.0, %v2261
  %2263 = vmatmul.f32.gmra.mxu0 %v2229
  %v2264 = vpop.f32.mrf.mxu0
  %v2265 = vadd.f32 0.0, %v2264
  %2266 = vmatmul.f32.gmra.mxu0 %v2231
  %v2267 = vpop.f32.mrf.mxu0
  %v2268 = vadd.f32 0.0, %v2267
  %2269 = vdwg.mxu0
  %v2270 = vmul.f32 %v2259, 0.35355338
  %v2271 = vmul.f32 %v2262, 0.35355338
  %v2272 = vmul.f32 %v2265, 0.35355338
  %v2273 = vmul.f32 %v2268, 0.35355338
  %v2274 = vadd.f32 %v2270, %v70
  %v2275 = vadd.f32 %v2271, %v71
  %v2276 = vadd.f32 %v2272, %v72
  %v2277 = vadd.f32 %v2273, %v73
  %v2278 = vsel %vm80, %v2274, -inf
  %2279 = vmax.xlane.f32.xlu0 %v2278
  %v2280 = vpop.xlane.xlu0 %2279
  %v2281 = vsel %vm80, %v2275, -inf
  %2282 = vmax.xlane.f32.xlu0 %v2281
  %v2283 = vpop.xlane.xlu0 %2282
  %v2284 = vsel %vm80, %v2276, -inf
  %2285 = vmax.xlane.f32.xlu0 %v2284
  %v2286 = vpop.xlane.xlu0 %2285
  %v2287 = vsel %vm80, %v2277, -inf
  %2288 = vmax.xlane.f32.xlu0 %v2287
  %v2289 = vpop.xlane.xlu0 %2288
  %v2290 = vsub.f32 %v2274, %v2280
  %v2291 = vsub.f32 %v2275, %v2283
  %v2292 = vsub.f32 %v2276, %v2286
  %v2293 = vsub.f32 %v2277, %v2289
  %v2294 = vmul.f32 %v2290, 1.442695
  %v2295 = vpow.pop %v2294
  %v2296 = vmul.f32 %v2291, 1.442695
  %v2297 = vpow.pop %v2296
  %v2298 = vmul.f32 %v2292, 1.442695
  %v2299 = vpow.pop %v2298
  %v2300 = vmul.f32 %v2293, 1.442695
  %v2301 = vpow.pop %v2300
  %v2302 = vsel %vm80, %v2295, 0.0
  %2303 = vadd.xlane.f32.xlu0 %v2302
  %v2304 = vpop.xlane.xlu0 %2303
  %v2305 = vsel %vm80, %v2297, 0.0
  %2306 = vadd.xlane.f32.xlu0 %v2305
  %v2307 = vpop.xlane.xlu0 %2306
  %v2308 = vsel %vm80, %v2299, 0.0
  %2309 = vadd.xlane.f32.xlu0 %v2308
  %v2310 = vpop.xlane.xlu0 %2309
  %v2311 = vsel %vm80, %v2301, 0.0
  %2312 = vadd.xlane.f32.xlu0 %v2311
  %v2313 = vpop.xlane.xlu0 %2312
  %v2314 = vrcp.pop %v2304
  %v2315 = vmul.f32 %v2304, %v2314
  %v2316 = vsub.f32 1.0, %v2315
  %v2317 = vmul.f32 %v2314, %v2316
  %v2318 = vadd.f32 %v2314, %v2317
  %vm2319 = vweird.f32 %v2304
  %vm2320 = vweird.f32 %v2314
  %vm2321 = vmor %vm2319, %vm2320
  %v2322 = vsel %vm2321, %v2314, %v2318
  %v2323 = vand.u32 2147483647, %v2304
  %vm2324 = vcmp.eq.f32.partialorder %v2323, 8.507059e+37
  %v2325 = vand.u32 %v2304, 2147483648
  %v2326 = vor.u32 1.1754944e-38, %v2325
  %v2327 = vsel %vm2324, %v2326, %v2322
  %v2328 = vmul.f32 %v2295, %v2327
  %v2329 = vrcp.pop %v2307
  %v2330 = vmul.f32 %v2307, %v2329
  %v2331 = vsub.f32 1.0, %v2330
  %v2332 = vmul.f32 %v2329, %v2331
  %v2333 = vadd.f32 %v2329, %v2332
  %vm2334 = vweird.f32 %v2307
  %vm2335 = vweird.f32 %v2329
  %vm2336 = vmor %vm2334, %vm2335
  %v2337 = vsel %vm2336, %v2329, %v2333
  %v2338 = vand.u32 2147483647, %v2307
  %vm2339 = vcmp.eq.f32.partialorder %v2338, 8.507059e+37
  %v2340 = vand.u32 %v2307, 2147483648
  %v2341 = vor.u32 1.1754944e-38, %v2340
  %v2342 = vsel %vm2339, %v2341, %v2337
  %v2343 = vmul.f32 %v2297, %v2342
  %v2344 = vrcp.pop %v2310
  %v2345 = vmul.f32 %v2310, %v2344
  %v2346 = vsub.f32 1.0, %v2345
  %v2347 = vmul.f32 %v2344, %v2346
  %v2348 = vadd.f32 %v2344, %v2347
  %vm2349 = vweird.f32 %v2310
  %vm2350 = vweird.f32 %v2344
  %vm2351 = vmor %vm2349, %vm2350
  %v2352 = vsel %vm2351, %v2344, %v2348
  %v2353 = vand.u32 2147483647, %v2310
  %vm2354 = vcmp.eq.f32.partialorder %v2353, 8.507059e+37
  %v2355 = vand.u32 %v2310, 2147483648
  %v2356 = vor.u32 1.1754944e-38, %v2355
  %v2357 = vsel %vm2354, %v2356, %v2352
  %v2358 = vmul.f32 %v2299, %v2357
  %v2359 = vrcp.pop %v2313
  %v2360 = vmul.f32 %v2313, %v2359
  %v2361 = vsub.f32 1.0, %v2360
  %v2362 = vmul.f32 %v2359, %v2361
  %v2363 = vadd.f32 %v2359, %v2362
  %vm2364 = vweird.f32 %v2313
  %vm2365 = vweird.f32 %v2359
  %vm2366 = vmor %vm2364, %vm2365
  %v2367 = vsel %vm2366, %v2359, %v2363
  %v2368 = vand.u32 2147483647, %v2313
  %vm2369 = vcmp.eq.f32.partialorder %v2368, 8.507059e+37
  %v2370 = vand.u32 %v2313, 2147483648
  %v2371 = vor.u32 1.1754944e-38, %v2370
  %v2372 = vsel %vm2369, %v2371, %v2367
  %v2373 = vmul.f32 %v2301, %v2372
  %2374 = vrot.lane.b32.xlu0 %v1766, 48
  %v2375 = vpop.permute.xlu0 %2374
  %2376 = vrot.lane.b32.xlu0 %v1769, 48
  %v2377 = vpop.permute.xlu0 %2376
  %2378 = vrot.lane.b32.xlu0 %v1772, 48
  %v2379 = vpop.permute.xlu0 %2378
  %2380 = vrot.lane.b32.xlu0 %v1775, 48
  %v2381 = vpop.permute.xlu0 %2380
  %v2387 = vsel %vm80, %v2328, 0
  %v2390 = vsel %vm80, %v2343, 0
  %v2393 = vsel %vm80, %v2358, 0
  %v2396 = vsel %vm80, %v2373, 0
  %2398 = vmatpush.msra.mxu0 0.0
  %2399 = vmatpush.msra.mxu0 0.0
  %2400 = vmatpush.msra.mxu0 0.0
  %2401 = vmatpush.msra.mxu0 0.0
  %2402 = vmatpush.msra.mxu0 0.0
  %2403 = vmatpush.msra.mxu0 0.0
  %2404 = vmatpush.msra.mxu0 0.0
  %2405 = vmatpush.msra.mxu0 0.0
  %2406 = vmatpush.msra.mxu0 0.0
  %2407 = vmatpush.msra.mxu0 0.0
  %2408 = vmatpush.msra.mxu0 0.0
  %2409 = vmatpush.msra.mxu0 0.0
  %2410 = vmatpush.msra.mxu0 %v2381
  %2411 = vmatpush.msra.mxu0 %v2379
  %2412 = vmatpush.msra.mxu0 %v2377
  %2413 = vmatpush.msra.mxu0 %v2375
  %2414 = vmatmul.f32.gmra.mxu0 %v2387
  %v2415 = vpop.f32.mrf.mxu0
  %v2416 = vadd.f32 0.0, %v2415
  %2417 = vmatmul.f32.gmra.mxu0 %v2390
  %v2418 = vpop.f32.mrf.mxu0
  %v2419 = vadd.f32 0.0, %v2418
  %2420 = vmatmul.f32.gmra.mxu0 %v2393
  %v2421 = vpop.f32.mrf.mxu0
  %v2422 = vadd.f32 0.0, %v2421
  %2423 = vmatmul.f32.gmra.mxu0 %v2396
  %v2424 = vpop.f32.mrf.mxu0
  %v2425 = vadd.f32 0.0, %v2424
  %2426 = vdwg.mxu0
  %2427 = vrot.lane.b32.xlu0 %v1766, 104
  %v2428 = vpop.permute.xlu0 %2427
  %2429 = vrot.lane.b32.xlu0 %v1769, 104
  %v2430 = vpop.permute.xlu0 %2429
  %2431 = vrot.lane.b32.xlu0 %v1772, 104
  %v2432 = vpop.permute.xlu0 %2431
  %2433 = vrot.lane.b32.xlu0 %v1775, 104
  %v2434 = vpop.permute.xlu0 %2433
  %2435 = vrot.lane.b32.xlu0 %v1766, 72
  %v2436 = vpop.permute.xlu0 %2435
  %2437 = vrot.lane.b32.xlu0 %v1769, 72
  %v2438 = vpop.permute.xlu0 %2437
  %2439 = vrot.lane.b32.xlu0 %v1772, 72
  %v2440 = vpop.permute.xlu0 %2439
  %2441 = vrot.lane.b32.xlu0 %v1775, 72
  %v2442 = vpop.permute.xlu0 %2441
  %v2443 = vsel %vm245, %v2428, 0
  %v2445 = vsel %vm245, %v2430, 0
  %v2447 = vsel %vm245, %v2432, 0
  %v2449 = vsel %vm245, %v2434, 0
  %v2451 = vsel %vm245, %v2436, 0
  %v2453 = vsel %vm245, %v2438, 0
  %v2455 = vsel %vm245, %v2440, 0
  %v2457 = vsel %vm245, %v2442, 0
  %2459 = vmatpush.xpose.msra.mxu0 0.0
  %2460 = vmatpush.xpose.msra.mxu0 0.0
  %2461 = vmatpush.xpose.msra.mxu0 0.0
  %2462 = vmatpush.xpose.msra.mxu0 0.0
  %2463 = vmatpush.xpose.msra.mxu0 0.0
  %2464 = vmatpush.xpose.msra.mxu0 0.0
  %2465 = vmatpush.xpose.msra.mxu0 0.0
  %2466 = vmatpush.xpose.msra.mxu0 0.0
  %2467 = vmatpush.xpose.msra.mxu0 0.0
  %2468 = vmatpush.xpose.msra.mxu0 0.0
  %2469 = vmatpush.xpose.msra.mxu0 0.0
  %2470 = vmatpush.xpose.msra.mxu0 0.0
  %2471 = vmatpush.xpose.msra.mxu0 %v2457
  %2472 = vmatpush.xpose.msra.mxu0 %v2455
  %2473 = vmatpush.xpose.msra.mxu0 %v2453
  %2474 = vmatpush.xpose.msra.mxu0 %v2451
  %2475 = vmatmul.f32.gmra.mxu0 %v2443
  %v2476 = vpop.f32.mrf.mxu0
  %v2477 = vadd.f32 0.0, %v2476
  %2478 = vmatmul.f32.gmra.mxu0 %v2445
  %v2479 = vpop.f32.mrf.mxu0
  %v2480 = vadd.f32 0.0, %v2479
  %2481 = vmatmul.f32.gmra.mxu0 %v2447
  %v2482 = vpop.f32.mrf.mxu0
  %v2483 = vadd.f32 0.0, %v2482
  %2484 = vmatmul.f32.gmra.mxu0 %v2449
  %v2485 = vpop.f32.mrf.mxu0
  %v2486 = vadd.f32 0.0, %v2485
  %2487 = vdwg.mxu0
  %v2488 = vmul.f32 %v2477, 0.35355338
  %v2489 = vmul.f32 %v2480, 0.35355338
  %v2490 = vmul.f32 %v2483, 0.35355338
  %v2491 = vmul.f32 %v2486, 0.35355338
  %v2492 = vadd.f32 %v2488, %v70
  %v2493 = vadd.f32 %v2489, %v71
  %v2494 = vadd.f32 %v2490, %v72
  %v2495 = vadd.f32 %v2491, %v73
  %v2496 = vsel %vm80, %v2492, -inf
  %2497 = vmax.xlane.f32.xlu0 %v2496
  %v2498 = vpop.xlane.xlu0 %2497
  %v2499 = vsel %vm80, %v2493, -inf
  %2500 = vmax.xlane.f32.xlu0 %v2499
  %v2501 = vpop.xlane.xlu0 %2500
  %v2502 = vsel %vm80, %v2494, -inf
  %2503 = vmax.xlane.f32.xlu0 %v2502
  %v2504 = vpop.xlane.xlu0 %2503
  %v2505 = vsel %vm80, %v2495, -inf
  %2506 = vmax.xlane.f32.xlu0 %v2505
  %v2507 = vpop.xlane.xlu0 %2506
  %v2508 = vsub.f32 %v2492, %v2498
  %v2509 = vsub.f32 %v2493, %v2501
  %v2510 = vsub.f32 %v2494, %v2504
  %v2511 = vsub.f32 %v2495, %v2507
  %v2512 = vmul.f32 %v2508, 1.442695
  %v2513 = vpow.pop %v2512
  %v2514 = vmul.f32 %v2509, 1.442695
  %v2515 = vpow.pop %v2514
  %v2516 = vmul.f32 %v2510, 1.442695
  %v2517 = vpow.pop %v2516
  %v2518 = vmul.f32 %v2511, 1.442695
  %v2519 = vpow.pop %v2518
  %v2520 = vsel %vm80, %v2513, 0.0
  %2521 = vadd.xlane.f32.xlu0 %v2520
  %v2522 = vpop.xlane.xlu0 %2521
  %v2523 = vsel %vm80, %v2515, 0.0
  %2524 = vadd.xlane.f32.xlu0 %v2523
  %v2525 = vpop.xlane.xlu0 %2524
  %v2526 = vsel %vm80, %v2517, 0.0
  %2527 = vadd.xlane.f32.xlu0 %v2526
  %v2528 = vpop.xlane.xlu0 %2527
  %v2529 = vsel %vm80, %v2519, 0.0
  %2530 = vadd.xlane.f32.xlu0 %v2529
  %v2531 = vpop.xlane.xlu0 %2530
  %v2532 = vrcp.pop %v2522
  %v2533 = vmul.f32 %v2522, %v2532
  %v2534 = vsub.f32 1.0, %v2533
  %v2535 = vmul.f32 %v2532, %v2534
  %v2536 = vadd.f32 %v2532, %v2535
  %vm2537 = vweird.f32 %v2522
  %vm2538 = vweird.f32 %v2532
  %vm2539 = vmor %vm2537, %vm2538
  %v2540 = vsel %vm2539, %v2532, %v2536
  %v2541 = vand.u32 2147483647, %v2522
  %vm2542 = vcmp.eq.f32.partialorder %v2541, 8.507059e+37
  %v2543 = vand.u32 %v2522, 2147483648
  %v2544 = vor.u32 1.1754944e-38, %v2543
  %v2545 = vsel %vm2542, %v2544, %v2540
  %v2546 = vmul.f32 %v2513, %v2545
  %v2547 = vrcp.pop %v2525
  %v2548 = vmul.f32 %v2525, %v2547
  %v2549 = vsub.f32 1.0, %v2548
  %v2550 = vmul.f32 %v2547, %v2549
  %v2551 = vadd.f32 %v2547, %v2550
  %vm2552 = vweird.f32 %v2525
  %vm2553 = vweird.f32 %v2547
  %vm2554 = vmor %vm2552, %vm2553
  %v2555 = vsel %vm2554, %v2547, %v2551
  %v2556 = vand.u32 2147483647, %v2525
  %vm2557 = vcmp.eq.f32.partialorder %v2556, 8.507059e+37
  %v2558 = vand.u32 %v2525, 2147483648
  %v2559 = vor.u32 1.1754944e-38, %v2558
  %v2560 = vsel %vm2557, %v2559, %v2555
  %v2561 = vmul.f32 %v2515, %v2560
  %v2562 = vrcp.pop %v2528
  %v2563 = vmul.f32 %v2528, %v2562
  %v2564 = vsub.f32 1.0, %v2563
  %v2565 = vmul.f32 %v2562, %v2564
  %v2566 = vadd.f32 %v2562, %v2565
  %vm2567 = vweird.f32 %v2528
  %vm2568 = vweird.f32 %v2562
  %vm2569 = vmor %vm2567, %vm2568
  %v2570 = vsel %vm2569, %v2562, %v2566
  %v2571 = vand.u32 2147483647, %v2528
  %vm2572 = vcmp.eq.f32.partialorder %v2571, 8.507059e+37
  %v2573 = vand.u32 %v2528, 2147483648
  %v2574 = vor.u32 1.1754944e-38, %v2573
  %v2575 = vsel %vm2572, %v2574, %v2570
  %v2576 = vmul.f32 %v2517, %v2575
  %v2577 = vrcp.pop %v2531
  %v2578 = vmul.f32 %v2531, %v2577
  %v2579 = vsub.f32 1.0, %v2578
  %v2580 = vmul.f32 %v2577, %v2579
  %v2581 = vadd.f32 %v2577, %v2580
  %vm2582 = vweird.f32 %v2531
  %vm2583 = vweird.f32 %v2577
  %vm2584 = vmor %vm2582, %vm2583
  %v2585 = vsel %vm2584, %v2577, %v2581
  %v2586 = vand.u32 2147483647, %v2531
  %vm2587 = vcmp.eq.f32.partialorder %v2586, 8.507059e+37
  %v2588 = vand.u32 %v2531, 2147483648
  %v2589 = vor.u32 1.1754944e-38, %v2588
  %v2590 = vsel %vm2587, %v2589, %v2585
  %v2591 = vmul.f32 %v2519, %v2590
  %2592 = vrot.lane.b32.xlu0 %v1766, 40
  %v2593 = vpop.permute.xlu0 %2592
  %2594 = vrot.lane.b32.xlu0 %v1769, 40
  %v2595 = vpop.permute.xlu0 %2594
  %2596 = vrot.lane.b32.xlu0 %v1772, 40
  %v2597 = vpop.permute.xlu0 %2596
  %2598 = vrot.lane.b32.xlu0 %v1775, 40
  %v2599 = vpop.permute.xlu0 %2598
  %v2605 = vsel %vm80, %v2546, 0
  %v2608 = vsel %vm80, %v2561, 0
  %v2611 = vsel %vm80, %v2576, 0
  %v2614 = vsel %vm80, %v2591, 0
  %2616 = vmatpush.msra.mxu0 0.0
  %2617 = vmatpush.msra.mxu0 0.0
  %2618 = vmatpush.msra.mxu0 0.0
  %2619 = vmatpush.msra.mxu0 0.0
  %2620 = vmatpush.msra.mxu0 0.0
  %2621 = vmatpush.msra.mxu0 0.0
  %2622 = vmatpush.msra.mxu0 0.0
  %2623 = vmatpush.msra.mxu0 0.0
  %2624 = vmatpush.msra.mxu0 0.0
  %2625 = vmatpush.msra.mxu0 0.0
  %2626 = vmatpush.msra.mxu0 0.0
  %2627 = vmatpush.msra.mxu0 0.0
  %2628 = vmatpush.msra.mxu0 %v2599
  %2629 = vmatpush.msra.mxu0 %v2597
  %2630 = vmatpush.msra.mxu0 %v2595
  %2631 = vmatpush.msra.mxu0 %v2593
  %2632 = vmatmul.f32.gmra.mxu0 %v2605
  %v2633 = vpop.f32.mrf.mxu0
  %v2634 = vadd.f32 0.0, %v2633
  %2635 = vmatmul.f32.gmra.mxu0 %v2608
  %v2636 = vpop.f32.mrf.mxu0
  %v2637 = vadd.f32 0.0, %v2636
  %2638 = vmatmul.f32.gmra.mxu0 %v2611
  %v2639 = vpop.f32.mrf.mxu0
  %v2640 = vadd.f32 0.0, %v2639
  %2641 = vmatmul.f32.gmra.mxu0 %v2614
  %v2642 = vpop.f32.mrf.mxu0
  %v2643 = vadd.f32 0.0, %v2642
  %2644 = vdwg.mxu0
  %2649 = vrot.lane.b32.xlu0 %v2198, 8
  %v2650 = vpop.permute.xlu0 %2649
  %2651 = vrot.lane.b32.xlu0 %v2201, 8
  %v2652 = vpop.permute.xlu0 %2651
  %2653 = vrot.lane.b32.xlu0 %v2204, 8
  %v2654 = vpop.permute.xlu0 %2653
  %2655 = vrot.lane.b32.xlu0 %v2207, 8
  %v2656 = vpop.permute.xlu0 %2655
  %2665 = vrot.lane.b32.xlu0 %v2416, 16
  %v2666 = vpop.permute.xlu0 %2665
  %2667 = vrot.lane.b32.xlu0 %v2419, 16
  %v2668 = vpop.permute.xlu0 %2667
  %2669 = vrot.lane.b32.xlu0 %v2422, 16
  %v2670 = vpop.permute.xlu0 %2669
  %2671 = vrot.lane.b32.xlu0 %v2425, 16
  %v2672 = vpop.permute.xlu0 %2671
  %2681 = vrot.lane.b32.xlu0 %v2634, 24
  %v2682 = vpop.permute.xlu0 %2681
  %2683 = vrot.lane.b32.xlu0 %v2637, 24
  %v2684 = vpop.permute.xlu0 %2683
  %2685 = vrot.lane.b32.xlu0 %v2640, 24
  %v2686 = vpop.permute.xlu0 %2685
  %2687 = vrot.lane.b32.xlu0 %v2643, 24
  %v2688 = vpop.permute.xlu0 %2687
  %v2693 = vsel %vm245, %v1980, %v2650
  %v2694 = vsel %vm245, %v1983, %v2652
  %v2695 = vsel %vm245, %v1986, %v2654
  %v2696 = vsel %vm245, %v1989, %v2656
  %v2697 = vsel %vm1154, %v2693, %v2666
  %v2698 = vsel %vm1154, %v2694, %v2668
  %v2699 = vsel %vm1154, %v2695, %v2670
  %v2700 = vsel %vm1154, %v2696, %v2672
  %v2701 = vsel %vm1159, %v2697, %v2682
  %v2702 = vsel %vm1159, %v2698, %v2684
  %v2703 = vsel %vm1159, %v2699, %v2686
  %v2704 = vsel %vm1159, %v2700, %v2688
  %v2705 = vld [vmem:[%s1 + $0x268] sm:$0xff]
  %v2706 = vld [vmem:[%s1 + $0x270] sm:$0xff]
  %v2707 = vld [vmem:[%s1 + $0x278] sm:$0xff]
  %v2708 = vld [vmem:[%s1 + $0x280] sm:$0xff]
  %v2709 = vld [vmem:[%s1 + $0x288] sm:$0x1]
  %v2710 = vperm.slane %v2709, 0
  %v2712 = vsel %vm80, %v2701, 0
  %v2715 = vsel %vm80, %v2702, 0
  %v2718 = vsel %vm80, %v2703, 0
  %v2721 = vsel %vm80, %v2704, 0
  %2723 = vmatpush.msra.mxu0 0.0
  %2724 = vmatpush.msra.mxu0 0.0
  %2725 = vmatpush.msra.mxu0 0.0
  %2726 = vmatpush.msra.mxu0 0.0
  %2727 = vmatpush.msra.mxu0 0.0
  %2728 = vmatpush.msra.mxu0 0.0
  %2729 = vmatpush.msra.mxu0 0.0
  %2730 = vmatpush.msra.mxu0 0.0
  %2731 = vmatpush.msra.mxu0 0.0
  %2732 = vmatpush.msra.mxu0 0.0
  %2733 = vmatpush.msra.mxu0 0.0
  %2734 = vmatpush.msra.mxu0 0.0
  %2735 = vmatpush.msra.mxu0 %v2708
  %2736 = vmatpush.msra.mxu0 %v2707
  %2737 = vmatpush.msra.mxu0 %v2706
  %2738 = vmatpush.msra.mxu0 %v2705
  %2739 = vmatmul.f32.gmra.mxu0 %v2712
  %v2740 = vpop.f32.mrf.mxu0
  %v2741 = vadd.f32 %v2710, %v2740
  %2742 = vmatmul.f32.gmra.mxu0 %v2715
  %v2743 = vpop.f32.mrf.mxu0
  %v2744 = vadd.f32 %v2710, %v2743
  %2745 = vmatmul.f32.gmra.mxu0 %v2718
  %v2746 = vpop.f32.mrf.mxu0
  %v2747 = vadd.f32 %v2710, %v2746
  %2748 = vmatmul.f32.gmra.mxu0 %v2721
  %v2749 = vpop.f32.mrf.mxu0
  %v2750 = vadd.f32 %v2710, %v2749
  %2751 = vdwg.mxu0
  %2752 = vmatpush.msra.mxu0 0.0
  %2753 = vmatpush.msra.mxu0 0.0
  %2754 = vmatpush.msra.mxu0 0.0
  %2755 = vmatpush.msra.mxu0 0.0
  %2756 = vmatpush.msra.mxu0 0.0
  %2757 = vmatpush.msra.mxu0 0.0
  %2758 = vmatpush.msra.mxu0 0.0
  %2759 = vmatpush.msra.mxu0 0.0
  %2760 = vmatpush.msra.mxu0 0.0
  %2761 = vmatpush.msra.mxu0 0.0
  %2762 = vmatpush.msra.mxu0 0.0
  %2763 = vmatpush.msra.mxu0 0.0
  %2764 = vmatpush.msra.mxu0 %v2750
  %2765 = vmatpush.msra.mxu0 %v2747
  %2766 = vmatpush.msra.mxu0 %v2744
  %2767 = vmatpush.msra.mxu0 %v2741
  %2768 = vmatmul.f32.gmra.mxu0 %v1212
  %v2769 = vpop.f32.mrf.mxu0
  %v2770 = vadd.f32 0.0, %v2769
  %2771 = vmatmul.f32.gmra.mxu0 %v1215
  %v2772 = vpop.f32.mrf.mxu0
  %v2773 = vadd.f32 0.0, %v2772
  %2774 = vmatmul.f32.gmra.mxu0 %v1218
  %v2775 = vpop.f32.mrf.mxu0
  %v2776 = vadd.f32 0.0, %v2775
  %2777 = vmatmul.f32.gmra.mxu0 %v1221
  %v2778 = vpop.f32.mrf.mxu0
  %v2779 = vadd.f32 0.0, %v2778
  %2780 = vdwg.mxu0
  %v2781 = vadd.f32 %v1626, %v2770
  %v2782 = vadd.f32 %v1627, %v2773
  %v2783 = vadd.f32 %v1628, %v2776
  %v2784 = vadd.f32 %v1629, %v2779
  %v2785 = vld [vmem:[%s1 + $0x290] sm:$0x1]
  %v2786 = vld [vmem:[%s1 + $0x298] sm:$0x1]
  %v2787 = vsel %vm80, %v2781, 0.0
  %2788 = vadd.xlane.f32.xlu0 %v2787
  %v2789 = vpop.xlane.xlu0 %2788
  %v2790 = vsel %vm80, %v2782, 0.0
  %2791 = vadd.xlane.f32.xlu0 %v2790
  %v2792 = vpop.xlane.xlu0 %2791
  %v2793 = vsel %vm80, %v2783, 0.0
  %2794 = vadd.xlane.f32.xlu0 %v2793
  %v2795 = vpop.xlane.xlu0 %2794
  %v2796 = vsel %vm80, %v2784, 0.0
  %2797 = vadd.xlane.f32.xlu0 %v2796
  %v2798 = vpop.xlane.xlu0 %2797
  %v2799 = vmul.f32 %v2789, %v99
  %v2800 = vmul.f32 %v2792, %v99
  %v2801 = vmul.f32 %v2795, %v99
  %v2802 = vmul.f32 %v2798, %v99
  %v2803 = vsub.f32 %v2781, %v2799
  %v2804 = vsub.f32 %v2782, %v2800
  %v2805 = vsub.f32 %v2783, %v2801
  %v2806 = vsub.f32 %v2784, %v2802
  %v2807 = vmul.f32 %v2803, %v2803
  %v2808 = vmul.f32 %v2804, %v2804
  %v2809 = vmul.f32 %v2805, %v2805
  %v2810 = vmul.f32 %v2806, %v2806
  %v2811 = vsel %vm80, %v2807, 0.0
  %2812 = vadd.xlane.f32.xlu0 %v2811
  %v2813 = vpop.xlane.xlu0 %2812
  %v2814 = vsel %vm80, %v2808, 0.0
  %2815 = vadd.xlane.f32.xlu0 %v2814
  %v2816 = vpop.xlane.xlu0 %2815
  %v2817 = vsel %vm80, %v2809, 0.0
  %2818 = vadd.xlane.f32.xlu0 %v2817
  %v2819 = vpop.xlane.xlu0 %2818
  %v2820 = vsel %vm80, %v2810, 0.0
  %2821 = vadd.xlane.f32.xlu0 %v2820
  %v2822 = vpop.xlane.xlu0 %2821
  %v2823 = vmul.f32 %v2813, %v99
  %v2824 = vmul.f32 %v2816, %v99
  %v2825 = vmul.f32 %v2819, %v99
  %v2826 = vmul.f32 %v2822, %v99
  %v2827 = vadd.f32 %v2823, 1e-05
  %v2828 = vadd.f32 %v2824, 1e-05
  %v2829 = vadd.f32 %v2825, 1e-05
  %v2830 = vadd.f32 %v2826, 1e-05
  %v2831 = vrsqrt.pop %v2827
  %v2832 = vmul.f32 %v2831, %v2827
  %v2833 = vmul.f32 %v2832, %v2831
  %v2834 = vmul.f32 0.5, %v2833
  %v2835 = vsub.f32 1.5, %v2834
  %v2836 = vmul.f32 %v2831, %v2835
  %vm2837 = vweird.f32 %v2827
  %vm2838 = vweird.f32 %v2831
  %vm2839 = vmor %vm2837, %vm2838
  %v2840 = vsel %vm2839, %v2831, %v2836
  %v2841 = vrsqrt.pop %v2828
  %v2842 = vmul.f32 %v2841, %v2828
  %v2843 = vmul.f32 %v2842, %v2841
  %v2844 = vmul.f32 0.5, %v2843
  %v2845 = vsub.f32 1.5, %v2844
  %v2846 = vmul.f32 %v2841, %v2845
  %vm2847 = vweird.f32 %v2828
  %vm2848 = vweird.f32 %v2841
  %vm2849 = vmor %vm2847, %vm2848
  %v2850 = vsel %vm2849, %v2841, %v2846
  %v2851 = vrsqrt.pop %v2829
  %v2852 = vmul.f32 %v2851, %v2829
  %v2853 = vmul.f32 %v2852, %v2851
  %v2854 = vmul.f32 0.5, %v2853
  %v2855 = vsub.f32 1.5, %v2854
  %v2856 = vmul.f32 %v2851, %v2855
  %vm2857 = vweird.f32 %v2829
  %vm2858 = vweird.f32 %v2851
  %vm2859 = vmor %vm2857, %vm2858
  %v2860 = vsel %vm2859, %v2851, %v2856
  %v2861 = vrsqrt.pop %v2830
  %v2862 = vmul.f32 %v2861, %v2830
  %v2863 = vmul.f32 %v2862, %v2861
  %v2864 = vmul.f32 0.5, %v2863
  %v2865 = vsub.f32 1.5, %v2864
  %v2866 = vmul.f32 %v2861, %v2865
  %vm2867 = vweird.f32 %v2830
  %vm2868 = vweird.f32 %v2861
  %vm2869 = vmor %vm2867, %vm2868
  %v2870 = vsel %vm2869, %v2861, %v2866
  %v2871 = vmul.f32 %v2803, %v2840
  %v2872 = vmul.f32 %v2804, %v2850
  %v2873 = vmul.f32 %v2805, %v2860
  %v2874 = vmul.f32 %v2806, %v2870
  %v2875 = vperm.slane %v2785, 0
  %v2876 = vmul.f32 %v2871, %v2875
  %v2877 = vmul.f32 %v2872, %v2875
  %v2878 = vmul.f32 %v2873, %v2875
  %v2879 = vmul.f32 %v2874, %v2875
  %v2880 = vperm.slane %v2786, 0
  %v2881 = vadd.f32 %v2876, %v2880
  %v2882 = vadd.f32 %v2877, %v2880
  %v2883 = vadd.f32 %v2878, %v2880
  %v2884 = vadd.f32 %v2879, %v2880
  %v2885 = vld [vmem:[%s1 + $0x2a0] sm:$0xff]
  %v2886 = vld [vmem:[%s1 + $0x2a8] sm:$0xff]
  %v2887 = vld [vmem:[%s1 + $0x2b0] sm:$0xff]
  %v2888 = vld [vmem:[%s1 + $0x2b8] sm:$0xff]
  %v2889 = vld [vmem:[%s1 + $0x2c0] sm:$0x1]
  %v2890 = vperm.slane %v2889, 0
  %v2892 = vsel %vm80, %v2881, 0
  %v2895 = vsel %vm80, %v2882, 0
  %v2898 = vsel %vm80, %v2883, 0
  %v2901 = vsel %vm80, %v2884, 0
  %2903 = vmatpush.msra.mxu0 0.0
  %2904 = vmatpush.msra.mxu0 0.0
  %2905 = vmatpush.msra.mxu0 0.0
  %2906 = vmatpush.msra.mxu0 0.0
  %2907 = vmatpush.msra.mxu0 0.0
  %2908 = vmatpush.msra.mxu0 0.0
  %2909 = vmatpush.msra.mxu0 0.0
  %2910 = vmatpush.msra.mxu0 0.0
  %2911 = vmatpush.msra.mxu0 0.0
  %2912 = vmatpush.msra.mxu0 0.0
  %2913 = vmatpush.msra.mxu0 0.0
  %2914 = vmatpush.msra.mxu0 0.0
  %2915 = vmatpush.msra.mxu0 %v2888
  %2916 = vmatpush.msra.mxu0 %v2887
  %2917 = vmatpush.msra.mxu0 %v2886
  %2918 = vmatpush.msra.mxu0 %v2885
  %2919 = vmatmul.f32.gmra.mxu0 %v2892
  %v2920 = vpop.f32.mrf.mxu0
  %v2921 = vadd.f32 %v2890, %v2920
  %2922 = vmatmul.f32.gmra.mxu0 %v2895
  %v2923 = vpop.f32.mrf.mxu0
  %v2924 = vadd.f32 %v2890, %v2923
  %2925 = vmatmul.f32.gmra.mxu0 %v2898
  %v2926 = vpop.f32.mrf.mxu0
  %v2927 = vadd.f32 %v2890, %v2926
  %2928 = vmatmul.f32.gmra.mxu0 %v2901
  %v2929 = vpop.f32.mrf.mxu0
  %v2930 = vadd.f32 %v2890, %v2929
  %2931 = vdwg.mxu0
  %v2932 = vmul.f32 %v2921, 0.5
  %v2933 = vmul.f32 %v2924, 0.5
  %v2934 = vmul.f32 %v2927, 0.5
  %v2935 = vmul.f32 %v2930, 0.5
  %v2936 = vmul.f32 %v2921, 0.70710677
  %v2937 = vmul.f32 %v2924, 0.70710677
  %v2938 = vmul.f32 %v2927, 0.70710677
  %v2939 = vmul.f32 %v2930, 0.70710677
  %v2940 = vmul.f32 %v2936, %v2936
  %v2941 = vmin.f32 16.0, %v2940
  %v2942 = vmul.f32 %v2941, 2.1237322e-06
  %v2943 = vadd.f32 %v2942, 0.00028619796
  %v2944 = vmul.f32 %v2941, %v2943
  %v2945 = vadd.f32 %v2944, 0.0036580483
  %v2946 = vmul.f32 %v2941, %v2945
  %v2947 = vadd.f32 %v2946, 0.05243302
  %v2948 = vmul.f32 %v2941, %v2947
  %v2949 = vadd.f32 %v2948, 0.18741608
  %v2950 = vmul.f32 %v2941, %v2949
  %v2951 = vadd.f32 %v2950, 1.1283791
  %v2952 = vmul.f32 %v2936, %v2951
  %v2953 = vmul.f32 %v2941, 3.8918573e-05
  %v2954 = vadd.f32 %v2953, 0.001143296
  %v2955 = vmul.f32 %v2941, %v2954
  %v2956 = vadd.f32 %v2955, 0.014752088
  %v2957 = vmul.f32 %v2941, %v2956
  %v2958 = vadd.f32 %v2957, 0.112945676
  %v2959 = vmul.f32 %v2941, %v2958
  %v2960 = vadd.f32 %v2959, 0.4994258
  %v2961 = vmul.f32 %v2941, %v2960
  %v2962 = vadd.f32 %v2961, 1.0
  %v2963 = vrcp.pop %v2962
  %v2964 = vmul.f32 %v2962, %v2963
  %v2965 = vsub.f32 1.0, %v2964
  %v2966 = vmul.f32 %v2963, %v2965
  %v2967 = vadd.f32 %v2963, %v2966
  %vm2968 = vweird.f32 %v2962
  %vm2969 = vweird.f32 %v2963
  %vm2970 = vmor %vm2968, %vm2969
  %v2971 = vsel %vm2970, %v2963, %v2967
  %v2972 = vand.u32 2147483647, %v2962
  %vm2973 = vcmp.eq.f32.partialorder %v2972, 8.507059e+37
  %v2974 = vand.u32 %v2962, 2147483648
  %v2975 = vor.u32 1.1754944e-38, %v2974
  %v2976 = vsel %vm2973, %v2975, %v2971
  %v2977 = vmul.f32 %v2952, %v2976
  %v2978 = vmin.f32 %v2977, 1.0
  %v2979 = vmax.f32 %v2978, -1.0
  %v2980 = vmul.f32 %v2937, %v2937
  %v2981 = vmin.f32 16.0, %v2980
  %v2982 = vmul.f32 %v2981, 2.1237322e-06
  %v2983 = vadd.f32 %v2982, 0.00028619796
  %v2984 = vmul.f32 %v2981, %v2983
  %v2985 = vadd.f32 %v2984, 0.0036580483
  %v2986 = vmul.f32 %v2981, %v2985
  %v2987 = vadd.f32 %v2986, 0.05243302
  %v2988 = vmul.f32 %v2981, %v2987
  %v2989 = vadd.f32 %v2988, 0.18741608
  %v2990 = vmul.f32 %v2981, %v2989
  %v2991 = vadd.f32 %v2990, 1.1283791
  %v2992 = vmul.f32 %v2937, %v2991
  %v2993 = vmul.f32 %v2981, 3.8918573e-05
  %v2994 = vadd.f32 %v2993, 0.001143296
  %v2995 = vmul.f32 %v2981, %v2994
  %v2996 = vadd.f32 %v2995, 0.014752088
  %v2997 = vmul.f32 %v2981, %v2996
  %v2998 = vadd.f32 %v2997, 0.112945676
  %v2999 = vmul.f32 %v2981, %v2998
  %v3000 = vadd.f32 %v2999, 0.4994258
  %v3001 = vmul.f32 %v2981, %v3000
  %v3002 = vadd.f32 %v3001, 1.0
  %v3003 = vrcp.pop %v3002
  %v3004 = vmul.f32 %v3002, %v3003
  %v3005 = vsub.f32 1.0, %v3004
  %v3006 = vmul.f32 %v3003, %v3005
  %v3007 = vadd.f32 %v3003, %v3006
  %vm3008 = vweird.f32 %v3002
  %vm3009 = vweird.f32 %v3003
  %vm3010 = vmor %vm3008, %vm3009
  %v3011 = vsel %vm3010, %v3003, %v3007
  %v3012 = vand.u32 2147483647, %v3002
  %vm3013 = vcmp.eq.f32.partialorder %v3012, 8.507059e+37
  %v3014 = vand.u32 %v3002, 2147483648
  %v3015 = vor.u32 1.1754944e-38, %v3014
  %v3016 = vsel %vm3013, %v3015, %v3011
  %v3017 = vmul.f32 %v2992, %v3016
  %v3018 = vmin.f32 %v3017, 1.0
  %v3019 = vmax.f32 %v3018, -1.0
  %v3020 = vmul.f32 %v2938, %v2938
  %v3021 = vmin.f32 16.0, %v3020
  %v3022 = vmul.f32 %v3021, 2.1237322e-06
  %v3023 = vadd.f32 %v3022, 0.00028619796
  %v3024 = vmul.f32 %v3021, %v3023
  %v3025 = vadd.f32 %v3024, 0.0036580483
  %v3026 = vmul.f32 %v3021, %v3025
  %v3027 = vadd.f32 %v3026, 0.05243302
  %v3028 = vmul.f32 %v3021, %v3027
  %v3029 = vadd.f32 %v3028, 0.18741608
  %v3030 = vmul.f32 %v3021, %v3029
  %v3031 = vadd.f32 %v3030, 1.1283791
  %v3032 = vmul.f32 %v2938, %v3031
  %v3033 = vmul.f32 %v3021, 3.8918573e-05
  %v3034 = vadd.f32 %v3033, 0.001143296
  %v3035 = vmul.f32 %v3021, %v3034
  %v3036 = vadd.f32 %v3035, 0.014752088
  %v3037 = vmul.f32 %v3021, %v3036
  %v3038 = vadd.f32 %v3037, 0.112945676
  %v3039 = vmul.f32 %v3021, %v3038
  %v3040 = vadd.f32 %v3039, 0.4994258
  %v3041 = vmul.f32 %v3021, %v3040
  %v3042 = vadd.f32 %v3041, 1.0
  %v3043 = vrcp.pop %v3042
  %v3044 = vmul.f32 %v3042, %v3043
  %v3045 = vsub.f32 1.0, %v3044
  %v3046 = vmul.f32 %v3043, %v3045
  %v3047 = vadd.f32 %v3043, %v3046
  %vm3048 = vweird.f32 %v3042
  %vm3049 = vweird.f32 %v3043
  %vm3050 = vmor %vm3048, %vm3049
  %v3051 = vsel %vm3050, %v3043, %v3047
  %v3052 = vand.u32 2147483647, %v3042
  %vm3053 = vcmp.eq.f32.partialorder %v3052, 8.507059e+37
  %v3054 = vand.u32 %v3042, 2147483648
  %v3055 = vor.u32 1.1754944e-38, %v3054
  %v3056 = vsel %vm3053, %v3055, %v3051
  %v3057 = vmul.f32 %v3032, %v3056
  %v3058 = vmin.f32 %v3057, 1.0
  %v3059 = vmax.f32 %v3058, -1.0
  %v3060 = vmul.f32 %v2939, %v2939
  %v3061 = vmin.f32 16.0, %v3060
  %v3062 = vmul.f32 %v3061, 2.1237322e-06
  %v3063 = vadd.f32 %v3062, 0.00028619796
  %v3064 = vmul.f32 %v3061, %v3063
  %v3065 = vadd.f32 %v3064, 0.0036580483
  %v3066 = vmul.f32 %v3061, %v3065
  %v3067 = vadd.f32 %v3066, 0.05243302
  %v3068 = vmul.f32 %v3061, %v3067
  %v3069 = vadd.f32 %v3068, 0.18741608
  %v3070 = vmul.f32 %v3061, %v3069
  %v3071 = vadd.f32 %v3070, 1.1283791
  %v3072 = vmul.f32 %v2939, %v3071
  %v3073 = vmul.f32 %v3061, 3.8918573e-05
  %v3074 = vadd.f32 %v3073, 0.001143296
  %v3075 = vmul.f32 %v3061, %v3074
  %v3076 = vadd.f32 %v3075, 0.014752088
  %v3077 = vmul.f32 %v3061, %v3076
  %v3078 = vadd.f32 %v3077, 0.112945676
  %v3079 = vmul.f32 %v3061, %v3078
  %v3080 = vadd.f32 %v3079, 0.4994258
  %v3081 = vmul.f32 %v3061, %v3080
  %v3082 = vadd.f32 %v3081, 1.0
  %v3083 = vrcp.pop %v3082
  %v3084 = vmul.f32 %v3082, %v3083
  %v3085 = vsub.f32 1.0, %v3084
  %v3086 = vmul.f32 %v3083, %v3085
  %v3087 = vadd.f32 %v3083, %v3086
  %vm3088 = vweird.f32 %v3082
  %vm3089 = vweird.f32 %v3083
  %vm3090 = vmor %vm3088, %vm3089
  %v3091 = vsel %vm3090, %v3083, %v3087
  %v3092 = vand.u32 2147483647, %v3082
  %vm3093 = vcmp.eq.f32.partialorder %v3092, 8.507059e+37
  %v3094 = vand.u32 %v3082, 2147483648
  %v3095 = vor.u32 1.1754944e-38, %v3094
  %v3096 = vsel %vm3093, %v3095, %v3091
  %v3097 = vmul.f32 %v3072, %v3096
  %v3098 = vmin.f32 %v3097, 1.0
  %v3099 = vmax.f32 %v3098, -1.0
  %v3100 = vadd.f32 %v2979, 1.0
  %v3101 = vadd.f32 %v3019, 1.0
  %v3102 = vadd.f32 %v3059, 1.0
  %v3103 = vadd.f32 %v3099, 1.0
  %v3104 = vmul.f32 %v2932, %v3100
  %v3105 = vmul.f32 %v2933, %v3101
  %v3106 = vmul.f32 %v2934, %v3102
  %v3107 = vmul.f32 %v2935, %v3103
  %v3108 = vld [vmem:[%s1 + $0x2c8] sm:$0xff]
  %v3109 = vld [vmem:[%s1 + $0x2d0] sm:$0xff]
  %v3110 = vld [vmem:[%s1 + $0x2d8] sm:$0xff]
  %v3111 = vld [vmem:[%s1 + $0x2e0] sm:$0xff]
  %v3112 = vld [vmem:[%s1 + $0x2e8] sm:$0xff]
  %v3113 = vld [vmem:[%s1 + $0x2f0] sm:$0xff]
  %v3114 = vld [vmem:[%s1 + $0x2f8] sm:$0xff]
  %v3115 = vld [vmem:[%s1 + $0x300] sm:$0xff]
  %v3116 = vld [vmem:[%s1 + $0x308] sm:$0xff]
  %v3117 = vld [vmem:[%s1 + $0x310] sm:$0xff]
  %v3118 = vld [vmem:[%s1 + $0x318] sm:$0xff]
  %v3119 = vld [vmem:[%s1 + $0x320] sm:$0xff]
  %v3120 = vld [vmem:[%s1 + $0x328] sm:$0xff]
  %v3121 = vld [vmem:[%s1 + $0x330] sm:$0xff]
  %v3122 = vld [vmem:[%s1 + $0x338] sm:$0xff]
  %v3123 = vld [vmem:[%s1 + $0x340] sm:$0xff]
  %v3124 = vld [vmem:[%s1 + $0x348] sm:$0x1]
  %v3125 = vperm.slane %v3124, 0
  %3126 = vmatpush.msra.mxu0 %v3123
  %3127 = vmatpush.msra.mxu0 %v3122
  %3128 = vmatpush.msra.mxu0 %v3121
  %3129 = vmatpush.msra.mxu0 %v3120
  %3130 = vmatpush.msra.mxu0 %v3119
  %3131 = vmatpush.msra.mxu0 %v3118
  %3132 = vmatpush.msra.mxu0 %v3117
  %3133 = vmatpush.msra.mxu0 %v3116
  %3134 = vmatpush.msra.mxu0 %v3115
  %3135 = vmatpush.msra.mxu0 %v3114
  %3136 = vmatpush.msra.mxu0 %v3113
  %3137 = vmatpush.msra.mxu0 %v3112
  %3138 = vmatpush.msra.mxu0 %v3111
  %3139 = vmatpush.msra.mxu0 %v3110
  %3140 = vmatpush.msra.mxu0 %v3109
  %3141 = vmatpush.msra.mxu0 %v3108
  %3142 = vmatmul.f32.gmra.mxu0 %v3104
  %v3143 = vpop.f32.mrf.mxu0
  %3144 = vmatmul.f32.gmra.mxu0 %v3105
  %v3145 = vpop.f32.mrf.mxu0
  %v3146 = vadd.f32 %v3125, %v3145
  %3147 = vmatmul.f32.gmra.mxu0 %v3106
  %v3148 = vpop.f32.mrf.mxu0
  %3149 = vmatmul.f32.gmra.mxu0 %v3107
  %v3150 = vpop.f32.mrf.mxu0
  %v3151 = vadd.f32 %v3125, %v3150
  %3152 = vdwg.mxu0
  %v3153 = vadd.f32 %v2782, %v3146
  %v3154 = vadd.f32 %v2784, %v3151
  %v3155 = vld [vmem:[%s1 + $0xe8] sm:$0xff]
  %v3156 = vld [vmem:[%s1 + $0xf0] sm:$0xff]
  %v3157 = vld [vmem:[%s1 + $0xf8] sm:$0xff]
  %v3158 = vld [vmem:[%s1 + $0x100] sm:$0xff]
  %v3159 = vld [vmem:[%s1 + $0x108] sm:$0x1]
  %v3161 = vrot.slane %v3153, 4
  %vm3163 = vcmask 1043456
  %v3164 = vsel %vm3163, %v3161, %v3154
  %v3165 = vperm.slane %v3159, 0
  %v3167 = vsel %vm80, %v3164, 0
  %3169 = vmatpush.msra.mxu0 0.0
  %3170 = vmatpush.msra.mxu0 0.0
  %3171 = vmatpush.msra.mxu0 0.0
  %3172 = vmatpush.msra.mxu0 0.0
  %3173 = vmatpush.msra.mxu0 0.0
  %3174 = vmatpush.msra.mxu0 0.0
  %3175 = vmatpush.msra.mxu0 0.0
  %3176 = vmatpush.msra.mxu0 0.0
  %3177 = vmatpush.msra.mxu0 0.0
  %3178 = vmatpush.msra.mxu0 0.0
  %3179 = vmatpush.msra.mxu0 0.0
  %3180 = vmatpush.msra.mxu0 0.0
  %3181 = vmatpush.msra.mxu0 %v3158
  %3182 = vmatpush.msra.mxu0 %v3157
  %3183 = vmatpush.msra.mxu0 %v3156
  %3184 = vmatpush.msra.mxu0 %v3155
  %3185 = vmatmul.f32.gmra.mxu0 %v3167
  %v3186 = vpop.f32.mrf.mxu0
  %v3187 = vadd.f32 %v3165, %v3186
  %3188 = vdwg.mxu0
  %3189 = vst [vmem:[%s2] sm:$0xff] %v3187
  %3190 = vmatpush.msra.mxu0 %v26
  %3191 = vmatpush.msra.mxu0 %v25
  %3192 = vmatpush.msra.mxu0 %v24
  %3193 = vmatpush.msra.mxu0 %v23
  %3194 = vmatpush.msra.mxu0 %v22
  %3195 = vmatpush.msra.mxu0 %v21
  %3196 = vmatpush.msra.mxu0 %v20
  %3197 = vmatpush.msra.mxu0 %v19
  %3198 = vmatpush.msra.mxu0 %v18
  %3199 = vmatpush.msra.mxu0 %v17
  %3200 = vmatpush.msra.mxu0 %v16
  %3201 = vmatpush.msra.mxu0 %v15
  %3202 = vmatpush.msra.mxu0 %v14
  %3203 = vmatpush.msra.mxu0 %v13
  %3204 = vmatpush.msra.mxu0 %v12
  %3205 = vmatpush.msra.mxu0 %v11
  %3206 = vmatmul.f32.gmra.mxu0 %v3187
  %v3207 = vpop.f32.mrf.mxu0
  %v3208 = vadd.f32 %v32, %v3207
  %3209 = vdwg.mxu0
  %v3211 = vsel %vm80, %v3208, 0
  %3213 = vmatpush.msra.mxu0 0.0
  %3214 = vmatpush.msra.mxu0 0.0
  %3215 = vmatpush.msra.mxu0 0.0
  %3216 = vmatpush.msra.mxu0 0.0
  %3217 = vmatpush.msra.mxu0 0.0
  %3218 = vmatpush.msra.mxu0 0.0
  %3219 = vmatpush.msra.mxu0 0.0
  %3220 = vmatpush.msra.mxu0 0.0
  %3221 = vmatpush.msra.mxu0 0.0
  %3222 = vmatpush.msra.mxu0 0.0
  %3223 = vmatpush.msra.mxu0 0.0
  %3224 = vmatpush.msra.mxu0 0.0
  %3225 = vmatpush.msra.mxu0 %v3158
  %3226 = vmatpush.msra.mxu0 %v3157
  %3227 = vmatpush.msra.mxu0 %v3156
  %3228 = vmatpush.msra.mxu0 %v3155
  %3229 = vmatmul.f32.gmra.mxu0 %v3211
  %v3230 = vpop.f32.mrf.mxu0
  %v3231 = vadd.f32 %v3165, %v3230
  %3232 = vdwg.mxu0
  %3233 = vst [vmem:[%s2 + $0x8] sm:$0xff] %v3231
  // Predicated region
  $region10: #{model_forward.1} parent=0 // pred_check
    _
  $region11: #{model_forward.1} parent=0 // pred_check_branch
    %3235 = sbr.rel (0) target = $region13
  $region12: #{model_forward.1} parent=0 // pred_region
    _
  $region13: #{model_forward.1} parent=0 // pred_fallthru
    _
  // Predicated region
  $region14: #{model_forward.1} parent=0 // pred_check
    _
  $region15: #{model_forward.1} parent=0 // pred_check_branch
    %3237 = sbr.rel (0) target = $region17
  $region16: #{model_forward.1} parent=0 // pred_region
    _
  $region17: #{model_forward.1} parent=0 // pred_fallthru
    _

</llo_original>
